<compile_context>
chip_gen: v6e
topology: v6e:2x2x1
jax: 0.10.0
libtpu: 0.0.40
codegen_flags: <defaults>
</compile_context>

<pallas_src>
import os
import numpy as np
import jax
import jax.numpy as jnp
from jax import lax
from jax.experimental import pallas as pl
from jax.experimental.pallas import tpu as pltpu

IN_DIM = 512
HID = 512
OUT_DIM = 1
OUT_PAD = 128                       # fc4 out padded to one lane group
P_DROP = 0.1
NEG_SLOPE = 0.01                    # F.leaky_relu default
KEEP_SCALE = 1.0 / (1.0 - P_DROP)   # inverted-dropout scale, folded into weights

# Thresholds as plain Python ints (NOT jax arrays -> nothing closure-captured).
_T32 = int(round(P_DROP * (1 << 32)))   # drop iff uint32 bits < _T32
_T16 = int(round(P_DROP * (1 << 16)))   # drop iff 16-bit half  < _T16

# HW PRNG on a real TPU backend; counter-hash fallback elsewhere (the stateful
# TPU PRNG has no CPU/interpreter lowering).  Override: CRITIC_USE_HW_PRNG=0/1.
_USE_HW_PRNG = os.environ.get(
    "CRITIC_USE_HW_PRNG",
    "1" if jax.default_backend() == "tpu" else "0") == "1"


def _finalize(h):
    """splitmix32-style finalizer, pure uint32 VPU math."""
    h = (h ^ (h >> 16)) * np.uint32(0x7FEB352D)
    h = (h ^ (h >> 15)) * np.uint32(0x846CA68B)
    return h ^ (h >> 16)


def critic_kernel(seed_ref,
                  x_ref,
                  w1_ref, b1_ref,
                  w2_ref, b2_ref,
                  w3_ref, b3_ref,
                  w4_ref, b4_ref,
                  out_ref):
    shape = x_ref.shape                       # (bt, 512); all 4 masks share it
    pid = pl.program_id(0)

    if _USE_HW_PRNG:
        # Distinct stream per batch tile (seed, program_id) -> tiles/cores
        # never share random bits.
        pltpu.prng_seed(seed_ref[0], pid)

        def _hw_keep():
            bits = pltpu.prng_random_bits(shape)
            if bits.dtype != jnp.uint32:
                bits = pltpu.bitcast(bits, jnp.uint32)
            return bits >= np.uint32(_T32)

        keep_fns = [_hw_keep, _hw_keep, _hw_keep, _hw_keep]
    else:
        # Counter-hash fallback (interpreter parity).  The iota base is built
        # ONCE per tile; two finalized hashes provide all four layer masks via
        # their 16-bit halves (p_drop = 6554/65536 ~= 0.1000).
        seed_u32 = seed_ref[0].astype(jnp.uint32)
        salt = seed_u32 ^ (pid.astype(jnp.uint32) * np.uint32(0x9E3779B1))
        r = lax.broadcasted_iota(jnp.uint32, shape, 0)
        c = lax.broadcasted_iota(jnp.uint32, shape, 1)
        base = (r * np.uint32(0x9E3779B9)) ^ (c * np.uint32(0x85EBCA6B)) ^ salt
        h01 = _finalize(base ^ np.uint32(0x243F6A88))
        h23 = _finalize(base ^ np.uint32(0x13198A2E))
        keep_fns = [
            lambda: (h01 & np.uint32(0xFFFF)) >= np.uint32(_T16),
            lambda: (h01 >> 16) >= np.uint32(_T16),
            lambda: (h23 & np.uint32(0xFFFF)) >= np.uint32(_T16),
            lambda: (h23 >> 16) >= np.uint32(_T16),
        ]

    def layer(h, keep_fn, w_ref, b_ref, activate):
        # Dropout on the layer INPUT (matches the PyTorch forward: dropout is
        # applied before every linear, incl. raw x before fc1).  The 1/(1-p)
        # scale is folded into the bf16 weights in prepare_params().
        hd = jnp.where(keep_fn(), h, 0)                      # bf16 select
        y = jnp.dot(hd, w_ref[...], preferred_element_type=jnp.float32)
        y = y + b_ref[...]                                   # f32 bias add
        if activate:
            y = y.astype(jnp.bfloat16)
            y = jnp.maximum(y, NEG_SLOPE * y)                # leaky_relu, bf16 VPU
        return y

    h = x_ref[...].astype(jnp.bfloat16)        # in-kernel cast, hides under MXU
    h = layer(h, keep_fns[0], w1_ref, b1_ref, True)
    h = layer(h, keep_fns[1], w2_ref, b2_ref, True)
    h = layer(h, keep_fns[2], w3_ref, b3_ref, True)
    out_ref[...] = layer(h, keep_fns[3], w4_ref, b4_ref, False)   # fc4, f32 out


def init_params(key):
    """Deterministic nn.Linear-style init (uniform +/- 1/sqrt(fan_in)), f32, (out,in)."""
    ks = jax.random.split(key, 8)

    def lin(kw, kb, fan_in, fan_out):
        bound = 1.0 / float(np.sqrt(fan_in))
        w = jax.random.uniform(kw, (fan_out, fan_in), jnp.float32, -bound, bound)
        b = jax.random.uniform(kb, (fan_out,), jnp.float32, -bound, bound)
        return w, b

    w1, b1 = lin(ks[0], ks[1], IN_DIM, HID)
    w2, b2 = lin(ks[2], ks[3], HID, HID)
    w3, b3 = lin(ks[4], ks[5], HID, HID)
    w4, b4 = lin(ks[6], ks[7], HID, OUT_DIM)
    return dict(w1=w1, b1=b1, w2=w2, b2=b2, w3=w3, b3=b3, w4=w4, b4=b4)


def prepare_params(params):
    """One-time weight prep, hoisted OUT of the per-call jitted wrapper:
    transpose (out,in)->(in,out), fold the inverted-dropout 1/(1-p) scale into
    W, zero-pad fc4 to 128 output lanes, cast weights to bf16 (f32 accumulation
    stays in the kernel).  Biases stay f32 (not scaled)."""
    s = KEEP_SCALE
    w1t = (params["w1"].T * s).astype(jnp.bfloat16)
    w2t = (params["w2"].T * s).astype(jnp.bfloat16)
    w3t = (params["w3"].T * s).astype(jnp.bfloat16)
    w4t = jnp.zeros((HID, OUT_PAD), jnp.float32).at[:, :OUT_DIM].set(params["w4"].T * s)
    w4t = w4t.astype(jnp.bfloat16)
    b1 = params["b1"].reshape(1, HID).astype(jnp.float32)
    b2 = params["b2"].reshape(1, HID).astype(jnp.float32)
    b3 = params["b3"].reshape(1, HID).astype(jnp.float32)
    b4 = jnp.zeros((1, OUT_PAD), jnp.float32).at[:, :OUT_DIM].set(params["b4"][None, :])
    return (w1t, b1, w2t, b2, w3t, b3, w4t, b4)


def _round_up(v, m):
    return -(-v // m) * m


def _choose_tile(b):
    # >= 16 rows (bf16-native (16,128) tiling), >= 2 grid steps when the batch
    # allows it (so dimension_semantics=("parallel",) gives both v7x
    # TensorCores work), capped at 1024 rows: amortizes the ~0.35us/step grid
    # overhead while keeping VMEM use a few MB.
    if b <= 16:
        return 16
    return min(1024, _round_up(_round_up(b, 2) // 2, 16))


@jax.jit
def critic_forward(x, prepared, seed):
    w1t, b1, w2t, b2, w3t, b3, w4t, b4 = prepared
    B = x.shape[0]
    bt = _choose_tile(B)
    b_pad = _round_up(B, bt)

    xp = x
    if b_pad != B:
        xp = jnp.pad(xp, ((0, b_pad - B), (0, 0)))

    const = lambda i: (0, 0)                 # weights/biases resident across the grid

    flops = 2 * b_pad * (IN_DIM * HID + 2 * HID * HID + HID * OUT_PAD)
    bytes_accessed = ((3 * HID * HID + HID * OUT_PAD) * 2      # bf16 weights
                      + (3 * HID + OUT_PAD) * 4                # f32 biases
                      + b_pad * IN_DIM * 4                     # f32 x in
                      + b_pad * OUT_PAD * 4)                   # f32 out

    out_pad = pl.pallas_call(
        critic_kernel,
        out_shape=jax.ShapeDtypeStruct((b_pad, OUT_PAD), jnp.float32),
        grid=(b_pad // bt,),
        in_specs=[
            pl.BlockSpec(memory_space=pltpu.MemorySpace.SMEM),                # seed scalar
            pl.BlockSpec((bt, IN_DIM), lambda i: (i, 0)),                     # x tile (f32)
            pl.BlockSpec((HID, HID), const), pl.BlockSpec((1, HID), const),        # fc1
            pl.BlockSpec((HID, HID), const), pl.BlockSpec((1, HID), const),        # fc2
            pl.BlockSpec((HID, HID), const), pl.BlockSpec((1, HID), const),        # fc3
            pl.BlockSpec((HID, OUT_PAD), const), pl.BlockSpec((1, OUT_PAD), const),  # fc4
        ],
        out_specs=pl.BlockSpec((bt, OUT_PAD), lambda i: (i, 0)),
        compiler_params=pltpu.CompilerParams(dimension_semantics=("parallel",)),
        cost_estimate=pl.CostEstimate(flops=flops, transcendentals=0,
                                      bytes_accessed=bytes_accessed),
    )(jnp.asarray(seed, jnp.int32).reshape(1),
      xp, w1t, b1, w2t, b2, w3t, b3, w4t, b4)

    # NOTE: the realized dropout mask depends on the tile size / program_id,
    # so results are reproducible for a fixed (seed, B) but not across tile
    # choices — fine statistically, documented per review.
    return out_pad[:B, :OUT_DIM]             # (B, 1), matching fc4 = nn.Linear(512, 1)


if __name__ == "__main__":
    key = jax.random.PRNGKey(0)
    k_param, k_x = jax.random.split(key)

    params = init_params(k_param)
    prepared = prepare_params(params)        # one-time prep, outside the jitted call

    B = 8
    x = jax.random.normal(k_x, (B, IN_DIM), jnp.float32)

    out = critic_forward(x, prepared, 1234)
    out = jax.block_until_ready(out)

    assert out.shape == (B, OUT_DIM), out.shape
    assert bool(jnp.all(jnp.isfinite(out)))
    print("KERNEL_OK")
</pallas_src>

<mosaic_0001>
module attributes {stable_mosaic.version = 11 : i64} {
  func.func @critic_kernel(%arg0: i32, %arg1: memref<1xi32, #tpu.memory_space<smem>>, %arg2: memref<16x512xf32, #tpu.memory_space<vmem>>, %arg3: memref<512x512xbf16, #tpu.memory_space<vmem>>, %arg4: memref<1x512xf32, #tpu.memory_space<vmem>>, %arg5: memref<512x512xbf16, #tpu.memory_space<vmem>>, %arg6: memref<1x512xf32, #tpu.memory_space<vmem>>, %arg7: memref<512x512xbf16, #tpu.memory_space<vmem>>, %arg8: memref<1x512xf32, #tpu.memory_space<vmem>>, %arg9: memref<512x128xbf16, #tpu.memory_space<vmem>>, %arg10: memref<1x128xf32, #tpu.memory_space<vmem>>, %arg11: memref<16x128xf32, #tpu.memory_space<vmem>>) attributes {dimension_semantics = [#tpu.dimension_semantics<parallel>], iteration_bounds = array<i64: 1>, scalar_prefetch = 0 : i64, scratch_operands = 0 : i64, tpu.core_type = #tpu.core_type<tc>, window_params = [{transform_indices = @transform_0, window_bounds = array<i64: 1>}, {transform_indices = @transform_1, window_bounds = array<i64: 16, 512>}, {pipeline_mode = #tpu.pipeline_mode<synchronous>, transform_indices = @transform_2, window_bounds = array<i64: 512, 512>}, {pipeline_mode = #tpu.pipeline_mode<synchronous>, transform_indices = @transform_3, window_bounds = array<i64: 1, 512>}, {pipeline_mode = #tpu.pipeline_mode<synchronous>, transform_indices = @transform_4, window_bounds = array<i64: 512, 512>}, {pipeline_mode = #tpu.pipeline_mode<synchronous>, transform_indices = @transform_5, window_bounds = array<i64: 1, 512>}, {pipeline_mode = #tpu.pipeline_mode<synchronous>, transform_indices = @transform_6, window_bounds = array<i64: 512, 512>}, {pipeline_mode = #tpu.pipeline_mode<synchronous>, transform_indices = @transform_7, window_bounds = array<i64: 1, 512>}, {pipeline_mode = #tpu.pipeline_mode<synchronous>, transform_indices = @transform_8, window_bounds = array<i64: 512, 128>}, {pipeline_mode = #tpu.pipeline_mode<synchronous>, transform_indices = @transform_9, window_bounds = array<i64: 1, 128>}, {transform_indices = @transform_10, window_bounds = array<i64: 16, 128>}]} {
    %c0 = arith.constant 0 : index
    %0 = memref.load %arg1[%c0] : memref<1xi32, #tpu.memory_space<smem>>
    %c-1640531535_i32 = arith.constant -1640531535 : i32
    %1 = arith.muli %arg0, %c-1640531535_i32 : i32
    %2 = arith.xori %0, %1 : i32
    %3 = tpu.iota {dimensions = array<i32: 0>} : vector<16x512xi32>
    %4 = tpu.iota {dimensions = array<i32: 1>} : vector<16x512xi32>
    %c-1640531527_i32 = arith.constant -1640531527 : i32
    %5 = vector.broadcast %c-1640531527_i32 : i32 to vector<16x512xi32>
    %6 = arith.muli %3, %5 : vector<16x512xi32>
    %c-2048144789_i32 = arith.constant -2048144789 : i32
    %7 = vector.broadcast %c-2048144789_i32 : i32 to vector<16x512xi32>
    %8 = arith.muli %4, %7 : vector<16x512xi32>
    %9 = arith.xori %6, %8 : vector<16x512xi32>
    %10 = vector.broadcast %2 : i32 to vector<16x512xi32>
    %11 = arith.xori %9, %10 : vector<16x512xi32>
    %c608135816_i32 = arith.constant 608135816 : i32
    %12 = vector.broadcast %c608135816_i32 : i32 to vector<16x512xi32>
    %13 = arith.xori %11, %12 : vector<16x512xi32>
    %c16_i32 = arith.constant 16 : i32
    %14 = vector.broadcast %c16_i32 : i32 to vector<16x512xi32>
    %15 = arith.shrui %13, %14 : vector<16x512xi32>
    %16 = arith.xori %13, %15 : vector<16x512xi32>
    %c2146121005_i32 = arith.constant 2146121005 : i32
    %17 = vector.broadcast %c2146121005_i32 : i32 to vector<16x512xi32>
    %18 = arith.muli %16, %17 : vector<16x512xi32>
    %c15_i32 = arith.constant 15 : i32
    %19 = vector.broadcast %c15_i32 : i32 to vector<16x512xi32>
    %20 = arith.shrui %18, %19 : vector<16x512xi32>
    %21 = arith.xori %18, %20 : vector<16x512xi32>
    %c-2073254261_i32 = arith.constant -2073254261 : i32
    %22 = vector.broadcast %c-2073254261_i32 : i32 to vector<16x512xi32>
    %23 = arith.muli %21, %22 : vector<16x512xi32>
    %c16_i32_0 = arith.constant 16 : i32
    %24 = vector.broadcast %c16_i32_0 : i32 to vector<16x512xi32>
    %25 = arith.shrui %23, %24 : vector<16x512xi32>
    %26 = arith.xori %23, %25 : vector<16x512xi32>
    %c320440878_i32 = arith.constant 320440878 : i32
    %27 = vector.broadcast %c320440878_i32 : i32 to vector<16x512xi32>
    %28 = arith.xori %11, %27 : vector<16x512xi32>
    %c16_i32_1 = arith.constant 16 : i32
    %29 = vector.broadcast %c16_i32_1 : i32 to vector<16x512xi32>
    %30 = arith.shrui %28, %29 : vector<16x512xi32>
    %31 = arith.xori %28, %30 : vector<16x512xi32>
    %c2146121005_i32_2 = arith.constant 2146121005 : i32
    %32 = vector.broadcast %c2146121005_i32_2 : i32 to vector<16x512xi32>
    %33 = arith.muli %31, %32 : vector<16x512xi32>
    %c15_i32_3 = arith.constant 15 : i32
    %34 = vector.broadcast %c15_i32_3 : i32 to vector<16x512xi32>
    %35 = arith.shrui %33, %34 : vector<16x512xi32>
    %36 = arith.xori %33, %35 : vector<16x512xi32>
    %c-2073254261_i32_4 = arith.constant -2073254261 : i32
    %37 = vector.broadcast %c-2073254261_i32_4 : i32 to vector<16x512xi32>
    %38 = arith.muli %36, %37 : vector<16x512xi32>
    %c16_i32_5 = arith.constant 16 : i32
    %39 = vector.broadcast %c16_i32_5 : i32 to vector<16x512xi32>
    %40 = arith.shrui %38, %39 : vector<16x512xi32>
    %41 = arith.xori %38, %40 : vector<16x512xi32>
    %c0_6 = arith.constant 0 : index
    %c0_7 = arith.constant 0 : index
    %42 = vector.load %arg2[%c0_6, %c0_7] : memref<16x512xf32, #tpu.memory_space<vmem>>, vector<16x512xf32>
    %43 = arith.truncf %42 : vector<16x512xf32> to vector<16x512xbf16>
    %c65535_i32 = arith.constant 65535 : i32
    %44 = vector.broadcast %c65535_i32 : i32 to vector<16x512xi32>
    %45 = arith.andi %26, %44 : vector<16x512xi32>
    %c6554_i32 = arith.constant 6554 : i32
    %46 = vector.broadcast %c6554_i32 : i32 to vector<16x512xi32>
    %47 = arith.cmpi uge, %45, %46 : vector<16x512xi32>
    %c0_i32 = arith.constant 0 : i32
    %48 = arith.sitofp %c0_i32 : i32 to bf16
    %49 = vector.broadcast %48 : bf16 to vector<16x512xbf16>
    %50 = arith.select %47, %43, %49 : vector<16x512xi1>, vector<16x512xbf16>
    %c0_8 = arith.constant 0 : index
    %c0_9 = arith.constant 0 : index
    %51 = vector.load %arg3[%c0_8, %c0_9] : memref<512x512xbf16, #tpu.memory_space<vmem>>, vector<512x512xbf16>
    %cst = arith.constant dense<0.000000e+00> : vector<16x512xf32>
    %52 = tpu.matmul %50, %51, %cst {dimension_numbers = #tpu.dot_dimension_numbers<[1], [0], [0], [1], [0, 0, 1, 1], [], []>} : vector<16x512xbf16>, vector<512x512xbf16>, vector<16x512xf32> -> vector<16x512xf32>
    %c0_10 = arith.constant 0 : index
    %c0_11 = arith.constant 0 : index
    %53 = vector.load %arg4[%c0_10, %c0_11] : memref<1x512xf32, #tpu.memory_space<vmem>>, vector<1x512xf32>
    %54 = vector.broadcast %53 : vector<1x512xf32> to vector<16x512xf32>
    %55 = arith.addf %52, %54 : vector<16x512xf32>
    %56 = arith.truncf %55 : vector<16x512xf32> to vector<16x512xbf16>
    %cst_12 = arith.constant 1.000980e-02 : bf16
    %57 = vector.broadcast %cst_12 : bf16 to vector<16x512xbf16>
    %58 = arith.mulf %57, %56 : vector<16x512xbf16>
    %59 = arith.maximumf %56, %58 : vector<16x512xbf16>
    %c16_i32_13 = arith.constant 16 : i32
    %60 = vector.broadcast %c16_i32_13 : i32 to vector<16x512xi32>
    %61 = arith.shrui %26, %60 : vector<16x512xi32>
    %c6554_i32_14 = arith.constant 6554 : i32
    %62 = vector.broadcast %c6554_i32_14 : i32 to vector<16x512xi32>
    %63 = arith.cmpi uge, %61, %62 : vector<16x512xi32>
    %c0_i32_15 = arith.constant 0 : i32
    %64 = arith.sitofp %c0_i32_15 : i32 to bf16
    %65 = vector.broadcast %64 : bf16 to vector<16x512xbf16>
    %66 = arith.select %63, %59, %65 : vector<16x512xi1>, vector<16x512xbf16>
    %c0_16 = arith.constant 0 : index
    %c0_17 = arith.constant 0 : index
    %67 = vector.load %arg5[%c0_16, %c0_17] : memref<512x512xbf16, #tpu.memory_space<vmem>>, vector<512x512xbf16>
    %cst_18 = arith.constant dense<0.000000e+00> : vector<16x512xf32>
    %68 = tpu.matmul %66, %67, %cst_18 {dimension_numbers = #tpu.dot_dimension_numbers<[1], [0], [0], [1], [0, 0, 1, 1], [], []>} : vector<16x512xbf16>, vector<512x512xbf16>, vector<16x512xf32> -> vector<16x512xf32>
    %c0_19 = arith.constant 0 : index
    %c0_20 = arith.constant 0 : index
    %69 = vector.load %arg6[%c0_19, %c0_20] : memref<1x512xf32, #tpu.memory_space<vmem>>, vector<1x512xf32>
    %70 = vector.broadcast %69 : vector<1x512xf32> to vector<16x512xf32>
    %71 = arith.addf %68, %70 : vector<16x512xf32>
    %72 = arith.truncf %71 : vector<16x512xf32> to vector<16x512xbf16>
    %cst_21 = arith.constant 1.000980e-02 : bf16
    %73 = vector.broadcast %cst_21 : bf16 to vector<16x512xbf16>
    %74 = arith.mulf %73, %72 : vector<16x512xbf16>
    %75 = arith.maximumf %72, %74 : vector<16x512xbf16>
    %c65535_i32_22 = arith.constant 65535 : i32
    %76 = vector.broadcast %c65535_i32_22 : i32 to vector<16x512xi32>
    %77 = arith.andi %41, %76 : vector<16x512xi32>
    %c6554_i32_23 = arith.constant 6554 : i32
    %78 = vector.broadcast %c6554_i32_23 : i32 to vector<16x512xi32>
    %79 = arith.cmpi uge, %77, %78 : vector<16x512xi32>
    %c0_i32_24 = arith.constant 0 : i32
    %80 = arith.sitofp %c0_i32_24 : i32 to bf16
    %81 = vector.broadcast %80 : bf16 to vector<16x512xbf16>
    %82 = arith.select %79, %75, %81 : vector<16x512xi1>, vector<16x512xbf16>
    %c0_25 = arith.constant 0 : index
    %c0_26 = arith.constant 0 : index
    %83 = vector.load %arg7[%c0_25, %c0_26] : memref<512x512xbf16, #tpu.memory_space<vmem>>, vector<512x512xbf16>
    %cst_27 = arith.constant dense<0.000000e+00> : vector<16x512xf32>
    %84 = tpu.matmul %82, %83, %cst_27 {dimension_numbers = #tpu.dot_dimension_numbers<[1], [0], [0], [1], [0, 0, 1, 1], [], []>} : vector<16x512xbf16>, vector<512x512xbf16>, vector<16x512xf32> -> vector<16x512xf32>
    %c0_28 = arith.constant 0 : index
    %c0_29 = arith.constant 0 : index
    %85 = vector.load %arg8[%c0_28, %c0_29] : memref<1x512xf32, #tpu.memory_space<vmem>>, vector<1x512xf32>
    %86 = vector.broadcast %85 : vector<1x512xf32> to vector<16x512xf32>
    %87 = arith.addf %84, %86 : vector<16x512xf32>
    %88 = arith.truncf %87 : vector<16x512xf32> to vector<16x512xbf16>
    %cst_30 = arith.constant 1.000980e-02 : bf16
    %89 = vector.broadcast %cst_30 : bf16 to vector<16x512xbf16>
    %90 = arith.mulf %89, %88 : vector<16x512xbf16>
    %91 = arith.maximumf %88, %90 : vector<16x512xbf16>
    %c16_i32_31 = arith.constant 16 : i32
    %92 = vector.broadcast %c16_i32_31 : i32 to vector<16x512xi32>
    %93 = arith.shrui %41, %92 : vector<16x512xi32>
    %c6554_i32_32 = arith.constant 6554 : i32
    %94 = vector.broadcast %c6554_i32_32 : i32 to vector<16x512xi32>
    %95 = arith.cmpi uge, %93, %94 : vector<16x512xi32>
    %c0_i32_33 = arith.constant 0 : i32
    %96 = arith.sitofp %c0_i32_33 : i32 to bf16
    %97 = vector.broadcast %96 : bf16 to vector<16x512xbf16>
    %98 = arith.select %95, %91, %97 : vector<16x512xi1>, vector<16x512xbf16>
    %c0_34 = arith.constant 0 : index
    %c0_35 = arith.constant 0 : index
    %99 = vector.load %arg9[%c0_34, %c0_35] : memref<512x128xbf16, #tpu.memory_space<vmem>>, vector<512x128xbf16>
    %cst_36 = arith.constant dense<0.000000e+00> : vector<16x128xf32>
    %100 = tpu.matmul %98, %99, %cst_36 {dimension_numbers = #tpu.dot_dimension_numbers<[1], [0], [0], [1], [0, 0, 1, 1], [], []>} : vector<16x512xbf16>, vector<512x128xbf16>, vector<16x128xf32> -> vector<16x128xf32>
    %c0_37 = arith.constant 0 : index
    %c0_38 = arith.constant 0 : index
    %101 = vector.load %arg10[%c0_37, %c0_38] : memref<1x128xf32, #tpu.memory_space<vmem>>, vector<1x128xf32>
    %102 = vector.broadcast %101 : vector<1x128xf32> to vector<16x128xf32>
    %103 = arith.addf %100, %102 : vector<16x128xf32>
    %c0_39 = arith.constant 0 : index
    %c0_40 = arith.constant 0 : index
    %104 = vector.load %arg11[%c0_39, %c0_40] : memref<16x128xf32, #tpu.memory_space<vmem>>, vector<16x128xf32>
    tpu.vector_store %arg11[%c0_39, %c0_40], %103 {strides = array<i32>} : memref<16x128xf32, #tpu.memory_space<vmem>>, vector<16x128xf32>,
    return
  }
  func.func @transform_0(%arg0: i32) -> i32 {
    %c0_i32 = arith.constant 0 : i32
    %c0_i32_0 = arith.constant 0 : i32
    return %c0_i32 : i32
  }
  func.func @transform_1(%arg0: i32) -> (i32, i32) {
    %c0_i32 = arith.constant 0 : i32
    %c0_i32_0 = arith.constant 0 : i32
    return %arg0, %c0_i32 : i32, i32
  }
  func.func @transform_2(%arg0: i32) -> (i32, i32) {
    %c0_i32 = arith.constant 0 : i32
    %c0_i32_0 = arith.constant 0 : i32
    %c0_i32_1 = arith.constant 0 : i32
    return %c0_i32, %c0_i32_0 : i32, i32
  }
  func.func @transform_3(%arg0: i32) -> (i32, i32) {
    %c0_i32 = arith.constant 0 : i32
    %c0_i32_0 = arith.constant 0 : i32
    %c0_i32_1 = arith.constant 0 : i32
    return %c0_i32, %c0_i32_0 : i32, i32
  }
  func.func @transform_4(%arg0: i32) -> (i32, i32) {
    %c0_i32 = arith.constant 0 : i32
    %c0_i32_0 = arith.constant 0 : i32
    %c0_i32_1 = arith.constant 0 : i32
    return %c0_i32, %c0_i32_0 : i32, i32
  }
  func.func @transform_5(%arg0: i32) -> (i32, i32) {
    %c0_i32 = arith.constant 0 : i32
    %c0_i32_0 = arith.constant 0 : i32
    %c0_i32_1 = arith.constant 0 : i32
    return %c0_i32, %c0_i32_0 : i32, i32
  }
  func.func @transform_6(%arg0: i32) -> (i32, i32) {
    %c0_i32 = arith.constant 0 : i32
    %c0_i32_0 = arith.constant 0 : i32
    %c0_i32_1 = arith.constant 0 : i32
    return %c0_i32, %c0_i32_0 : i32, i32
  }
  func.func @transform_7(%arg0: i32) -> (i32, i32) {
    %c0_i32 = arith.constant 0 : i32
    %c0_i32_0 = arith.constant 0 : i32
    %c0_i32_1 = arith.constant 0 : i32
    return %c0_i32, %c0_i32_0 : i32, i32
  }
  func.func @transform_8(%arg0: i32) -> (i32, i32) {
    %c0_i32 = arith.constant 0 : i32
    %c0_i32_0 = arith.constant 0 : i32
    %c0_i32_1 = arith.constant 0 : i32
    return %c0_i32, %c0_i32_0 : i32, i32
  }
  func.func @transform_9(%arg0: i32) -> (i32, i32) {
    %c0_i32 = arith.constant 0 : i32
    %c0_i32_0 = arith.constant 0 : i32
    %c0_i32_1 = arith.constant 0 : i32
    return %c0_i32, %c0_i32_0 : i32, i32
  }
  func.func @transform_10(%arg0: i32) -> (i32, i32) {
    %c0_i32 = arith.constant 0 : i32
    %c0_i32_0 = arith.constant 0 : i32
    return %arg0, %c0_i32 : i32, i32
  }
}

</mosaic_0001>

<llo_original>
// kernel: critic_forward.1
$region0: #{critic_forward.1}
  #allocation0 [shape = 'u32[]', space=smem, size = 0x4, offset = 0x4, fixed_abs, tag = 'smem constant byte address 0x4 - core index']
  #allocation1 [shape = 'u32[144,128]{1,0:T(1,128)}', space=vmem, size = 0x12000, scoped, tag = 'internal scratch']
  #allocation2 [shape = 's32[1]{0:T(128)S(6)}', space=smem, size = 0x200, scoped, tag = 'scoped memory for critic_forward.1']
  %s0 = inlined_call_operand.<no memory space> [shape: s32[1], index: 0, kind: input, shape index: {}]
  %s1 = inlined_call_operand.vmem [shape: f32[16,512], index: 1, kind: input, shape index: {}]
  %s2 = inlined_call_operand.hbm [shape: bf16[512,512], index: 2, kind: input, shape index: {}]
  %s3 = inlined_call_operand.vmem [shape: f32[1,512], index: 3, kind: input, shape index: {}]
  %s4 = inlined_call_operand.hbm [shape: bf16[512,512], index: 4, kind: input, shape index: {}]
  %s5 = inlined_call_operand.vmem [shape: f32[1,512], index: 5, kind: input, shape index: {}]
  %s6 = inlined_call_operand.hbm [shape: bf16[512,512], index: 6, kind: input, shape index: {}]
  %s7 = inlined_call_operand.vmem [shape: f32[1,512], index: 7, kind: input, shape index: {}]
  %s8 = inlined_call_operand.hbm [shape: bf16[512,128], index: 8, kind: input, shape index: {}]
  %s9 = inlined_call_operand.vmem [shape: f32[1,128], index: 9, kind: input, shape index: {}]
  %s10 = inlined_call_operand.vmem [shape: f32[16,128], index: 10, kind: output, shape index: {}]
  %s11 = sld [smem:[#allocation0]]
  $region66: #{critic_forward.1} parent=0
    _
  %s13 = ssub.s32 1, %s11
  %s14 = scalar_select 0, %s13, %s11
  %15 = sst [smem:[#allocation2]] %s0
  $region1: #{critic_forward.1} parent=0
    #allocation3 [shape = 'u8[524288]{0}', space=vmem, size = 0x80000, scoped, tag = 'input window, operand 2, single buffered']
    #allocation4 [shape = 's32[1]{0}', space=sflag, size = 0x4, scoped, tag = 'scoped memory for critic_forward.1']
    #allocation5 [shape = 'u8[524288]{0}', space=vmem, size = 0x80000, scoped, tag = 'input window, operand 4, single buffered']
    #allocation6 [shape = 's32[1]{0}', space=sflag, size = 0x4, scoped, tag = 'scoped memory for critic_forward.1']
    #allocation7 [shape = 'u8[524288]{0}', space=vmem, size = 0x80000, scoped, tag = 'input window, operand 6, single buffered']
    #allocation8 [shape = 'u8[131072]{0}', space=vmem, size = 0x20000, scoped, tag = 'input window, operand 8, single buffered']
    #allocation9 [shape = 's32[1]{0}', space=sflag, size = 0x4, scoped, tag = 'scoped memory for critic_forward.1']
    %16 = vsyncpa [#allocation4], 0
    %17 = vsyncpa [#allocation6], 0
    %18 = vsyncpa [#allocation9], 0
    // Predicated region
    $region2: #{critic_forward.1} parent=1 // pred_check
      _
    $region3: #{critic_forward.1} parent=1 // pred_check_branch
      %20 = sbr.rel (0) target = $region5
    $region4: #{critic_forward.1} parent=1 // pred_region
      _
    $region5: #{critic_forward.1} parent=1 // pred_fallthru
      _
    // Predicated region
    $region6: #{critic_forward.1} parent=1 // pred_check
      _
    $region7: #{critic_forward.1} parent=1 // pred_check_branch
      %22 = sbr.rel (0) target = $region9
    $region8: #{critic_forward.1} parent=1 // pred_region
      _
    $region9: #{critic_forward.1} parent=1 // pred_fallthru
      _
    // Predicated region
    $region10: #{critic_forward.1} parent=1 // pred_check
      _
    $region11: #{critic_forward.1} parent=1 // pred_check_branch
      %24 = sbr.rel (0) target = $region13
    $region12: #{critic_forward.1} parent=1 // pred_region
      %s26 = ssub.s32 16384, 16384
      %27 = vsyncadd [#allocation4], %s26
      %s28 = sshll.u32 [#allocation3], 4
      %s29 = int_to_ptr.vmem [resolvable:$true] %s28
      %34 = dma.hbm_to_vmem [thread:$0]  %s2, 16384, %s29, [#allocation4], 256, 256, 16
    $region13: #{critic_forward.1} parent=1 // pred_fallthru
      _
    // Predicated region
    $region14: #{critic_forward.1} parent=1 // pred_check
      _
    $region15: #{critic_forward.1} parent=1 // pred_check_branch
      %36 = sbr.rel (0) target = $region17
    $region16: #{critic_forward.1} parent=1 // pred_region
      _
    $region17: #{critic_forward.1} parent=1 // pred_fallthru
      _
    // Predicated region
    $region18: #{critic_forward.1} parent=1 // pred_check
      _
    $region19: #{critic_forward.1} parent=1 // pred_check_branch
      %38 = sbr.rel (0) target = $region21
    $region20: #{critic_forward.1} parent=1 // pred_region
      %s40 = ssub.s32 16384, 16384
      %41 = vsyncadd [#allocation6], %s40
      %s42 = sshll.u32 [#allocation5], 4
      %s43 = int_to_ptr.vmem [resolvable:$true] %s42
      %48 = dma.hbm_to_vmem [thread:$0]  %s4, 16384, %s43, [#allocation6], 256, 256, 16
    $region21: #{critic_forward.1} parent=1 // pred_fallthru
      _
    // Predicated region
    $region22: #{critic_forward.1} parent=1 // pred_check
      _
    $region23: #{critic_forward.1} parent=1 // pred_check_branch
      %50 = sbr.rel (0) target = $region25
    $region24: #{critic_forward.1} parent=1 // pred_region
      _
    $region25: #{critic_forward.1} parent=1 // pred_fallthru
      _
    // Predicated region
    $region26: #{critic_forward.1} parent=1 // pred_check
      _
    $region27: #{critic_forward.1} parent=1 // pred_check_branch
      %52 = sbr.rel (0) target = $region29
    $region28: #{critic_forward.1} parent=1 // pred_region
      %s54 = ssub.s32 16384, 16384
      %55 = vsyncadd [#allocation6], %s54
      %s56 = sshll.u32 [#allocation7], 4
      %s57 = int_to_ptr.vmem [resolvable:$true] %s56
      %62 = dma.hbm_to_vmem [thread:$0]  %s6, 16384, %s57, [#allocation6], 256, 256, 16
    $region29: #{critic_forward.1} parent=1 // pred_fallthru
      _
    // Predicated region
    $region30: #{critic_forward.1} parent=1 // pred_check
      _
    $region31: #{critic_forward.1} parent=1 // pred_check_branch
      %64 = sbr.rel (0) target = $region33
    $region32: #{critic_forward.1} parent=1 // pred_region
      _
    $region33: #{critic_forward.1} parent=1 // pred_fallthru
      _
    // Predicated region
    $region34: #{critic_forward.1} parent=1 // pred_check
      _
    $region35: #{critic_forward.1} parent=1 // pred_check_branch
      %66 = sbr.rel (0) target = $region37
    $region36: #{critic_forward.1} parent=1 // pred_region
      %s68 = ssub.s32 4096, 4096
      %69 = vsyncadd [#allocation9], %s68
      %s70 = sshll.u32 [#allocation8], 4
      %s71 = int_to_ptr.vmem [resolvable:$true] %s70
      %76 = dma.hbm_to_vmem [thread:$0]  %s8, 4096, %s71, [#allocation9], 64, 64, 4
    $region37: #{critic_forward.1} parent=1 // pred_fallthru
      _
    // Predicated region
    $region38: #{critic_forward.1} parent=1 // pred_check
      _
    $region39: #{critic_forward.1} parent=1 // pred_check_branch
      %78 = sbr.rel (0) target = $region41
    $region40: #{critic_forward.1} parent=1 // pred_region
      _
    $region41: #{critic_forward.1} parent=1 // pred_fallthru
      _
    // Predicated region
    $region42: #{critic_forward.1} parent=1 // pred_check
      _
    $region43: #{critic_forward.1} parent=1 // pred_check_branch
      %80 = sbr.rel (0) target = $region45
    $region44: #{critic_forward.1} parent=1 // pred_region
      %81 = dma.done [#allocation4], 16384
    $region45: #{critic_forward.1} parent=1 // pred_fallthru
      _
    // Predicated region
    $region46: #{critic_forward.1} parent=1 // pred_check
      _
    $region47: #{critic_forward.1} parent=1 // pred_check_branch
      %83 = sbr.rel (0) target = $region49
    $region48: #{critic_forward.1} parent=1 // pred_region
      %84 = dma.done [#allocation6], 16384
    $region49: #{critic_forward.1} parent=1 // pred_fallthru
      _
    // Predicated region
    $region50: #{critic_forward.1} parent=1 // pred_check
      _
    $region51: #{critic_forward.1} parent=1 // pred_check_branch
      %86 = sbr.rel (0) target = $region53
    $region52: #{critic_forward.1} parent=1 // pred_region
      %87 = dma.done [#allocation6], 16384
    $region53: #{critic_forward.1} parent=1 // pred_fallthru
      _
    // Predicated region
    $region54: #{critic_forward.1} parent=1 // pred_check
      _
    $region55: #{critic_forward.1} parent=1 // pred_check_branch
      %89 = sbr.rel (0) target = $region57
    $region56: #{critic_forward.1} parent=1 // pred_region
      %90 = dma.done [#allocation9], 4096
    $region57: #{critic_forward.1} parent=1 // pred_fallthru
      _
    %s93 = sld [smem:[#allocation2]]
    %s94 = smul.u32 0, 2654435761
    %s95 = sxor.u32 %s93, %s94
    %v96 = vlaneseq
    %v97 = vshrl.u32 %v96, 7
    %v98 = vadd.s32 %v97, 8
    %v99 = vlaneseq
    %v100 = vand.u32 %v99, 127
    %v101 = vadd.s32 %v100, 128
    %v102 = vadd.s32 %v100, 256
    %v103 = vadd.s32 %v100, 384
    %v104 = vmul.u32 %v97, 2654435769
    %v105 = vmul.u32 %v98, 2654435769
    %v106 = vmul.u32 %v100, 2246822507
    %v107 = vmul.u32 %v101, 2246822507
    %v108 = vmul.u32 %v102, 2246822507
    %v109 = vmul.u32 %v103, 2246822507
    %v110 = vxor.u32 %v104, %v106
    %v111 = vxor.u32 %v104, %v107
    %v112 = vxor.u32 %v104, %v108
    %v113 = vxor.u32 %v104, %v109
    %v114 = vxor.u32 %v105, %v106
    %v115 = vxor.u32 %v105, %v107
    %v116 = vxor.u32 %v105, %v108
    %v117 = vxor.u32 %v105, %v109
    %v118 = vstv %s95
    %v119 = vxor.u32 %v110, %v118
    %v120 = vxor.u32 %v111, %v118
    %v121 = vxor.u32 %v112, %v118
    %v122 = vxor.u32 %v113, %v118
    %v123 = vxor.u32 %v114, %v118
    %v124 = vxor.u32 %v115, %v118
    %v125 = vxor.u32 %v116, %v118
    %v126 = vxor.u32 %v117, %v118
    %v127 = vxor.u32 %v119, 608135816
    %v128 = vxor.u32 %v120, 608135816
    %v129 = vxor.u32 %v121, 608135816
    %v130 = vxor.u32 %v122, 608135816
    %v131 = vxor.u32 %v123, 608135816
    %v132 = vxor.u32 %v124, 608135816
    %v133 = vxor.u32 %v125, 608135816
    %v134 = vxor.u32 %v126, 608135816
    %v135 = vshrl.u32 %v127, 16
    %v136 = vshrl.u32 %v128, 16
    %v137 = vshrl.u32 %v129, 16
    %v138 = vshrl.u32 %v130, 16
    %v139 = vshrl.u32 %v131, 16
    %v140 = vshrl.u32 %v132, 16
    %v141 = vshrl.u32 %v133, 16
    %v142 = vshrl.u32 %v134, 16
    %v143 = vxor.u32 %v127, %v135
    %v144 = vxor.u32 %v128, %v136
    %v145 = vxor.u32 %v129, %v137
    %v146 = vxor.u32 %v130, %v138
    %v147 = vxor.u32 %v131, %v139
    %v148 = vxor.u32 %v132, %v140
    %v149 = vxor.u32 %v133, %v141
    %v150 = vxor.u32 %v134, %v142
    %v151 = vmul.u32 %v143, 2146121005
    %v152 = vmul.u32 %v144, 2146121005
    %v153 = vmul.u32 %v145, 2146121005
    %v154 = vmul.u32 %v146, 2146121005
    %v155 = vmul.u32 %v147, 2146121005
    %v156 = vmul.u32 %v148, 2146121005
    %v157 = vmul.u32 %v149, 2146121005
    %v158 = vmul.u32 %v150, 2146121005
    %v159 = vshrl.u32 %v151, 15
    %v160 = vshrl.u32 %v152, 15
    %v161 = vshrl.u32 %v153, 15
    %v162 = vshrl.u32 %v154, 15
    %v163 = vshrl.u32 %v155, 15
    %v164 = vshrl.u32 %v156, 15
    %v165 = vshrl.u32 %v157, 15
    %v166 = vshrl.u32 %v158, 15
    %v167 = vxor.u32 %v151, %v159
    %v168 = vxor.u32 %v152, %v160
    %v169 = vxor.u32 %v153, %v161
    %v170 = vxor.u32 %v154, %v162
    %v171 = vxor.u32 %v155, %v163
    %v172 = vxor.u32 %v156, %v164
    %v173 = vxor.u32 %v157, %v165
    %v174 = vxor.u32 %v158, %v166
    %v175 = vmul.u32 %v167, 2221713035
    %v176 = vmul.u32 %v168, 2221713035
    %v177 = vmul.u32 %v169, 2221713035
    %v178 = vmul.u32 %v170, 2221713035
    %v179 = vmul.u32 %v171, 2221713035
    %v180 = vmul.u32 %v172, 2221713035
    %v181 = vmul.u32 %v173, 2221713035
    %v182 = vmul.u32 %v174, 2221713035
    %v183 = vshrl.u32 %v175, 16
    %v184 = vshrl.u32 %v176, 16
    %v185 = vshrl.u32 %v177, 16
    %v186 = vshrl.u32 %v178, 16
    %v187 = vshrl.u32 %v179, 16
    %v188 = vshrl.u32 %v180, 16
    %v189 = vshrl.u32 %v181, 16
    %v190 = vshrl.u32 %v182, 16
    %v191 = vxor.u32 %v175, %v183
    %v192 = vxor.u32 %v176, %v184
    %v193 = vxor.u32 %v177, %v185
    %v194 = vxor.u32 %v178, %v186
    %v195 = vxor.u32 %v179, %v187
    %v196 = vxor.u32 %v180, %v188
    %v197 = vxor.u32 %v181, %v189
    %v198 = vxor.u32 %v182, %v190
    %v199 = vxor.u32 %v119, 320440878
    %v200 = vxor.u32 %v120, 320440878
    %v201 = vxor.u32 %v121, 320440878
    %v202 = vxor.u32 %v122, 320440878
    %v203 = vxor.u32 %v123, 320440878
    %v204 = vxor.u32 %v124, 320440878
    %v205 = vxor.u32 %v125, 320440878
    %v206 = vxor.u32 %v126, 320440878
    %v207 = vshrl.u32 %v199, 16
    %v208 = vshrl.u32 %v200, 16
    %v209 = vshrl.u32 %v201, 16
    %v210 = vshrl.u32 %v202, 16
    %v211 = vshrl.u32 %v203, 16
    %v212 = vshrl.u32 %v204, 16
    %v213 = vshrl.u32 %v205, 16
    %v214 = vshrl.u32 %v206, 16
    %v215 = vxor.u32 %v199, %v207
    %v216 = vxor.u32 %v200, %v208
    %v217 = vxor.u32 %v201, %v209
    %v218 = vxor.u32 %v202, %v210
    %v219 = vxor.u32 %v203, %v211
    %v220 = vxor.u32 %v204, %v212
    %v221 = vxor.u32 %v205, %v213
    %v222 = vxor.u32 %v206, %v214
    %v223 = vmul.u32 %v215, 2146121005
    %v224 = vmul.u32 %v216, 2146121005
    %v225 = vmul.u32 %v217, 2146121005
    %v226 = vmul.u32 %v218, 2146121005
    %v227 = vmul.u32 %v219, 2146121005
    %v228 = vmul.u32 %v220, 2146121005
    %v229 = vmul.u32 %v221, 2146121005
    %v230 = vmul.u32 %v222, 2146121005
    %v231 = vshrl.u32 %v223, 15
    %v232 = vshrl.u32 %v224, 15
    %v233 = vshrl.u32 %v225, 15
    %v234 = vshrl.u32 %v226, 15
    %v235 = vshrl.u32 %v227, 15
    %v236 = vshrl.u32 %v228, 15
    %v237 = vshrl.u32 %v229, 15
    %v238 = vshrl.u32 %v230, 15
    %v239 = vxor.u32 %v223, %v231
    %v240 = vxor.u32 %v224, %v232
    %v241 = vxor.u32 %v225, %v233
    %v242 = vxor.u32 %v226, %v234
    %v243 = vxor.u32 %v227, %v235
    %v244 = vxor.u32 %v228, %v236
    %v245 = vxor.u32 %v229, %v237
    %v246 = vxor.u32 %v230, %v238
    %v247 = vmul.u32 %v239, 2221713035
    %v248 = vmul.u32 %v240, 2221713035
    %v249 = vmul.u32 %v241, 2221713035
    %v250 = vmul.u32 %v242, 2221713035
    %v251 = vmul.u32 %v243, 2221713035
    %v252 = vmul.u32 %v244, 2221713035
    %v253 = vmul.u32 %v245, 2221713035
    %v254 = vmul.u32 %v246, 2221713035
    %v255 = vshrl.u32 %v247, 16
    %v256 = vshrl.u32 %v248, 16
    %v257 = vshrl.u32 %v249, 16
    %v258 = vshrl.u32 %v250, 16
    %v259 = vshrl.u32 %v251, 16
    %v260 = vshrl.u32 %v252, 16
    %v261 = vshrl.u32 %v253, 16
    %v262 = vshrl.u32 %v254, 16
    %v263 = vxor.u32 %v247, %v255
    %v264 = vxor.u32 %v248, %v256
    %v265 = vxor.u32 %v249, %v257
    %v266 = vxor.u32 %v250, %v258
    %v267 = vxor.u32 %v251, %v259
    %v268 = vxor.u32 %v252, %v260
    %v269 = vxor.u32 %v253, %v261
    %v270 = vxor.u32 %v254, %v262
    %v271 = vld [vmem:[%s1] sm:$0xff]
    %v272 = vld [vmem:[%s1 + $0x8] sm:$0xff]
    %v273 = vld [vmem:[%s1 + $0x10] sm:$0xff]
    %v274 = vld [vmem:[%s1 + $0x18] sm:$0xff]
    %v275 = vld [vmem:[%s1 + $0x20] sm:$0xff]
    %v276 = vld [vmem:[%s1 + $0x28] sm:$0xff]
    %v277 = vld [vmem:[%s1 + $0x30] sm:$0xff]
    %v278 = vld [vmem:[%s1 + $0x38] sm:$0xff]
    %v279 = vpack.c.bf16 %v275, %v271
    %v280 = vpack.c.bf16 %v276, %v272
    %v281 = vpack.c.bf16 %v277, %v273
    %v282 = vpack.c.bf16 %v278, %v274
    %v283 = vand.u32 %v191, 65535
    %v284 = vand.u32 %v192, 65535
    %v285 = vand.u32 %v193, 65535
    %v286 = vand.u32 %v194, 65535
    %v287 = vand.u32 %v195, 65535
    %v288 = vand.u32 %v196, 65535
    %v289 = vand.u32 %v197, 65535
    %v290 = vand.u32 %v198, 65535
    %vm291 = vcmp.ge.u32.totalorder %v283, 6554
    %vm292 = vcmp.ge.u32.totalorder %v284, 6554
    %vm293 = vcmp.ge.u32.totalorder %v285, 6554
    %vm294 = vcmp.ge.u32.totalorder %v286, 6554
    %vm295 = vcmp.ge.u32.totalorder %v287, 6554
    %vm296 = vcmp.ge.u32.totalorder %v288, 6554
    %vm297 = vcmp.ge.u32.totalorder %v289, 6554
    %vm298 = vcmp.ge.u32.totalorder %v290, 6554
    %vm299 = vmpackc.low %vm295, %vm291
    %vm300 = vmpackc.low %vm296, %vm292
    %vm301 = vmpackc.low %vm297, %vm293
    %vm302 = vmpackc.low %vm298, %vm294
    %v303 = vsel %vm299, %v279, 0
    %v304 = vsel %vm300, %v280, 0
    %v305 = vsel %vm301, %v281, 0
    %v306 = vsel %vm302, %v282, 0
    %v307 = vld [vmem:[#allocation3] sm:$0xff]
    %v308 = vld [vmem:[#allocation3 + $0x8] sm:$0xff]
    %v309 = vld [vmem:[#allocation3 + $0x10] sm:$0xff]
    %v310 = vld [vmem:[#allocation3 + $0x18] sm:$0xff]
    %v311 = vld [vmem:[#allocation3 + $0x20] sm:$0xff]
    %v312 = vld [vmem:[#allocation3 + $0x28] sm:$0xff]
    %v313 = vld [vmem:[#allocation3 + $0x30] sm:$0xff]
    %v314 = vld [vmem:[#allocation3 + $0x38] sm:$0xff]
    %v315 = vld [vmem:[#allocation3 + $0x40] sm:$0xff]
    %v316 = vld [vmem:[#allocation3 + $0x48] sm:$0xff]
    %v317 = vld [vmem:[#allocation3 + $0x50] sm:$0xff]
    %v318 = vld [vmem:[#allocation3 + $0x58] sm:$0xff]
    %v319 = vld [vmem:[#allocation3 + $0x60] sm:$0xff]
    %v320 = vld [vmem:[#allocation3 + $0x68] sm:$0xff]
    %v321 = vld [vmem:[#allocation3 + $0x70] sm:$0xff]
    %v322 = vld [vmem:[#allocation3 + $0x78] sm:$0xff]
    %v323 = vld [vmem:[#allocation3 + $0x80] sm:$0xff]
    %v324 = vld [vmem:[#allocation3 + $0x88] sm:$0xff]
    %v325 = vld [vmem:[#allocation3 + $0x90] sm:$0xff]
    %v326 = vld [vmem:[#allocation3 + $0x98] sm:$0xff]
    %v327 = vld [vmem:[#allocation3 + $0xa0] sm:$0xff]
    %v328 = vld [vmem:[#allocation3 + $0xa8] sm:$0xff]
    %v329 = vld [vmem:[#allocation3 + $0xb0] sm:$0xff]
    %v330 = vld [vmem:[#allocation3 + $0xb8] sm:$0xff]
    %v331 = vld [vmem:[#allocation3 + $0xc0] sm:$0xff]
    %v332 = vld [vmem:[#allocation3 + $0xc8] sm:$0xff]
    %v333 = vld [vmem:[#allocation3 + $0xd0] sm:$0xff]
    %v334 = vld [vmem:[#allocation3 + $0xd8] sm:$0xff]
    %v335 = vld [vmem:[#allocation3 + $0xe0] sm:$0xff]
    %v336 = vld [vmem:[#allocation3 + $0xe8] sm:$0xff]
    %v337 = vld [vmem:[#allocation3 + $0xf0] sm:$0xff]
    %v338 = vld [vmem:[#allocation3 + $0xf8] sm:$0xff]
    %v339 = vld [vmem:[#allocation3 + $0x100] sm:$0xff]
    %v340 = vld [vmem:[#allocation3 + $0x108] sm:$0xff]
    %v341 = vld [vmem:[#allocation3 + $0x110] sm:$0xff]
    %v342 = vld [vmem:[#allocation3 + $0x118] sm:$0xff]
    %v343 = vld [vmem:[#allocation3 + $0x120] sm:$0xff]
    %v344 = vld [vmem:[#allocation3 + $0x128] sm:$0xff]
    %v345 = vld [vmem:[#allocation3 + $0x130] sm:$0xff]
    %v346 = vld [vmem:[#allocation3 + $0x138] sm:$0xff]
    %v347 = vld [vmem:[#allocation3 + $0x140] sm:$0xff]
    %v348 = vld [vmem:[#allocation3 + $0x148] sm:$0xff]
    %v349 = vld [vmem:[#allocation3 + $0x150] sm:$0xff]
    %v350 = vld [vmem:[#allocation3 + $0x158] sm:$0xff]
    %v351 = vld [vmem:[#allocation3 + $0x160] sm:$0xff]
    %v352 = vld [vmem:[#allocation3 + $0x168] sm:$0xff]
    %v353 = vld [vmem:[#allocation3 + $0x170] sm:$0xff]
    %v354 = vld [vmem:[#allocation3 + $0x178] sm:$0xff]
    %v355 = vld [vmem:[#allocation3 + $0x180] sm:$0xff]
    %v356 = vld [vmem:[#allocation3 + $0x188] sm:$0xff]
    %v357 = vld [vmem:[#allocation3 + $0x190] sm:$0xff]
    %v358 = vld [vmem:[#allocation3 + $0x198] sm:$0xff]
    %v359 = vld [vmem:[#allocation3 + $0x1a0] sm:$0xff]
    %v360 = vld [vmem:[#allocation3 + $0x1a8] sm:$0xff]
    %v361 = vld [vmem:[#allocation3 + $0x1b0] sm:$0xff]
    %v362 = vld [vmem:[#allocation3 + $0x1b8] sm:$0xff]
    %v363 = vld [vmem:[#allocation3 + $0x1c0] sm:$0xff]
    %v364 = vld [vmem:[#allocation3 + $0x1c8] sm:$0xff]
    %v365 = vld [vmem:[#allocation3 + $0x1d0] sm:$0xff]
    %v366 = vld [vmem:[#allocation3 + $0x1d8] sm:$0xff]
    %v367 = vld [vmem:[#allocation3 + $0x1e0] sm:$0xff]
    %v368 = vld [vmem:[#allocation3 + $0x1e8] sm:$0xff]
    %v369 = vld [vmem:[#allocation3 + $0x1f0] sm:$0xff]
    %v370 = vld [vmem:[#allocation3 + $0x1f8] sm:$0xff]
    %v371 = vld [vmem:[#allocation3 + $0x200] sm:$0xff]
    %v372 = vld [vmem:[#allocation3 + $0x208] sm:$0xff]
    %v373 = vld [vmem:[#allocation3 + $0x210] sm:$0xff]
    %v374 = vld [vmem:[#allocation3 + $0x218] sm:$0xff]
    %v375 = vld [vmem:[#allocation3 + $0x220] sm:$0xff]
    %v376 = vld [vmem:[#allocation3 + $0x228] sm:$0xff]
    %v377 = vld [vmem:[#allocation3 + $0x230] sm:$0xff]
    %v378 = vld [vmem:[#allocation3 + $0x238] sm:$0xff]
    %v379 = vld [vmem:[#allocation3 + $0x240] sm:$0xff]
    %v380 = vld [vmem:[#allocation3 + $0x248] sm:$0xff]
    %v381 = vld [vmem:[#allocation3 + $0x250] sm:$0xff]
    %v382 = vld [vmem:[#allocation3 + $0x258] sm:$0xff]
    %v383 = vld [vmem:[#allocation3 + $0x260] sm:$0xff]
    %v384 = vld [vmem:[#allocation3 + $0x268] sm:$0xff]
    %v385 = vld [vmem:[#allocation3 + $0x270] sm:$0xff]
    %v386 = vld [vmem:[#allocation3 + $0x278] sm:$0xff]
    %v387 = vld [vmem:[#allocation3 + $0x280] sm:$0xff]
    %v388 = vld [vmem:[#allocation3 + $0x288] sm:$0xff]
    %v389 = vld [vmem:[#allocation3 + $0x290] sm:$0xff]
    %v390 = vld [vmem:[#allocation3 + $0x298] sm:$0xff]
    %v391 = vld [vmem:[#allocation3 + $0x2a0] sm:$0xff]
    %v392 = vld [vmem:[#allocation3 + $0x2a8] sm:$0xff]
    %v393 = vld [vmem:[#allocation3 + $0x2b0] sm:$0xff]
    %v394 = vld [vmem:[#allocation3 + $0x2b8] sm:$0xff]
    %v395 = vld [vmem:[#allocation3 + $0x2c0] sm:$0xff]
    %v396 = vld [vmem:[#allocation3 + $0x2c8] sm:$0xff]
    %v397 = vld [vmem:[#allocation3 + $0x2d0] sm:$0xff]
    %v398 = vld [vmem:[#allocation3 + $0x2d8] sm:$0xff]
    %v399 = vld [vmem:[#allocation3 + $0x2e0] sm:$0xff]
    %v400 = vld [vmem:[#allocation3 + $0x2e8] sm:$0xff]
    %v401 = vld [vmem:[#allocation3 + $0x2f0] sm:$0xff]
    %v402 = vld [vmem:[#allocation3 + $0x2f8] sm:$0xff]
    %v403 = vld [vmem:[#allocation3 + $0x300] sm:$0xff]
    %v404 = vld [vmem:[#allocation3 + $0x308] sm:$0xff]
    %v405 = vld [vmem:[#allocation3 + $0x310] sm:$0xff]
    %v406 = vld [vmem:[#allocation3 + $0x318] sm:$0xff]
    %v407 = vld [vmem:[#allocation3 + $0x320] sm:$0xff]
    %v408 = vld [vmem:[#allocation3 + $0x328] sm:$0xff]
    %v409 = vld [vmem:[#allocation3 + $0x330] sm:$0xff]
    %v410 = vld [vmem:[#allocation3 + $0x338] sm:$0xff]
    %v411 = vld [vmem:[#allocation3 + $0x340] sm:$0xff]
    %v412 = vld [vmem:[#allocation3 + $0x348] sm:$0xff]
    %v413 = vld [vmem:[#allocation3 + $0x350] sm:$0xff]
    %v414 = vld [vmem:[#allocation3 + $0x358] sm:$0xff]
    %v415 = vld [vmem:[#allocation3 + $0x360] sm:$0xff]
    %v416 = vld [vmem:[#allocation3 + $0x368] sm:$0xff]
    %v417 = vld [vmem:[#allocation3 + $0x370] sm:$0xff]
    %v418 = vld [vmem:[#allocation3 + $0x378] sm:$0xff]
    %v419 = vld [vmem:[#allocation3 + $0x380] sm:$0xff]
    %v420 = vld [vmem:[#allocation3 + $0x388] sm:$0xff]
    %v421 = vld [vmem:[#allocation3 + $0x390] sm:$0xff]
    %v422 = vld [vmem:[#allocation3 + $0x398] sm:$0xff]
    %v423 = vld [vmem:[#allocation3 + $0x3a0] sm:$0xff]
    %v424 = vld [vmem:[#allocation3 + $0x3a8] sm:$0xff]
    %v425 = vld [vmem:[#allocation3 + $0x3b0] sm:$0xff]
    %v426 = vld [vmem:[#allocation3 + $0x3b8] sm:$0xff]
    %v427 = vld [vmem:[#allocation3 + $0x3c0] sm:$0xff]
    %v428 = vld [vmem:[#allocation3 + $0x3c8] sm:$0xff]
    %v429 = vld [vmem:[#allocation3 + $0x3d0] sm:$0xff]
    %v430 = vld [vmem:[#allocation3 + $0x3d8] sm:$0xff]
    %v431 = vld [vmem:[#allocation3 + $0x3e0] sm:$0xff]
    %v432 = vld [vmem:[#allocation3 + $0x3e8] sm:$0xff]
    %v433 = vld [vmem:[#allocation3 + $0x3f0] sm:$0xff]
    %v434 = vld [vmem:[#allocation3 + $0x3f8] sm:$0xff]
    %v435 = vld [vmem:[%s3] sm:$0xf]
    %v437 = vlaneseq
    %v438 = vshrl.u32 %v437, 7
    %v439 = vsub.s32 0, %v438
    %v440 = vrot.slane %v435, %v439
    %v441 = vlaneseq
    %v442 = vshrl.u32 %v441, 7
    %v443 = vsub.s32 1, %v442
    %v444 = vrot.slane %v435, %v443
    %v445 = vlaneseq
    %v446 = vshrl.u32 %v445, 7
    %v447 = vsub.s32 2, %v446
    %v448 = vrot.slane %v435, %v447
    %v449 = vlaneseq
    %v450 = vshrl.u32 %v449, 7
    %v451 = vsub.s32 3, %v450
    %v452 = vrot.slane %v435, %v451
    %v585 = vunpack.c.l.b16 %v307
    %v586 = vunpack.c.h.b16 %v307
    %v587 = vunpack.c.l.b16 %v308
    %v588 = vunpack.c.h.b16 %v308
    %v589 = vunpack.c.l.b16 %v309
    %v590 = vunpack.c.h.b16 %v309
    %v591 = vunpack.c.l.b16 %v310
    %v592 = vunpack.c.h.b16 %v310
    %v593 = vunpack.c.l.b16 %v311
    %v594 = vunpack.c.h.b16 %v311
    %v595 = vunpack.c.l.b16 %v312
    %v596 = vunpack.c.h.b16 %v312
    %v597 = vunpack.c.l.b16 %v313
    %v598 = vunpack.c.h.b16 %v313
    %v599 = vunpack.c.l.b16 %v314
    %v600 = vunpack.c.h.b16 %v314
    %v601 = vunpack.c.l.b16 %v315
    %v602 = vunpack.c.h.b16 %v315
    %v603 = vunpack.c.l.b16 %v316
    %v604 = vunpack.c.h.b16 %v316
    %v605 = vunpack.c.l.b16 %v317
    %v606 = vunpack.c.h.b16 %v317
    %v607 = vunpack.c.l.b16 %v318
    %v608 = vunpack.c.h.b16 %v318
    %v609 = vunpack.c.l.b16 %v319
    %v610 = vunpack.c.h.b16 %v319
    %v611 = vunpack.c.l.b16 %v320
    %v612 = vunpack.c.h.b16 %v320
    %v613 = vunpack.c.l.b16 %v321
    %v614 = vunpack.c.h.b16 %v321
    %v615 = vunpack.c.l.b16 %v322
    %v616 = vunpack.c.h.b16 %v322
    %v617 = vunpack.c.l.b16 %v323
    %v618 = vunpack.c.h.b16 %v323
    %v619 = vunpack.c.l.b16 %v324
    %v620 = vunpack.c.h.b16 %v324
    %v621 = vunpack.c.l.b16 %v325
    %v622 = vunpack.c.h.b16 %v325
    %v623 = vunpack.c.l.b16 %v326
    %v624 = vunpack.c.h.b16 %v326
    %v625 = vunpack.c.l.b16 %v327
    %v626 = vunpack.c.h.b16 %v327
    %v627 = vunpack.c.l.b16 %v328
    %v628 = vunpack.c.h.b16 %v328
    %v629 = vunpack.c.l.b16 %v329
    %v630 = vunpack.c.h.b16 %v329
    %v631 = vunpack.c.l.b16 %v330
    %v632 = vunpack.c.h.b16 %v330
    %v633 = vunpack.c.l.b16 %v331
    %v634 = vunpack.c.h.b16 %v331
    %v635 = vunpack.c.l.b16 %v332
    %v636 = vunpack.c.h.b16 %v332
    %v637 = vunpack.c.l.b16 %v333
    %v638 = vunpack.c.h.b16 %v333
    %v639 = vunpack.c.l.b16 %v334
    %v640 = vunpack.c.h.b16 %v334
    %v641 = vunpack.c.l.b16 %v335
    %v642 = vunpack.c.h.b16 %v335
    %v643 = vunpack.c.l.b16 %v336
    %v644 = vunpack.c.h.b16 %v336
    %v645 = vunpack.c.l.b16 %v337
    %v646 = vunpack.c.h.b16 %v337
    %v647 = vunpack.c.l.b16 %v338
    %v648 = vunpack.c.h.b16 %v338
    %v649 = vunpack.c.l.b16 %v339
    %v650 = vunpack.c.h.b16 %v339
    %v651 = vunpack.c.l.b16 %v340
    %v652 = vunpack.c.h.b16 %v340
    %v653 = vunpack.c.l.b16 %v341
    %v654 = vunpack.c.h.b16 %v341
    %v655 = vunpack.c.l.b16 %v342
    %v656 = vunpack.c.h.b16 %v342
    %v657 = vunpack.c.l.b16 %v343
    %v658 = vunpack.c.h.b16 %v343
    %v659 = vunpack.c.l.b16 %v344
    %v660 = vunpack.c.h.b16 %v344
    %v661 = vunpack.c.l.b16 %v345
    %v662 = vunpack.c.h.b16 %v345
    %v663 = vunpack.c.l.b16 %v346
    %v664 = vunpack.c.h.b16 %v346
    %v665 = vunpack.c.l.b16 %v347
    %v666 = vunpack.c.h.b16 %v347
    %v667 = vunpack.c.l.b16 %v348
    %v668 = vunpack.c.h.b16 %v348
    %v669 = vunpack.c.l.b16 %v349
    %v670 = vunpack.c.h.b16 %v349
    %v671 = vunpack.c.l.b16 %v350
    %v672 = vunpack.c.h.b16 %v350
    %v673 = vunpack.c.l.b16 %v351
    %v674 = vunpack.c.h.b16 %v351
    %v675 = vunpack.c.l.b16 %v352
    %v676 = vunpack.c.h.b16 %v352
    %v677 = vunpack.c.l.b16 %v353
    %v678 = vunpack.c.h.b16 %v353
    %v679 = vunpack.c.l.b16 %v354
    %v680 = vunpack.c.h.b16 %v354
    %v681 = vunpack.c.l.b16 %v355
    %v682 = vunpack.c.h.b16 %v355
    %v683 = vunpack.c.l.b16 %v356
    %v684 = vunpack.c.h.b16 %v356
    %v685 = vunpack.c.l.b16 %v357
    %v686 = vunpack.c.h.b16 %v357
    %v687 = vunpack.c.l.b16 %v358
    %v688 = vunpack.c.h.b16 %v358
    %v689 = vunpack.c.l.b16 %v359
    %v690 = vunpack.c.h.b16 %v359
    %v691 = vunpack.c.l.b16 %v360
    %v692 = vunpack.c.h.b16 %v360
    %v693 = vunpack.c.l.b16 %v361
    %v694 = vunpack.c.h.b16 %v361
    %v695 = vunpack.c.l.b16 %v362
    %v696 = vunpack.c.h.b16 %v362
    %v697 = vunpack.c.l.b16 %v363
    %v698 = vunpack.c.h.b16 %v363
    %v699 = vunpack.c.l.b16 %v364
    %v700 = vunpack.c.h.b16 %v364
    %v701 = vunpack.c.l.b16 %v365
    %v702 = vunpack.c.h.b16 %v365
    %v703 = vunpack.c.l.b16 %v366
    %v704 = vunpack.c.h.b16 %v366
    %v705 = vunpack.c.l.b16 %v367
    %v706 = vunpack.c.h.b16 %v367
    %v707 = vunpack.c.l.b16 %v368
    %v708 = vunpack.c.h.b16 %v368
    %v709 = vunpack.c.l.b16 %v369
    %v710 = vunpack.c.h.b16 %v369
    %v711 = vunpack.c.l.b16 %v370
    %v712 = vunpack.c.h.b16 %v370
    %v713 = vunpack.c.l.b16 %v371
    %v714 = vunpack.c.h.b16 %v371
    %v715 = vunpack.c.l.b16 %v372
    %v716 = vunpack.c.h.b16 %v372
    %v717 = vunpack.c.l.b16 %v373
    %v718 = vunpack.c.h.b16 %v373
    %v719 = vunpack.c.l.b16 %v374
    %v720 = vunpack.c.h.b16 %v374
    %v721 = vunpack.c.l.b16 %v375
    %v722 = vunpack.c.h.b16 %v375
    %v723 = vunpack.c.l.b16 %v376
    %v724 = vunpack.c.h.b16 %v376
    %v725 = vunpack.c.l.b16 %v377
    %v726 = vunpack.c.h.b16 %v377
    %v727 = vunpack.c.l.b16 %v378
    %v728 = vunpack.c.h.b16 %v378
    %v729 = vunpack.c.l.b16 %v379
    %v730 = vunpack.c.h.b16 %v379
    %v731 = vunpack.c.l.b16 %v380
    %v732 = vunpack.c.h.b16 %v380
    %v733 = vunpack.c.l.b16 %v381
    %v734 = vunpack.c.h.b16 %v381
    %v735 = vunpack.c.l.b16 %v382
    %v736 = vunpack.c.h.b16 %v382
    %v737 = vunpack.c.l.b16 %v383
    %v738 = vunpack.c.h.b16 %v383
    %v739 = vunpack.c.l.b16 %v384
    %v740 = vunpack.c.h.b16 %v384
    %v741 = vunpack.c.l.b16 %v385
    %v742 = vunpack.c.h.b16 %v385
    %v743 = vunpack.c.l.b16 %v386
    %v744 = vunpack.c.h.b16 %v386
    %v745 = vunpack.c.l.b16 %v387
    %v746 = vunpack.c.h.b16 %v387
    %v747 = vunpack.c.l.b16 %v388
    %v748 = vunpack.c.h.b16 %v388
    %v749 = vunpack.c.l.b16 %v389
    %v750 = vunpack.c.h.b16 %v389
    %v751 = vunpack.c.l.b16 %v390
    %v752 = vunpack.c.h.b16 %v390
    %v753 = vunpack.c.l.b16 %v391
    %v754 = vunpack.c.h.b16 %v391
    %v755 = vunpack.c.l.b16 %v392
    %v756 = vunpack.c.h.b16 %v392
    %v757 = vunpack.c.l.b16 %v393
    %v758 = vunpack.c.h.b16 %v393
    %v759 = vunpack.c.l.b16 %v394
    %v760 = vunpack.c.h.b16 %v394
    %v761 = vunpack.c.l.b16 %v395
    %v762 = vunpack.c.h.b16 %v395
    %v763 = vunpack.c.l.b16 %v396
    %v764 = vunpack.c.h.b16 %v396
    %v765 = vunpack.c.l.b16 %v397
    %v766 = vunpack.c.h.b16 %v397
    %v767 = vunpack.c.l.b16 %v398
    %v768 = vunpack.c.h.b16 %v398
    %v769 = vunpack.c.l.b16 %v399
    %v770 = vunpack.c.h.b16 %v399
    %v771 = vunpack.c.l.b16 %v400
    %v772 = vunpack.c.h.b16 %v400
    %v773 = vunpack.c.l.b16 %v401
    %v774 = vunpack.c.h.b16 %v401
    %v775 = vunpack.c.l.b16 %v402
    %v776 = vunpack.c.h.b16 %v402
    %v777 = vunpack.c.l.b16 %v403
    %v778 = vunpack.c.h.b16 %v403
    %v779 = vunpack.c.l.b16 %v404
    %v780 = vunpack.c.h.b16 %v404
    %v781 = vunpack.c.l.b16 %v405
    %v782 = vunpack.c.h.b16 %v405
    %v783 = vunpack.c.l.b16 %v406
    %v784 = vunpack.c.h.b16 %v406
    %v785 = vunpack.c.l.b16 %v407
    %v786 = vunpack.c.h.b16 %v407
    %v787 = vunpack.c.l.b16 %v408
    %v788 = vunpack.c.h.b16 %v408
    %v789 = vunpack.c.l.b16 %v409
    %v790 = vunpack.c.h.b16 %v409
    %v791 = vunpack.c.l.b16 %v410
    %v792 = vunpack.c.h.b16 %v410
    %v793 = vunpack.c.l.b16 %v411
    %v794 = vunpack.c.h.b16 %v411
    %v795 = vunpack.c.l.b16 %v412
    %v796 = vunpack.c.h.b16 %v412
    %v797 = vunpack.c.l.b16 %v413
    %v798 = vunpack.c.h.b16 %v413
    %v799 = vunpack.c.l.b16 %v414
    %v800 = vunpack.c.h.b16 %v414
    %v801 = vunpack.c.l.b16 %v415
    %v802 = vunpack.c.h.b16 %v415
    %v803 = vunpack.c.l.b16 %v416
    %v804 = vunpack.c.h.b16 %v416
    %v805 = vunpack.c.l.b16 %v417
    %v806 = vunpack.c.h.b16 %v417
    %v807 = vunpack.c.l.b16 %v418
    %v808 = vunpack.c.h.b16 %v418
    %v809 = vunpack.c.l.b16 %v419
    %v810 = vunpack.c.h.b16 %v419
    %v811 = vunpack.c.l.b16 %v420
    %v812 = vunpack.c.h.b16 %v420
    %v813 = vunpack.c.l.b16 %v421
    %v814 = vunpack.c.h.b16 %v421
    %v815 = vunpack.c.l.b16 %v422
    %v816 = vunpack.c.h.b16 %v422
    %v817 = vunpack.c.l.b16 %v423
    %v818 = vunpack.c.h.b16 %v423
    %v819 = vunpack.c.l.b16 %v424
    %v820 = vunpack.c.h.b16 %v424
    %v821 = vunpack.c.l.b16 %v425
    %v822 = vunpack.c.h.b16 %v425
    %v823 = vunpack.c.l.b16 %v426
    %v824 = vunpack.c.h.b16 %v426
    %v825 = vunpack.c.l.b16 %v427
    %v826 = vunpack.c.h.b16 %v427
    %v827 = vunpack.c.l.b16 %v428
    %v828 = vunpack.c.h.b16 %v428
    %v829 = vunpack.c.l.b16 %v429
    %v830 = vunpack.c.h.b16 %v429
    %v831 = vunpack.c.l.b16 %v430
    %v832 = vunpack.c.h.b16 %v430
    %v833 = vunpack.c.l.b16 %v431
    %v834 = vunpack.c.h.b16 %v431
    %v835 = vunpack.c.l.b16 %v432
    %v836 = vunpack.c.h.b16 %v432
    %v837 = vunpack.c.l.b16 %v433
    %v838 = vunpack.c.h.b16 %v433
    %v839 = vunpack.c.l.b16 %v434
    %v840 = vunpack.c.h.b16 %v434
    %v841 = vpack.c.b16 %v589, %v585
    %v842 = vpack.c.b16 %v590, %v586
    %v843 = vpack.c.b16 %v591, %v587
    %v844 = vpack.c.b16 %v592, %v588
    %v845 = vpack.c.b16 %v597, %v593
    %v846 = vpack.c.b16 %v598, %v594
    %v847 = vpack.c.b16 %v599, %v595
    %v848 = vpack.c.b16 %v600, %v596
    %v849 = vpack.c.b16 %v605, %v601
    %v850 = vpack.c.b16 %v606, %v602
    %v851 = vpack.c.b16 %v607, %v603
    %v852 = vpack.c.b16 %v608, %v604
    %v853 = vpack.c.b16 %v613, %v609
    %v854 = vpack.c.b16 %v614, %v610
    %v855 = vpack.c.b16 %v615, %v611
    %v856 = vpack.c.b16 %v616, %v612
    %v857 = vpack.c.b16 %v621, %v617
    %v858 = vpack.c.b16 %v622, %v618
    %v859 = vpack.c.b16 %v623, %v619
    %v860 = vpack.c.b16 %v624, %v620
    %v861 = vpack.c.b16 %v629, %v625
    %v862 = vpack.c.b16 %v630, %v626
    %v863 = vpack.c.b16 %v631, %v627
    %v864 = vpack.c.b16 %v632, %v628
    %v865 = vpack.c.b16 %v637, %v633
    %v866 = vpack.c.b16 %v638, %v634
    %v867 = vpack.c.b16 %v639, %v635
    %v868 = vpack.c.b16 %v640, %v636
    %v869 = vpack.c.b16 %v645, %v641
    %v870 = vpack.c.b16 %v646, %v642
    %v871 = vpack.c.b16 %v647, %v643
    %v872 = vpack.c.b16 %v648, %v644
    %v873 = vpack.c.b16 %v653, %v649
    %v874 = vpack.c.b16 %v654, %v650
    %v875 = vpack.c.b16 %v655, %v651
    %v876 = vpack.c.b16 %v656, %v652
    %v877 = vpack.c.b16 %v661, %v657
    %v878 = vpack.c.b16 %v662, %v658
    %v879 = vpack.c.b16 %v663, %v659
    %v880 = vpack.c.b16 %v664, %v660
    %v881 = vpack.c.b16 %v669, %v665
    %v882 = vpack.c.b16 %v670, %v666
    %v883 = vpack.c.b16 %v671, %v667
    %v884 = vpack.c.b16 %v672, %v668
    %v885 = vpack.c.b16 %v677, %v673
    %v886 = vpack.c.b16 %v678, %v674
    %v887 = vpack.c.b16 %v679, %v675
    %v888 = vpack.c.b16 %v680, %v676
    %v889 = vpack.c.b16 %v685, %v681
    %v890 = vpack.c.b16 %v686, %v682
    %v891 = vpack.c.b16 %v687, %v683
    %v892 = vpack.c.b16 %v688, %v684
    %v893 = vpack.c.b16 %v693, %v689
    %v894 = vpack.c.b16 %v694, %v690
    %v895 = vpack.c.b16 %v695, %v691
    %v896 = vpack.c.b16 %v696, %v692
    %v897 = vpack.c.b16 %v701, %v697
    %v898 = vpack.c.b16 %v702, %v698
    %v899 = vpack.c.b16 %v703, %v699
    %v900 = vpack.c.b16 %v704, %v700
    %v901 = vpack.c.b16 %v709, %v705
    %v902 = vpack.c.b16 %v710, %v706
    %v903 = vpack.c.b16 %v711, %v707
    %v904 = vpack.c.b16 %v712, %v708
    %v905 = vpack.c.b16 %v717, %v713
    %v906 = vpack.c.b16 %v718, %v714
    %v907 = vpack.c.b16 %v719, %v715
    %v908 = vpack.c.b16 %v720, %v716
    %v909 = vpack.c.b16 %v725, %v721
    %v910 = vpack.c.b16 %v726, %v722
    %v911 = vpack.c.b16 %v727, %v723
    %v912 = vpack.c.b16 %v728, %v724
    %v913 = vpack.c.b16 %v733, %v729
    %v914 = vpack.c.b16 %v734, %v730
    %v915 = vpack.c.b16 %v735, %v731
    %v916 = vpack.c.b16 %v736, %v732
    %v917 = vpack.c.b16 %v741, %v737
    %v918 = vpack.c.b16 %v742, %v738
    %v919 = vpack.c.b16 %v743, %v739
    %v920 = vpack.c.b16 %v744, %v740
    %v921 = vpack.c.b16 %v749, %v745
    %v922 = vpack.c.b16 %v750, %v746
    %v923 = vpack.c.b16 %v751, %v747
    %v924 = vpack.c.b16 %v752, %v748
    %v925 = vpack.c.b16 %v757, %v753
    %v926 = vpack.c.b16 %v758, %v754
    %v927 = vpack.c.b16 %v759, %v755
    %v928 = vpack.c.b16 %v760, %v756
    %v929 = vpack.c.b16 %v765, %v761
    %v930 = vpack.c.b16 %v766, %v762
    %v931 = vpack.c.b16 %v767, %v763
    %v932 = vpack.c.b16 %v768, %v764
    %v933 = vpack.c.b16 %v773, %v769
    %v934 = vpack.c.b16 %v774, %v770
    %v935 = vpack.c.b16 %v775, %v771
    %v936 = vpack.c.b16 %v776, %v772
    %v937 = vpack.c.b16 %v781, %v777
    %v938 = vpack.c.b16 %v782, %v778
    %v939 = vpack.c.b16 %v783, %v779
    %v940 = vpack.c.b16 %v784, %v780
    %v941 = vpack.c.b16 %v789, %v785
    %v942 = vpack.c.b16 %v790, %v786
    %v943 = vpack.c.b16 %v791, %v787
    %v944 = vpack.c.b16 %v792, %v788
    %v945 = vpack.c.b16 %v797, %v793
    %v946 = vpack.c.b16 %v798, %v794
    %v947 = vpack.c.b16 %v799, %v795
    %v948 = vpack.c.b16 %v800, %v796
    %v949 = vpack.c.b16 %v805, %v801
    %v950 = vpack.c.b16 %v806, %v802
    %v951 = vpack.c.b16 %v807, %v803
    %v952 = vpack.c.b16 %v808, %v804
    %v953 = vpack.c.b16 %v813, %v809
    %v954 = vpack.c.b16 %v814, %v810
    %v955 = vpack.c.b16 %v815, %v811
    %v956 = vpack.c.b16 %v816, %v812
    %v957 = vpack.c.b16 %v821, %v817
    %v958 = vpack.c.b16 %v822, %v818
    %v959 = vpack.c.b16 %v823, %v819
    %v960 = vpack.c.b16 %v824, %v820
    %v961 = vpack.c.b16 %v829, %v825
    %v962 = vpack.c.b16 %v830, %v826
    %v963 = vpack.c.b16 %v831, %v827
    %v964 = vpack.c.b16 %v832, %v828
    %v965 = vpack.c.b16 %v837, %v833
    %v966 = vpack.c.b16 %v838, %v834
    %v967 = vpack.c.b16 %v839, %v835
    %v968 = vpack.c.b16 %v840, %v836
    %1097 = vmatprep.subr.bf16.mxu0 %v870
    %1098 = vmatpush1.bf16.msra.mxu0 %v869
    %1099 = vmatprep.subr.bf16.mxu0 %v866
    %1100 = vmatpush1.bf16.msra.mxu0 %v865
    %1101 = vmatprep.subr.bf16.mxu0 %v862
    %1102 = vmatpush1.bf16.msra.mxu0 %v861
    %1103 = vmatprep.subr.bf16.mxu0 %v858
    %1104 = vmatpush1.bf16.msra.mxu0 %v857
    %1105 = vmatprep.subr.bf16.mxu0 %v854
    %1106 = vmatpush1.bf16.msra.mxu0 %v853
    %1107 = vmatprep.subr.bf16.mxu0 %v850
    %1108 = vmatpush1.bf16.msra.mxu0 %v849
    %1109 = vmatprep.subr.bf16.mxu0 %v846
    %1110 = vmatpush1.bf16.msra.mxu0 %v845
    %1111 = vmatprep.subr.bf16.mxu0 %v842
    %1112 = vmatpush1.bf16.msra.mxu0 %v841
    %1113 = vmatprep.subr.bf16.mxu0 %v902
    %1114 = vmatpush2.bf16.msra.mxu0 %v901
    %1115 = vmatprep.subr.bf16.mxu0 %v898
    %1116 = vmatpush2.bf16.msra.mxu0 %v897
    %1117 = vmatprep.subr.bf16.mxu0 %v894
    %1118 = vmatpush2.bf16.msra.mxu0 %v893
    %1119 = vmatprep.subr.bf16.mxu0 %v890
    %1120 = vmatpush2.bf16.msra.mxu0 %v889
    %1121 = vmatprep.subr.bf16.mxu0 %v886
    %1122 = vmatpush2.bf16.msra.mxu0 %v885
    %1123 = vmatprep.subr.bf16.mxu0 %v882
    %1124 = vmatpush2.bf16.msra.mxu0 %v881
    %1125 = vmatprep.subr.bf16.mxu0 %v878
    %1126 = vmatpush2.bf16.msra.mxu0 %v877
    %1127 = vmatprep.subr.bf16.mxu0 %v874
    %1128 = vmatpush2.bf16.msra.mxu0 %v873
    %1129 = vmatprep.mubr.bf16.mxu0 %v304
    %1130 = vmatmul.mubr.bf16.gmra.mxu0 %v303
    %v1131 = vpop.f32.mrf.mxu0
    %v1132 = vadd.f32 %v440, %v1131
    %v1133 = vpop.f32.mrf.mxu0
    %v1134 = vadd.f32 %v444, %v1133
    %v1135 = vpop.f32.mrf.mxu0
    %v1136 = vadd.f32 %v440, %v1135
    %v1137 = vpop.f32.mrf.mxu0
    %v1138 = vadd.f32 %v444, %v1137
    %1139 = vdwg.mxu0
    %1140 = vmatprep.subr.bf16.mxu0 %v934
    %1141 = vmatpush1.bf16.msra.mxu0 %v933
    %1142 = vmatprep.subr.bf16.mxu0 %v930
    %1143 = vmatpush1.bf16.msra.mxu0 %v929
    %1144 = vmatprep.subr.bf16.mxu0 %v926
    %1145 = vmatpush1.bf16.msra.mxu0 %v925
    %1146 = vmatprep.subr.bf16.mxu0 %v922
    %1147 = vmatpush1.bf16.msra.mxu0 %v921
    %1148 = vmatprep.subr.bf16.mxu0 %v918
    %1149 = vmatpush1.bf16.msra.mxu0 %v917
    %1150 = vmatprep.subr.bf16.mxu0 %v914
    %1151 = vmatpush1.bf16.msra.mxu0 %v913
    %1152 = vmatprep.subr.bf16.mxu0 %v910
    %1153 = vmatpush1.bf16.msra.mxu0 %v909
    %1154 = vmatprep.subr.bf16.mxu0 %v906
    %1155 = vmatpush1.bf16.msra.mxu0 %v905
    %1156 = vmatprep.subr.bf16.mxu0 %v966
    %1157 = vmatpush2.bf16.msra.mxu0 %v965
    %1158 = vmatprep.subr.bf16.mxu0 %v962
    %1159 = vmatpush2.bf16.msra.mxu0 %v961
    %1160 = vmatprep.subr.bf16.mxu0 %v958
    %1161 = vmatpush2.bf16.msra.mxu0 %v957
    %1162 = vmatprep.subr.bf16.mxu0 %v954
    %1163 = vmatpush2.bf16.msra.mxu0 %v953
    %1164 = vmatprep.subr.bf16.mxu0 %v950
    %1165 = vmatpush2.bf16.msra.mxu0 %v949
    %1166 = vmatprep.subr.bf16.mxu0 %v946
    %1167 = vmatpush2.bf16.msra.mxu0 %v945
    %1168 = vmatprep.subr.bf16.mxu0 %v942
    %1169 = vmatpush2.bf16.msra.mxu0 %v941
    %1170 = vmatprep.subr.bf16.mxu0 %v938
    %1171 = vmatpush2.bf16.msra.mxu0 %v937
    %1172 = vmatprep.mubr.bf16.mxu0 %v306
    %1173 = vmatmul.mubr.bf16.gmra.mxu0 %v305
    %v1174 = vpop.f32.mrf.mxu0
    %v1175 = vadd.f32 %v1132, %v1174
    %v1176 = vpop.f32.mrf.mxu0
    %v1177 = vadd.f32 %v1134, %v1176
    %v1178 = vpop.f32.mrf.mxu0
    %v1179 = vadd.f32 %v1136, %v1178
    %v1180 = vpop.f32.mrf.mxu0
    %v1181 = vadd.f32 %v1138, %v1180
    %1182 = vdwg.mxu0
    %1183 = vmatprep.subr.bf16.mxu0 %v872
    %1184 = vmatpush1.bf16.msra.mxu0 %v871
    %1185 = vmatprep.subr.bf16.mxu0 %v868
    %1186 = vmatpush1.bf16.msra.mxu0 %v867
    %1187 = vmatprep.subr.bf16.mxu0 %v864
    %1188 = vmatpush1.bf16.msra.mxu0 %v863
    %1189 = vmatprep.subr.bf16.mxu0 %v860
    %1190 = vmatpush1.bf16.msra.mxu0 %v859
    %1191 = vmatprep.subr.bf16.mxu0 %v856
    %1192 = vmatpush1.bf16.msra.mxu0 %v855
    %1193 = vmatprep.subr.bf16.mxu0 %v852
    %1194 = vmatpush1.bf16.msra.mxu0 %v851
    %1195 = vmatprep.subr.bf16.mxu0 %v848
    %1196 = vmatpush1.bf16.msra.mxu0 %v847
    %1197 = vmatprep.subr.bf16.mxu0 %v844
    %1198 = vmatpush1.bf16.msra.mxu0 %v843
    %1199 = vmatprep.subr.bf16.mxu0 %v904
    %1200 = vmatpush2.bf16.msra.mxu0 %v903
    %1201 = vmatprep.subr.bf16.mxu0 %v900
    %1202 = vmatpush2.bf16.msra.mxu0 %v899
    %1203 = vmatprep.subr.bf16.mxu0 %v896
    %1204 = vmatpush2.bf16.msra.mxu0 %v895
    %1205 = vmatprep.subr.bf16.mxu0 %v892
    %1206 = vmatpush2.bf16.msra.mxu0 %v891
    %1207 = vmatprep.subr.bf16.mxu0 %v888
    %1208 = vmatpush2.bf16.msra.mxu0 %v887
    %1209 = vmatprep.subr.bf16.mxu0 %v884
    %1210 = vmatpush2.bf16.msra.mxu0 %v883
    %1211 = vmatprep.subr.bf16.mxu0 %v880
    %1212 = vmatpush2.bf16.msra.mxu0 %v879
    %1213 = vmatprep.subr.bf16.mxu0 %v876
    %1214 = vmatpush2.bf16.msra.mxu0 %v875
    %1215 = vmatprep.mubr.bf16.mxu0 %v304
    %1216 = vmatmul.mubr.bf16.gmra.mxu0 %v303
    %v1217 = vpop.f32.mrf.mxu0
    %v1218 = vadd.f32 %v448, %v1217
    %v1219 = vpop.f32.mrf.mxu0
    %v1220 = vadd.f32 %v452, %v1219
    %v1221 = vpop.f32.mrf.mxu0
    %v1222 = vadd.f32 %v448, %v1221
    %v1223 = vpop.f32.mrf.mxu0
    %v1224 = vadd.f32 %v452, %v1223
    %1225 = vdwg.mxu0
    %1226 = vmatprep.subr.bf16.mxu0 %v936
    %1227 = vmatpush1.bf16.msra.mxu0 %v935
    %1228 = vmatprep.subr.bf16.mxu0 %v932
    %1229 = vmatpush1.bf16.msra.mxu0 %v931
    %1230 = vmatprep.subr.bf16.mxu0 %v928
    %1231 = vmatpush1.bf16.msra.mxu0 %v927
    %1232 = vmatprep.subr.bf16.mxu0 %v924
    %1233 = vmatpush1.bf16.msra.mxu0 %v923
    %1234 = vmatprep.subr.bf16.mxu0 %v920
    %1235 = vmatpush1.bf16.msra.mxu0 %v919
    %1236 = vmatprep.subr.bf16.mxu0 %v916
    %1237 = vmatpush1.bf16.msra.mxu0 %v915
    %1238 = vmatprep.subr.bf16.mxu0 %v912
    %1239 = vmatpush1.bf16.msra.mxu0 %v911
    %1240 = vmatprep.subr.bf16.mxu0 %v908
    %1241 = vmatpush1.bf16.msra.mxu0 %v907
    %1242 = vmatprep.subr.bf16.mxu0 %v968
    %1243 = vmatpush2.bf16.msra.mxu0 %v967
    %1244 = vmatprep.subr.bf16.mxu0 %v964
    %1245 = vmatpush2.bf16.msra.mxu0 %v963
    %1246 = vmatprep.subr.bf16.mxu0 %v960
    %1247 = vmatpush2.bf16.msra.mxu0 %v959
    %1248 = vmatprep.subr.bf16.mxu0 %v956
    %1249 = vmatpush2.bf16.msra.mxu0 %v955
    %1250 = vmatprep.subr.bf16.mxu0 %v952
    %1251 = vmatpush2.bf16.msra.mxu0 %v951
    %1252 = vmatprep.subr.bf16.mxu0 %v948
    %1253 = vmatpush2.bf16.msra.mxu0 %v947
    %1254 = vmatprep.subr.bf16.mxu0 %v944
    %1255 = vmatpush2.bf16.msra.mxu0 %v943
    %1256 = vmatprep.subr.bf16.mxu0 %v940
    %1257 = vmatpush2.bf16.msra.mxu0 %v939
    %1258 = vmatprep.mubr.bf16.mxu0 %v306
    %1259 = vmatmul.mubr.bf16.gmra.mxu0 %v305
    %v1260 = vpop.f32.mrf.mxu0
    %v1261 = vadd.f32 %v1218, %v1260
    %v1262 = vpop.f32.mrf.mxu0
    %v1263 = vadd.f32 %v1220, %v1262
    %v1264 = vpop.f32.mrf.mxu0
    %v1265 = vadd.f32 %v1222, %v1264
    %v1266 = vpop.f32.mrf.mxu0
    %v1267 = vadd.f32 %v1224, %v1266
    %1268 = vdwg.mxu0
    %v1269 = vpack.c.bf16 %v1179, %v1175
    %v1270 = vpack.c.bf16 %v1181, %v1177
    %v1271 = vpack.c.bf16 %v1265, %v1261
    %v1272 = vpack.c.bf16 %v1267, %v1263
    %v1273 = vmul.bf16 %v1269, 1009007652
    %v1274 = vmul.bf16 %v1270, 1009007652
    %v1275 = vmul.bf16 %v1271, 1009007652
    %v1276 = vmul.bf16 %v1272, 1009007652
    %v1277 = vmax.bf16 %v1269, %v1273
    %v1278 = vmax.bf16 %v1270, %v1274
    %v1279 = vmax.bf16 %v1271, %v1275
    %v1280 = vmax.bf16 %v1272, %v1276
    %v1281 = vshrl.u32 %v191, 16
    %v1282 = vshrl.u32 %v192, 16
    %v1283 = vshrl.u32 %v193, 16
    %v1284 = vshrl.u32 %v194, 16
    %v1285 = vshrl.u32 %v195, 16
    %v1286 = vshrl.u32 %v196, 16
    %v1287 = vshrl.u32 %v197, 16
    %v1288 = vshrl.u32 %v198, 16
    %vm1289 = vcmp.ge.u32.totalorder %v1281, 6554
    %vm1290 = vcmp.ge.u32.totalorder %v1282, 6554
    %vm1291 = vcmp.ge.u32.totalorder %v1283, 6554
    %vm1292 = vcmp.ge.u32.totalorder %v1284, 6554
    %vm1293 = vcmp.ge.u32.totalorder %v1285, 6554
    %vm1294 = vcmp.ge.u32.totalorder %v1286, 6554
    %vm1295 = vcmp.ge.u32.totalorder %v1287, 6554
    %vm1296 = vcmp.ge.u32.totalorder %v1288, 6554
    %vm1297 = vmpackc.low %vm1293, %vm1289
    %vm1298 = vmpackc.low %vm1294, %vm1290
    %vm1299 = vmpackc.low %vm1295, %vm1291
    %vm1300 = vmpackc.low %vm1296, %vm1292
    %v1301 = vsel %vm1297, %v1277, 0
    %v1302 = vsel %vm1298, %v1278, 0
    %v1303 = vsel %vm1299, %v1279, 0
    %v1304 = vsel %vm1300, %v1280, 0
    %v1305 = vld [vmem:[#allocation5] sm:$0xff]
    %v1306 = vld [vmem:[#allocation5 + $0x8] sm:$0xff]
    %v1307 = vld [vmem:[#allocation5 + $0x10] sm:$0xff]
    %v1308 = vld [vmem:[#allocation5 + $0x18] sm:$0xff]
    %v1309 = vld [vmem:[#allocation5 + $0x20] sm:$0xff]
    %v1310 = vld [vmem:[#allocation5 + $0x28] sm:$0xff]
    %v1311 = vld [vmem:[#allocation5 + $0x30] sm:$0xff]
    %v1312 = vld [vmem:[#allocation5 + $0x38] sm:$0xff]
    %v1313 = vld [vmem:[#allocation5 + $0x40] sm:$0xff]
    %v1314 = vld [vmem:[#allocation5 + $0x48] sm:$0xff]
    %v1315 = vld [vmem:[#allocation5 + $0x50] sm:$0xff]
    %v1316 = vld [vmem:[#allocation5 + $0x58] sm:$0xff]
    %v1317 = vld [vmem:[#allocation5 + $0x60] sm:$0xff]
    %v1318 = vld [vmem:[#allocation5 + $0x68] sm:$0xff]
    %v1319 = vld [vmem:[#allocation5 + $0x70] sm:$0xff]
    %v1320 = vld [vmem:[#allocation5 + $0x78] sm:$0xff]
    %v1321 = vld [vmem:[#allocation5 + $0x80] sm:$0xff]
    %v1322 = vld [vmem:[#allocation5 + $0x88] sm:$0xff]
    %v1323 = vld [vmem:[#allocation5 + $0x90] sm:$0xff]
    %v1324 = vld [vmem:[#allocation5 + $0x98] sm:$0xff]
    %v1325 = vld [vmem:[#allocation5 + $0xa0] sm:$0xff]
    %v1326 = vld [vmem:[#allocation5 + $0xa8] sm:$0xff]
    %v1327 = vld [vmem:[#allocation5 + $0xb0] sm:$0xff]
    %v1328 = vld [vmem:[#allocation5 + $0xb8] sm:$0xff]
    %v1329 = vld [vmem:[#allocation5 + $0xc0] sm:$0xff]
    %v1330 = vld [vmem:[#allocation5 + $0xc8] sm:$0xff]
    %v1331 = vld [vmem:[#allocation5 + $0xd0] sm:$0xff]
    %v1332 = vld [vmem:[#allocation5 + $0xd8] sm:$0xff]
    %v1333 = vld [vmem:[#allocation5 + $0xe0] sm:$0xff]
    %v1334 = vld [vmem:[#allocation5 + $0xe8] sm:$0xff]
    %v1335 = vld [vmem:[#allocation5 + $0xf0] sm:$0xff]
    %v1336 = vld [vmem:[#allocation5 + $0xf8] sm:$0xff]
    %v1337 = vld [vmem:[#allocation5 + $0x100] sm:$0xff]
    %v1338 = vld [vmem:[#allocation5 + $0x108] sm:$0xff]
    %v1339 = vld [vmem:[#allocation5 + $0x110] sm:$0xff]
    %v1340 = vld [vmem:[#allocation5 + $0x118] sm:$0xff]
    %v1341 = vld [vmem:[#allocation5 + $0x120] sm:$0xff]
    %v1342 = vld [vmem:[#allocation5 + $0x128] sm:$0xff]
    %v1343 = vld [vmem:[#allocation5 + $0x130] sm:$0xff]
    %v1344 = vld [vmem:[#allocation5 + $0x138] sm:$0xff]
    %v1345 = vld [vmem:[#allocation5 + $0x140] sm:$0xff]
    %v1346 = vld [vmem:[#allocation5 + $0x148] sm:$0xff]
    %v1347 = vld [vmem:[#allocation5 + $0x150] sm:$0xff]
    %v1348 = vld [vmem:[#allocation5 + $0x158] sm:$0xff]
    %v1349 = vld [vmem:[#allocation5 + $0x160] sm:$0xff]
    %v1350 = vld [vmem:[#allocation5 + $0x168] sm:$0xff]
    %v1351 = vld [vmem:[#allocation5 + $0x170] sm:$0xff]
    %v1352 = vld [vmem:[#allocation5 + $0x178] sm:$0xff]
    %v1353 = vld [vmem:[#allocation5 + $0x180] sm:$0xff]
    %v1354 = vld [vmem:[#allocation5 + $0x188] sm:$0xff]
    %v1355 = vld [vmem:[#allocation5 + $0x190] sm:$0xff]
    %v1356 = vld [vmem:[#allocation5 + $0x198] sm:$0xff]
    %v1357 = vld [vmem:[#allocation5 + $0x1a0] sm:$0xff]
    %v1358 = vld [vmem:[#allocation5 + $0x1a8] sm:$0xff]
    %v1359 = vld [vmem:[#allocation5 + $0x1b0] sm:$0xff]
    %v1360 = vld [vmem:[#allocation5 + $0x1b8] sm:$0xff]
    %v1361 = vld [vmem:[#allocation5 + $0x1c0] sm:$0xff]
    %v1362 = vld [vmem:[#allocation5 + $0x1c8] sm:$0xff]
    %v1363 = vld [vmem:[#allocation5 + $0x1d0] sm:$0xff]
    %v1364 = vld [vmem:[#allocation5 + $0x1d8] sm:$0xff]
    %v1365 = vld [vmem:[#allocation5 + $0x1e0] sm:$0xff]
    %v1366 = vld [vmem:[#allocation5 + $0x1e8] sm:$0xff]
    %v1367 = vld [vmem:[#allocation5 + $0x1f0] sm:$0xff]
    %v1368 = vld [vmem:[#allocation5 + $0x1f8] sm:$0xff]
    %v1369 = vld [vmem:[#allocation5 + $0x200] sm:$0xff]
    %v1370 = vld [vmem:[#allocation5 + $0x208] sm:$0xff]
    %v1371 = vld [vmem:[#allocation5 + $0x210] sm:$0xff]
    %v1372 = vld [vmem:[#allocation5 + $0x218] sm:$0xff]
    %v1373 = vld [vmem:[#allocation5 + $0x220] sm:$0xff]
    %v1374 = vld [vmem:[#allocation5 + $0x228] sm:$0xff]
    %v1375 = vld [vmem:[#allocation5 + $0x230] sm:$0xff]
    %v1376 = vld [vmem:[#allocation5 + $0x238] sm:$0xff]
    %v1377 = vld [vmem:[#allocation5 + $0x240] sm:$0xff]
    %v1378 = vld [vmem:[#allocation5 + $0x248] sm:$0xff]
    %v1379 = vld [vmem:[#allocation5 + $0x250] sm:$0xff]
    %v1380 = vld [vmem:[#allocation5 + $0x258] sm:$0xff]
    %v1381 = vld [vmem:[#allocation5 + $0x260] sm:$0xff]
    %v1382 = vld [vmem:[#allocation5 + $0x268] sm:$0xff]
    %v1383 = vld [vmem:[#allocation5 + $0x270] sm:$0xff]
    %v1384 = vld [vmem:[#allocation5 + $0x278] sm:$0xff]
    %v1385 = vld [vmem:[#allocation5 + $0x280] sm:$0xff]
    %v1386 = vld [vmem:[#allocation5 + $0x288] sm:$0xff]
    %v1387 = vld [vmem:[#allocation5 + $0x290] sm:$0xff]
    %v1388 = vld [vmem:[#allocation5 + $0x298] sm:$0xff]
    %v1389 = vld [vmem:[#allocation5 + $0x2a0] sm:$0xff]
    %v1390 = vld [vmem:[#allocation5 + $0x2a8] sm:$0xff]
    %v1391 = vld [vmem:[#allocation5 + $0x2b0] sm:$0xff]
    %v1392 = vld [vmem:[#allocation5 + $0x2b8] sm:$0xff]
    %v1393 = vld [vmem:[#allocation5 + $0x2c0] sm:$0xff]
    %v1394 = vld [vmem:[#allocation5 + $0x2c8] sm:$0xff]
    %v1395 = vld [vmem:[#allocation5 + $0x2d0] sm:$0xff]
    %v1396 = vld [vmem:[#allocation5 + $0x2d8] sm:$0xff]
    %v1397 = vld [vmem:[#allocation5 + $0x2e0] sm:$0xff]
    %v1398 = vld [vmem:[#allocation5 + $0x2e8] sm:$0xff]
    %v1399 = vld [vmem:[#allocation5 + $0x2f0] sm:$0xff]
    %v1400 = vld [vmem:[#allocation5 + $0x2f8] sm:$0xff]
    %v1401 = vld [vmem:[#allocation5 + $0x300] sm:$0xff]
    %v1402 = vld [vmem:[#allocation5 + $0x308] sm:$0xff]
    %v1403 = vld [vmem:[#allocation5 + $0x310] sm:$0xff]
    %v1404 = vld [vmem:[#allocation5 + $0x318] sm:$0xff]
    %v1405 = vld [vmem:[#allocation5 + $0x320] sm:$0xff]
    %v1406 = vld [vmem:[#allocation5 + $0x328] sm:$0xff]
    %v1407 = vld [vmem:[#allocation5 + $0x330] sm:$0xff]
    %v1408 = vld [vmem:[#allocation5 + $0x338] sm:$0xff]
    %v1409 = vld [vmem:[#allocation5 + $0x340] sm:$0xff]
    %v1410 = vld [vmem:[#allocation5 + $0x348] sm:$0xff]
    %v1411 = vld [vmem:[#allocation5 + $0x350] sm:$0xff]
    %v1412 = vld [vmem:[#allocation5 + $0x358] sm:$0xff]
    %v1413 = vld [vmem:[#allocation5 + $0x360] sm:$0xff]
    %v1414 = vld [vmem:[#allocation5 + $0x368] sm:$0xff]
    %v1415 = vld [vmem:[#allocation5 + $0x370] sm:$0xff]
    %v1416 = vld [vmem:[#allocation5 + $0x378] sm:$0xff]
    %v1417 = vld [vmem:[#allocation5 + $0x380] sm:$0xff]
    %v1418 = vld [vmem:[#allocation5 + $0x388] sm:$0xff]
    %v1419 = vld [vmem:[#allocation5 + $0x390] sm:$0xff]
    %v1420 = vld [vmem:[#allocation5 + $0x398] sm:$0xff]
    %v1421 = vld [vmem:[#allocation5 + $0x3a0] sm:$0xff]
    %v1422 = vld [vmem:[#allocation5 + $0x3a8] sm:$0xff]
    %v1423 = vld [vmem:[#allocation5 + $0x3b0] sm:$0xff]
    %v1424 = vld [vmem:[#allocation5 + $0x3b8] sm:$0xff]
    %v1425 = vld [vmem:[#allocation5 + $0x3c0] sm:$0xff]
    %v1426 = vld [vmem:[#allocation5 + $0x3c8] sm:$0xff]
    %v1427 = vld [vmem:[#allocation5 + $0x3d0] sm:$0xff]
    %v1428 = vld [vmem:[#allocation5 + $0x3d8] sm:$0xff]
    %v1429 = vld [vmem:[#allocation5 + $0x3e0] sm:$0xff]
    %v1430 = vld [vmem:[#allocation5 + $0x3e8] sm:$0xff]
    %v1431 = vld [vmem:[#allocation5 + $0x3f0] sm:$0xff]
    %v1432 = vld [vmem:[#allocation5 + $0x3f8] sm:$0xff]
    %v1433 = vld [vmem:[%s5] sm:$0xf]
    %v1435 = vlaneseq
    %v1436 = vshrl.u32 %v1435, 7
    %v1437 = vsub.s32 0, %v1436
    %v1438 = vrot.slane %v1433, %v1437
    %v1439 = vlaneseq
    %v1440 = vshrl.u32 %v1439, 7
    %v1441 = vsub.s32 1, %v1440
    %v1442 = vrot.slane %v1433, %v1441
    %v1443 = vlaneseq
    %v1444 = vshrl.u32 %v1443, 7
    %v1445 = vsub.s32 2, %v1444
    %v1446 = vrot.slane %v1433, %v1445
    %v1447 = vlaneseq
    %v1448 = vshrl.u32 %v1447, 7
    %v1449 = vsub.s32 3, %v1448
    %v1450 = vrot.slane %v1433, %v1449
    %v1583 = vunpack.c.l.b16 %v1305
    %v1584 = vunpack.c.h.b16 %v1305
    %v1585 = vunpack.c.l.b16 %v1306
    %v1586 = vunpack.c.h.b16 %v1306
    %v1587 = vunpack.c.l.b16 %v1307
    %v1588 = vunpack.c.h.b16 %v1307
    %v1589 = vunpack.c.l.b16 %v1308
    %v1590 = vunpack.c.h.b16 %v1308
    %v1591 = vunpack.c.l.b16 %v1309
    %v1592 = vunpack.c.h.b16 %v1309
    %v1593 = vunpack.c.l.b16 %v1310
    %v1594 = vunpack.c.h.b16 %v1310
    %v1595 = vunpack.c.l.b16 %v1311
    %v1596 = vunpack.c.h.b16 %v1311
    %v1597 = vunpack.c.l.b16 %v1312
    %v1598 = vunpack.c.h.b16 %v1312
    %v1599 = vunpack.c.l.b16 %v1313
    %v1600 = vunpack.c.h.b16 %v1313
    %v1601 = vunpack.c.l.b16 %v1314
    %v1602 = vunpack.c.h.b16 %v1314
    %v1603 = vunpack.c.l.b16 %v1315
    %v1604 = vunpack.c.h.b16 %v1315
    %v1605 = vunpack.c.l.b16 %v1316
    %v1606 = vunpack.c.h.b16 %v1316
    %v1607 = vunpack.c.l.b16 %v1317
    %v1608 = vunpack.c.h.b16 %v1317
    %v1609 = vunpack.c.l.b16 %v1318
    %v1610 = vunpack.c.h.b16 %v1318
    %v1611 = vunpack.c.l.b16 %v1319
    %v1612 = vunpack.c.h.b16 %v1319
    %v1613 = vunpack.c.l.b16 %v1320
    %v1614 = vunpack.c.h.b16 %v1320
    %v1615 = vunpack.c.l.b16 %v1321
    %v1616 = vunpack.c.h.b16 %v1321
    %v1617 = vunpack.c.l.b16 %v1322
    %v1618 = vunpack.c.h.b16 %v1322
    %v1619 = vunpack.c.l.b16 %v1323
    %v1620 = vunpack.c.h.b16 %v1323
    %v1621 = vunpack.c.l.b16 %v1324
    %v1622 = vunpack.c.h.b16 %v1324
    %v1623 = vunpack.c.l.b16 %v1325
    %v1624 = vunpack.c.h.b16 %v1325
    %v1625 = vunpack.c.l.b16 %v1326
    %v1626 = vunpack.c.h.b16 %v1326
    %v1627 = vunpack.c.l.b16 %v1327
    %v1628 = vunpack.c.h.b16 %v1327
    %v1629 = vunpack.c.l.b16 %v1328
    %v1630 = vunpack.c.h.b16 %v1328
    %v1631 = vunpack.c.l.b16 %v1329
    %v1632 = vunpack.c.h.b16 %v1329
    %v1633 = vunpack.c.l.b16 %v1330
    %v1634 = vunpack.c.h.b16 %v1330
    %v1635 = vunpack.c.l.b16 %v1331
    %v1636 = vunpack.c.h.b16 %v1331
    %v1637 = vunpack.c.l.b16 %v1332
    %v1638 = vunpack.c.h.b16 %v1332
    %v1639 = vunpack.c.l.b16 %v1333
    %v1640 = vunpack.c.h.b16 %v1333
    %v1641 = vunpack.c.l.b16 %v1334
    %v1642 = vunpack.c.h.b16 %v1334
    %v1643 = vunpack.c.l.b16 %v1335
    %v1644 = vunpack.c.h.b16 %v1335
    %v1645 = vunpack.c.l.b16 %v1336
    %v1646 = vunpack.c.h.b16 %v1336
    %v1647 = vunpack.c.l.b16 %v1337
    %v1648 = vunpack.c.h.b16 %v1337
    %v1649 = vunpack.c.l.b16 %v1338
    %v1650 = vunpack.c.h.b16 %v1338
    %v1651 = vunpack.c.l.b16 %v1339
    %v1652 = vunpack.c.h.b16 %v1339
    %v1653 = vunpack.c.l.b16 %v1340
    %v1654 = vunpack.c.h.b16 %v1340
    %v1655 = vunpack.c.l.b16 %v1341
    %v1656 = vunpack.c.h.b16 %v1341
    %v1657 = vunpack.c.l.b16 %v1342
    %v1658 = vunpack.c.h.b16 %v1342
    %v1659 = vunpack.c.l.b16 %v1343
    %v1660 = vunpack.c.h.b16 %v1343
    %v1661 = vunpack.c.l.b16 %v1344
    %v1662 = vunpack.c.h.b16 %v1344
    %v1663 = vunpack.c.l.b16 %v1345
    %v1664 = vunpack.c.h.b16 %v1345
    %v1665 = vunpack.c.l.b16 %v1346
    %v1666 = vunpack.c.h.b16 %v1346
    %v1667 = vunpack.c.l.b16 %v1347
    %v1668 = vunpack.c.h.b16 %v1347
    %v1669 = vunpack.c.l.b16 %v1348
    %v1670 = vunpack.c.h.b16 %v1348
    %v1671 = vunpack.c.l.b16 %v1349
    %v1672 = vunpack.c.h.b16 %v1349
    %v1673 = vunpack.c.l.b16 %v1350
    %v1674 = vunpack.c.h.b16 %v1350
    %v1675 = vunpack.c.l.b16 %v1351
    %v1676 = vunpack.c.h.b16 %v1351
    %v1677 = vunpack.c.l.b16 %v1352
    %v1678 = vunpack.c.h.b16 %v1352
    %v1679 = vunpack.c.l.b16 %v1353
    %v1680 = vunpack.c.h.b16 %v1353
    %v1681 = vunpack.c.l.b16 %v1354
    %v1682 = vunpack.c.h.b16 %v1354
    %v1683 = vunpack.c.l.b16 %v1355
    %v1684 = vunpack.c.h.b16 %v1355
    %v1685 = vunpack.c.l.b16 %v1356
    %v1686 = vunpack.c.h.b16 %v1356
    %v1687 = vunpack.c.l.b16 %v1357
    %v1688 = vunpack.c.h.b16 %v1357
    %v1689 = vunpack.c.l.b16 %v1358
    %v1690 = vunpack.c.h.b16 %v1358
    %v1691 = vunpack.c.l.b16 %v1359
    %v1692 = vunpack.c.h.b16 %v1359
    %v1693 = vunpack.c.l.b16 %v1360
    %v1694 = vunpack.c.h.b16 %v1360
    %v1695 = vunpack.c.l.b16 %v1361
    %v1696 = vunpack.c.h.b16 %v1361
    %v1697 = vunpack.c.l.b16 %v1362
    %v1698 = vunpack.c.h.b16 %v1362
    %v1699 = vunpack.c.l.b16 %v1363
    %v1700 = vunpack.c.h.b16 %v1363
    %v1701 = vunpack.c.l.b16 %v1364
    %v1702 = vunpack.c.h.b16 %v1364
    %v1703 = vunpack.c.l.b16 %v1365
    %v1704 = vunpack.c.h.b16 %v1365
    %v1705 = vunpack.c.l.b16 %v1366
    %v1706 = vunpack.c.h.b16 %v1366
    %v1707 = vunpack.c.l.b16 %v1367
    %v1708 = vunpack.c.h.b16 %v1367
    %v1709 = vunpack.c.l.b16 %v1368
    %v1710 = vunpack.c.h.b16 %v1368
    %v1711 = vunpack.c.l.b16 %v1369
    %v1712 = vunpack.c.h.b16 %v1369
    %v1713 = vunpack.c.l.b16 %v1370
    %v1714 = vunpack.c.h.b16 %v1370
    %v1715 = vunpack.c.l.b16 %v1371
    %v1716 = vunpack.c.h.b16 %v1371
    %v1717 = vunpack.c.l.b16 %v1372
    %v1718 = vunpack.c.h.b16 %v1372
    %v1719 = vunpack.c.l.b16 %v1373
    %v1720 = vunpack.c.h.b16 %v1373
    %v1721 = vunpack.c.l.b16 %v1374
    %v1722 = vunpack.c.h.b16 %v1374
    %v1723 = vunpack.c.l.b16 %v1375
    %v1724 = vunpack.c.h.b16 %v1375
    %v1725 = vunpack.c.l.b16 %v1376
    %v1726 = vunpack.c.h.b16 %v1376
    %v1727 = vunpack.c.l.b16 %v1377
    %v1728 = vunpack.c.h.b16 %v1377
    %v1729 = vunpack.c.l.b16 %v1378
    %v1730 = vunpack.c.h.b16 %v1378
    %v1731 = vunpack.c.l.b16 %v1379
    %v1732 = vunpack.c.h.b16 %v1379
    %v1733 = vunpack.c.l.b16 %v1380
    %v1734 = vunpack.c.h.b16 %v1380
    %v1735 = vunpack.c.l.b16 %v1381
    %v1736 = vunpack.c.h.b16 %v1381
    %v1737 = vunpack.c.l.b16 %v1382
    %v1738 = vunpack.c.h.b16 %v1382
    %v1739 = vunpack.c.l.b16 %v1383
    %v1740 = vunpack.c.h.b16 %v1383
    %v1741 = vunpack.c.l.b16 %v1384
    %v1742 = vunpack.c.h.b16 %v1384
    %v1743 = vunpack.c.l.b16 %v1385
    %v1744 = vunpack.c.h.b16 %v1385
    %v1745 = vunpack.c.l.b16 %v1386
    %v1746 = vunpack.c.h.b16 %v1386
    %v1747 = vunpack.c.l.b16 %v1387
    %v1748 = vunpack.c.h.b16 %v1387
    %v1749 = vunpack.c.l.b16 %v1388
    %v1750 = vunpack.c.h.b16 %v1388
    %v1751 = vunpack.c.l.b16 %v1389
    %v1752 = vunpack.c.h.b16 %v1389
    %v1753 = vunpack.c.l.b16 %v1390
    %v1754 = vunpack.c.h.b16 %v1390
    %v1755 = vunpack.c.l.b16 %v1391
    %v1756 = vunpack.c.h.b16 %v1391
    %v1757 = vunpack.c.l.b16 %v1392
    %v1758 = vunpack.c.h.b16 %v1392
    %v1759 = vunpack.c.l.b16 %v1393
    %v1760 = vunpack.c.h.b16 %v1393
    %v1761 = vunpack.c.l.b16 %v1394
    %v1762 = vunpack.c.h.b16 %v1394
    %v1763 = vunpack.c.l.b16 %v1395
    %v1764 = vunpack.c.h.b16 %v1395
    %v1765 = vunpack.c.l.b16 %v1396
    %v1766 = vunpack.c.h.b16 %v1396
    %v1767 = vunpack.c.l.b16 %v1397
    %v1768 = vunpack.c.h.b16 %v1397
    %v1769 = vunpack.c.l.b16 %v1398
    %v1770 = vunpack.c.h.b16 %v1398
    %v1771 = vunpack.c.l.b16 %v1399
    %v1772 = vunpack.c.h.b16 %v1399
    %v1773 = vunpack.c.l.b16 %v1400
    %v1774 = vunpack.c.h.b16 %v1400
    %v1775 = vunpack.c.l.b16 %v1401
    %v1776 = vunpack.c.h.b16 %v1401
    %v1777 = vunpack.c.l.b16 %v1402
    %v1778 = vunpack.c.h.b16 %v1402
    %v1779 = vunpack.c.l.b16 %v1403
    %v1780 = vunpack.c.h.b16 %v1403
    %v1781 = vunpack.c.l.b16 %v1404
    %v1782 = vunpack.c.h.b16 %v1404
    %v1783 = vunpack.c.l.b16 %v1405
    %v1784 = vunpack.c.h.b16 %v1405
    %v1785 = vunpack.c.l.b16 %v1406
    %v1786 = vunpack.c.h.b16 %v1406
    %v1787 = vunpack.c.l.b16 %v1407
    %v1788 = vunpack.c.h.b16 %v1407
    %v1789 = vunpack.c.l.b16 %v1408
    %v1790 = vunpack.c.h.b16 %v1408
    %v1791 = vunpack.c.l.b16 %v1409
    %v1792 = vunpack.c.h.b16 %v1409
    %v1793 = vunpack.c.l.b16 %v1410
    %v1794 = vunpack.c.h.b16 %v1410
    %v1795 = vunpack.c.l.b16 %v1411
    %v1796 = vunpack.c.h.b16 %v1411
    %v1797 = vunpack.c.l.b16 %v1412
    %v1798 = vunpack.c.h.b16 %v1412
    %v1799 = vunpack.c.l.b16 %v1413
    %v1800 = vunpack.c.h.b16 %v1413
    %v1801 = vunpack.c.l.b16 %v1414
    %v1802 = vunpack.c.h.b16 %v1414
    %v1803 = vunpack.c.l.b16 %v1415
    %v1804 = vunpack.c.h.b16 %v1415
    %v1805 = vunpack.c.l.b16 %v1416
    %v1806 = vunpack.c.h.b16 %v1416
    %v1807 = vunpack.c.l.b16 %v1417
    %v1808 = vunpack.c.h.b16 %v1417
    %v1809 = vunpack.c.l.b16 %v1418
    %v1810 = vunpack.c.h.b16 %v1418
    %v1811 = vunpack.c.l.b16 %v1419
    %v1812 = vunpack.c.h.b16 %v1419
    %v1813 = vunpack.c.l.b16 %v1420
    %v1814 = vunpack.c.h.b16 %v1420
    %v1815 = vunpack.c.l.b16 %v1421
    %v1816 = vunpack.c.h.b16 %v1421
    %v1817 = vunpack.c.l.b16 %v1422
    %v1818 = vunpack.c.h.b16 %v1422
    %v1819 = vunpack.c.l.b16 %v1423
    %v1820 = vunpack.c.h.b16 %v1423
    %v1821 = vunpack.c.l.b16 %v1424
    %v1822 = vunpack.c.h.b16 %v1424
    %v1823 = vunpack.c.l.b16 %v1425
    %v1824 = vunpack.c.h.b16 %v1425
    %v1825 = vunpack.c.l.b16 %v1426
    %v1826 = vunpack.c.h.b16 %v1426
    %v1827 = vunpack.c.l.b16 %v1427
    %v1828 = vunpack.c.h.b16 %v1427
    %v1829 = vunpack.c.l.b16 %v1428
    %v1830 = vunpack.c.h.b16 %v1428
    %v1831 = vunpack.c.l.b16 %v1429
    %v1832 = vunpack.c.h.b16 %v1429
    %v1833 = vunpack.c.l.b16 %v1430
    %v1834 = vunpack.c.h.b16 %v1430
    %v1835 = vunpack.c.l.b16 %v1431
    %v1836 = vunpack.c.h.b16 %v1431
    %v1837 = vunpack.c.l.b16 %v1432
    %v1838 = vunpack.c.h.b16 %v1432
    %v1839 = vpack.c.b16 %v1587, %v1583
    %v1840 = vpack.c.b16 %v1588, %v1584
    %v1841 = vpack.c.b16 %v1589, %v1585
    %v1842 = vpack.c.b16 %v1590, %v1586
    %v1843 = vpack.c.b16 %v1595, %v1591
    %v1844 = vpack.c.b16 %v1596, %v1592
    %v1845 = vpack.c.b16 %v1597, %v1593
    %v1846 = vpack.c.b16 %v1598, %v1594
    %v1847 = vpack.c.b16 %v1603, %v1599
    %v1848 = vpack.c.b16 %v1604, %v1600
    %v1849 = vpack.c.b16 %v1605, %v1601
    %v1850 = vpack.c.b16 %v1606, %v1602
    %v1851 = vpack.c.b16 %v1611, %v1607
    %v1852 = vpack.c.b16 %v1612, %v1608
    %v1853 = vpack.c.b16 %v1613, %v1609
    %v1854 = vpack.c.b16 %v1614, %v1610
    %v1855 = vpack.c.b16 %v1619, %v1615
    %v1856 = vpack.c.b16 %v1620, %v1616
    %v1857 = vpack.c.b16 %v1621, %v1617
    %v1858 = vpack.c.b16 %v1622, %v1618
    %v1859 = vpack.c.b16 %v1627, %v1623
    %v1860 = vpack.c.b16 %v1628, %v1624
    %v1861 = vpack.c.b16 %v1629, %v1625
    %v1862 = vpack.c.b16 %v1630, %v1626
    %v1863 = vpack.c.b16 %v1635, %v1631
    %v1864 = vpack.c.b16 %v1636, %v1632
    %v1865 = vpack.c.b16 %v1637, %v1633
    %v1866 = vpack.c.b16 %v1638, %v1634
    %v1867 = vpack.c.b16 %v1643, %v1639
    %v1868 = vpack.c.b16 %v1644, %v1640
    %v1869 = vpack.c.b16 %v1645, %v1641
    %v1870 = vpack.c.b16 %v1646, %v1642
    %v1871 = vpack.c.b16 %v1651, %v1647
    %v1872 = vpack.c.b16 %v1652, %v1648
    %v1873 = vpack.c.b16 %v1653, %v1649
    %v1874 = vpack.c.b16 %v1654, %v1650
    %v1875 = vpack.c.b16 %v1659, %v1655
    %v1876 = vpack.c.b16 %v1660, %v1656
    %v1877 = vpack.c.b16 %v1661, %v1657
    %v1878 = vpack.c.b16 %v1662, %v1658
    %v1879 = vpack.c.b16 %v1667, %v1663
    %v1880 = vpack.c.b16 %v1668, %v1664
    %v1881 = vpack.c.b16 %v1669, %v1665
    %v1882 = vpack.c.b16 %v1670, %v1666
    %v1883 = vpack.c.b16 %v1675, %v1671
    %v1884 = vpack.c.b16 %v1676, %v1672
    %v1885 = vpack.c.b16 %v1677, %v1673
    %v1886 = vpack.c.b16 %v1678, %v1674
    %v1887 = vpack.c.b16 %v1683, %v1679
    %v1888 = vpack.c.b16 %v1684, %v1680
    %v1889 = vpack.c.b16 %v1685, %v1681
    %v1890 = vpack.c.b16 %v1686, %v1682
    %v1891 = vpack.c.b16 %v1691, %v1687
    %v1892 = vpack.c.b16 %v1692, %v1688
    %v1893 = vpack.c.b16 %v1693, %v1689
    %v1894 = vpack.c.b16 %v1694, %v1690
    %v1895 = vpack.c.b16 %v1699, %v1695
    %v1896 = vpack.c.b16 %v1700, %v1696
    %v1897 = vpack.c.b16 %v1701, %v1697
    %v1898 = vpack.c.b16 %v1702, %v1698
    %v1899 = vpack.c.b16 %v1707, %v1703
    %v1900 = vpack.c.b16 %v1708, %v1704
    %v1901 = vpack.c.b16 %v1709, %v1705
    %v1902 = vpack.c.b16 %v1710, %v1706
    %v1903 = vpack.c.b16 %v1715, %v1711
    %v1904 = vpack.c.b16 %v1716, %v1712
    %v1905 = vpack.c.b16 %v1717, %v1713
    %v1906 = vpack.c.b16 %v1718, %v1714
    %v1907 = vpack.c.b16 %v1723, %v1719
    %v1908 = vpack.c.b16 %v1724, %v1720
    %v1909 = vpack.c.b16 %v1725, %v1721
    %v1910 = vpack.c.b16 %v1726, %v1722
    %v1911 = vpack.c.b16 %v1731, %v1727
    %v1912 = vpack.c.b16 %v1732, %v1728
    %v1913 = vpack.c.b16 %v1733, %v1729
    %v1914 = vpack.c.b16 %v1734, %v1730
    %v1915 = vpack.c.b16 %v1739, %v1735
    %v1916 = vpack.c.b16 %v1740, %v1736
    %v1917 = vpack.c.b16 %v1741, %v1737
    %v1918 = vpack.c.b16 %v1742, %v1738
    %v1919 = vpack.c.b16 %v1747, %v1743
    %v1920 = vpack.c.b16 %v1748, %v1744
    %v1921 = vpack.c.b16 %v1749, %v1745
    %v1922 = vpack.c.b16 %v1750, %v1746
    %v1923 = vpack.c.b16 %v1755, %v1751
    %v1924 = vpack.c.b16 %v1756, %v1752
    %v1925 = vpack.c.b16 %v1757, %v1753
    %v1926 = vpack.c.b16 %v1758, %v1754
    %v1927 = vpack.c.b16 %v1763, %v1759
    %v1928 = vpack.c.b16 %v1764, %v1760
    %v1929 = vpack.c.b16 %v1765, %v1761
    %v1930 = vpack.c.b16 %v1766, %v1762
    %v1931 = vpack.c.b16 %v1771, %v1767
    %v1932 = vpack.c.b16 %v1772, %v1768
    %v1933 = vpack.c.b16 %v1773, %v1769
    %v1934 = vpack.c.b16 %v1774, %v1770
    %v1935 = vpack.c.b16 %v1779, %v1775
    %v1936 = vpack.c.b16 %v1780, %v1776
    %v1937 = vpack.c.b16 %v1781, %v1777
    %v1938 = vpack.c.b16 %v1782, %v1778
    %v1939 = vpack.c.b16 %v1787, %v1783
    %v1940 = vpack.c.b16 %v1788, %v1784
    %v1941 = vpack.c.b16 %v1789, %v1785
    %v1942 = vpack.c.b16 %v1790, %v1786
    %v1943 = vpack.c.b16 %v1795, %v1791
    %v1944 = vpack.c.b16 %v1796, %v1792
    %v1945 = vpack.c.b16 %v1797, %v1793
    %v1946 = vpack.c.b16 %v1798, %v1794
    %v1947 = vpack.c.b16 %v1803, %v1799
    %v1948 = vpack.c.b16 %v1804, %v1800
    %v1949 = vpack.c.b16 %v1805, %v1801
    %v1950 = vpack.c.b16 %v1806, %v1802
    %v1951 = vpack.c.b16 %v1811, %v1807
    %v1952 = vpack.c.b16 %v1812, %v1808
    %v1953 = vpack.c.b16 %v1813, %v1809
    %v1954 = vpack.c.b16 %v1814, %v1810
    %v1955 = vpack.c.b16 %v1819, %v1815
    %v1956 = vpack.c.b16 %v1820, %v1816
    %v1957 = vpack.c.b16 %v1821, %v1817
    %v1958 = vpack.c.b16 %v1822, %v1818
    %v1959 = vpack.c.b16 %v1827, %v1823
    %v1960 = vpack.c.b16 %v1828, %v1824
    %v1961 = vpack.c.b16 %v1829, %v1825
    %v1962 = vpack.c.b16 %v1830, %v1826
    %v1963 = vpack.c.b16 %v1835, %v1831
    %v1964 = vpack.c.b16 %v1836, %v1832
    %v1965 = vpack.c.b16 %v1837, %v1833
    %v1966 = vpack.c.b16 %v1838, %v1834
    %2095 = vmatprep.subr.bf16.mxu0 %v1868
    %2096 = vmatpush1.bf16.msra.mxu0 %v1867
    %2097 = vmatprep.subr.bf16.mxu0 %v1864
    %2098 = vmatpush1.bf16.msra.mxu0 %v1863
    %2099 = vmatprep.subr.bf16.mxu0 %v1860
    %2100 = vmatpush1.bf16.msra.mxu0 %v1859
    %2101 = vmatprep.subr.bf16.mxu0 %v1856
    %2102 = vmatpush1.bf16.msra.mxu0 %v1855
    %2103 = vmatprep.subr.bf16.mxu0 %v1852
    %2104 = vmatpush1.bf16.msra.mxu0 %v1851
    %2105 = vmatprep.subr.bf16.mxu0 %v1848
    %2106 = vmatpush1.bf16.msra.mxu0 %v1847
    %2107 = vmatprep.subr.bf16.mxu0 %v1844
    %2108 = vmatpush1.bf16.msra.mxu0 %v1843
    %2109 = vmatprep.subr.bf16.mxu0 %v1840
    %2110 = vmatpush1.bf16.msra.mxu0 %v1839
    %2111 = vmatprep.subr.bf16.mxu0 %v1900
    %2112 = vmatpush2.bf16.msra.mxu0 %v1899
    %2113 = vmatprep.subr.bf16.mxu0 %v1896
    %2114 = vmatpush2.bf16.msra.mxu0 %v1895
    %2115 = vmatprep.subr.bf16.mxu0 %v1892
    %2116 = vmatpush2.bf16.msra.mxu0 %v1891
    %2117 = vmatprep.subr.bf16.mxu0 %v1888
    %2118 = vmatpush2.bf16.msra.mxu0 %v1887
    %2119 = vmatprep.subr.bf16.mxu0 %v1884
    %2120 = vmatpush2.bf16.msra.mxu0 %v1883
    %2121 = vmatprep.subr.bf16.mxu0 %v1880
    %2122 = vmatpush2.bf16.msra.mxu0 %v1879
    %2123 = vmatprep.subr.bf16.mxu0 %v1876
    %2124 = vmatpush2.bf16.msra.mxu0 %v1875
    %2125 = vmatprep.subr.bf16.mxu0 %v1872
    %2126 = vmatpush2.bf16.msra.mxu0 %v1871
    %2127 = vmatprep.mubr.bf16.mxu0 %v1302
    %2128 = vmatmul.mubr.bf16.gmra.mxu0 %v1301
    %v2129 = vpop.f32.mrf.mxu0
    %v2130 = vadd.f32 %v1438, %v2129
    %v2131 = vpop.f32.mrf.mxu0
    %v2132 = vadd.f32 %v1442, %v2131
    %v2133 = vpop.f32.mrf.mxu0
    %v2134 = vadd.f32 %v1438, %v2133
    %v2135 = vpop.f32.mrf.mxu0
    %v2136 = vadd.f32 %v1442, %v2135
    %2137 = vdwg.mxu0
    %2138 = vmatprep.subr.bf16.mxu0 %v1932
    %2139 = vmatpush1.bf16.msra.mxu0 %v1931
    %2140 = vmatprep.subr.bf16.mxu0 %v1928
    %2141 = vmatpush1.bf16.msra.mxu0 %v1927
    %2142 = vmatprep.subr.bf16.mxu0 %v1924
    %2143 = vmatpush1.bf16.msra.mxu0 %v1923
    %2144 = vmatprep.subr.bf16.mxu0 %v1920
    %2145 = vmatpush1.bf16.msra.mxu0 %v1919
    %2146 = vmatprep.subr.bf16.mxu0 %v1916
    %2147 = vmatpush1.bf16.msra.mxu0 %v1915
    %2148 = vmatprep.subr.bf16.mxu0 %v1912
    %2149 = vmatpush1.bf16.msra.mxu0 %v1911
    %2150 = vmatprep.subr.bf16.mxu0 %v1908
    %2151 = vmatpush1.bf16.msra.mxu0 %v1907
    %2152 = vmatprep.subr.bf16.mxu0 %v1904
    %2153 = vmatpush1.bf16.msra.mxu0 %v1903
    %2154 = vmatprep.subr.bf16.mxu0 %v1964
    %2155 = vmatpush2.bf16.msra.mxu0 %v1963
    %2156 = vmatprep.subr.bf16.mxu0 %v1960
    %2157 = vmatpush2.bf16.msra.mxu0 %v1959
    %2158 = vmatprep.subr.bf16.mxu0 %v1956
    %2159 = vmatpush2.bf16.msra.mxu0 %v1955
    %2160 = vmatprep.subr.bf16.mxu0 %v1952
    %2161 = vmatpush2.bf16.msra.mxu0 %v1951
    %2162 = vmatprep.subr.bf16.mxu0 %v1948
    %2163 = vmatpush2.bf16.msra.mxu0 %v1947
    %2164 = vmatprep.subr.bf16.mxu0 %v1944
    %2165 = vmatpush2.bf16.msra.mxu0 %v1943
    %2166 = vmatprep.subr.bf16.mxu0 %v1940
    %2167 = vmatpush2.bf16.msra.mxu0 %v1939
    %2168 = vmatprep.subr.bf16.mxu0 %v1936
    %2169 = vmatpush2.bf16.msra.mxu0 %v1935
    %2170 = vmatprep.mubr.bf16.mxu0 %v1304
    %2171 = vmatmul.mubr.bf16.gmra.mxu0 %v1303
    %v2172 = vpop.f32.mrf.mxu0
    %v2173 = vadd.f32 %v2130, %v2172
    %v2174 = vpop.f32.mrf.mxu0
    %v2175 = vadd.f32 %v2132, %v2174
    %v2176 = vpop.f32.mrf.mxu0
    %v2177 = vadd.f32 %v2134, %v2176
    %v2178 = vpop.f32.mrf.mxu0
    %v2179 = vadd.f32 %v2136, %v2178
    %2180 = vdwg.mxu0
    %2181 = vmatprep.subr.bf16.mxu0 %v1870
    %2182 = vmatpush1.bf16.msra.mxu0 %v1869
    %2183 = vmatprep.subr.bf16.mxu0 %v1866
    %2184 = vmatpush1.bf16.msra.mxu0 %v1865
    %2185 = vmatprep.subr.bf16.mxu0 %v1862
    %2186 = vmatpush1.bf16.msra.mxu0 %v1861
    %2187 = vmatprep.subr.bf16.mxu0 %v1858
    %2188 = vmatpush1.bf16.msra.mxu0 %v1857
    %2189 = vmatprep.subr.bf16.mxu0 %v1854
    %2190 = vmatpush1.bf16.msra.mxu0 %v1853
    %2191 = vmatprep.subr.bf16.mxu0 %v1850
    %2192 = vmatpush1.bf16.msra.mxu0 %v1849
    %2193 = vmatprep.subr.bf16.mxu0 %v1846
    %2194 = vmatpush1.bf16.msra.mxu0 %v1845
    %2195 = vmatprep.subr.bf16.mxu0 %v1842
    %2196 = vmatpush1.bf16.msra.mxu0 %v1841
    %2197 = vmatprep.subr.bf16.mxu0 %v1902
    %2198 = vmatpush2.bf16.msra.mxu0 %v1901
    %2199 = vmatprep.subr.bf16.mxu0 %v1898
    %2200 = vmatpush2.bf16.msra.mxu0 %v1897
    %2201 = vmatprep.subr.bf16.mxu0 %v1894
    %2202 = vmatpush2.bf16.msra.mxu0 %v1893
    %2203 = vmatprep.subr.bf16.mxu0 %v1890
    %2204 = vmatpush2.bf16.msra.mxu0 %v1889
    %2205 = vmatprep.subr.bf16.mxu0 %v1886
    %2206 = vmatpush2.bf16.msra.mxu0 %v1885
    %2207 = vmatprep.subr.bf16.mxu0 %v1882
    %2208 = vmatpush2.bf16.msra.mxu0 %v1881
    %2209 = vmatprep.subr.bf16.mxu0 %v1878
    %2210 = vmatpush2.bf16.msra.mxu0 %v1877
    %2211 = vmatprep.subr.bf16.mxu0 %v1874
    %2212 = vmatpush2.bf16.msra.mxu0 %v1873
    %2213 = vmatprep.mubr.bf16.mxu0 %v1302
    %2214 = vmatmul.mubr.bf16.gmra.mxu0 %v1301
    %v2215 = vpop.f32.mrf.mxu0
    %v2216 = vadd.f32 %v1446, %v2215
    %v2217 = vpop.f32.mrf.mxu0
    %v2218 = vadd.f32 %v1450, %v2217
    %v2219 = vpop.f32.mrf.mxu0
    %v2220 = vadd.f32 %v1446, %v2219
    %v2221 = vpop.f32.mrf.mxu0
    %v2222 = vadd.f32 %v1450, %v2221
    %2223 = vdwg.mxu0
    %2224 = vmatprep.subr.bf16.mxu0 %v1934
    %2225 = vmatpush1.bf16.msra.mxu0 %v1933
    %2226 = vmatprep.subr.bf16.mxu0 %v1930
    %2227 = vmatpush1.bf16.msra.mxu0 %v1929
    %2228 = vmatprep.subr.bf16.mxu0 %v1926
    %2229 = vmatpush1.bf16.msra.mxu0 %v1925
    %2230 = vmatprep.subr.bf16.mxu0 %v1922
    %2231 = vmatpush1.bf16.msra.mxu0 %v1921
    %2232 = vmatprep.subr.bf16.mxu0 %v1918
    %2233 = vmatpush1.bf16.msra.mxu0 %v1917
    %2234 = vmatprep.subr.bf16.mxu0 %v1914
    %2235 = vmatpush1.bf16.msra.mxu0 %v1913
    %2236 = vmatprep.subr.bf16.mxu0 %v1910
    %2237 = vmatpush1.bf16.msra.mxu0 %v1909
    %2238 = vmatprep.subr.bf16.mxu0 %v1906
    %2239 = vmatpush1.bf16.msra.mxu0 %v1905
    %2240 = vmatprep.subr.bf16.mxu0 %v1966
    %2241 = vmatpush2.bf16.msra.mxu0 %v1965
    %2242 = vmatprep.subr.bf16.mxu0 %v1962
    %2243 = vmatpush2.bf16.msra.mxu0 %v1961
    %2244 = vmatprep.subr.bf16.mxu0 %v1958
    %2245 = vmatpush2.bf16.msra.mxu0 %v1957
    %2246 = vmatprep.subr.bf16.mxu0 %v1954
    %2247 = vmatpush2.bf16.msra.mxu0 %v1953
    %2248 = vmatprep.subr.bf16.mxu0 %v1950
    %2249 = vmatpush2.bf16.msra.mxu0 %v1949
    %2250 = vmatprep.subr.bf16.mxu0 %v1946
    %2251 = vmatpush2.bf16.msra.mxu0 %v1945
    %2252 = vmatprep.subr.bf16.mxu0 %v1942
    %2253 = vmatpush2.bf16.msra.mxu0 %v1941
    %2254 = vmatprep.subr.bf16.mxu0 %v1938
    %2255 = vmatpush2.bf16.msra.mxu0 %v1937
    %2256 = vmatprep.mubr.bf16.mxu0 %v1304
    %2257 = vmatmul.mubr.bf16.gmra.mxu0 %v1303
    %v2258 = vpop.f32.mrf.mxu0
    %v2259 = vadd.f32 %v2216, %v2258
    %v2260 = vpop.f32.mrf.mxu0
    %v2261 = vadd.f32 %v2218, %v2260
    %v2262 = vpop.f32.mrf.mxu0
    %v2263 = vadd.f32 %v2220, %v2262
    %v2264 = vpop.f32.mrf.mxu0
    %v2265 = vadd.f32 %v2222, %v2264
    %2266 = vdwg.mxu0
    %v2267 = vpack.c.bf16 %v2177, %v2173
    %v2268 = vpack.c.bf16 %v2179, %v2175
    %v2269 = vpack.c.bf16 %v2263, %v2259
    %v2270 = vpack.c.bf16 %v2265, %v2261
    %v2271 = vmul.bf16 %v2267, 1009007652
    %v2272 = vmul.bf16 %v2268, 1009007652
    %v2273 = vmul.bf16 %v2269, 1009007652
    %v2274 = vmul.bf16 %v2270, 1009007652
    %v2275 = vmax.bf16 %v2267, %v2271
    %v2276 = vmax.bf16 %v2268, %v2272
    %v2277 = vmax.bf16 %v2269, %v2273
    %v2278 = vmax.bf16 %v2270, %v2274
    %v2279 = vand.u32 %v263, 65535
    %v2280 = vand.u32 %v264, 65535
    %v2281 = vand.u32 %v265, 65535
    %v2282 = vand.u32 %v266, 65535
    %v2283 = vand.u32 %v267, 65535
    %v2284 = vand.u32 %v268, 65535
    %v2285 = vand.u32 %v269, 65535
    %v2286 = vand.u32 %v270, 65535
    %vm2287 = vcmp.ge.u32.totalorder %v2279, 6554
    %vm2288 = vcmp.ge.u32.totalorder %v2280, 6554
    %vm2289 = vcmp.ge.u32.totalorder %v2281, 6554
    %vm2290 = vcmp.ge.u32.totalorder %v2282, 6554
    %vm2291 = vcmp.ge.u32.totalorder %v2283, 6554
    %vm2292 = vcmp.ge.u32.totalorder %v2284, 6554
    %vm2293 = vcmp.ge.u32.totalorder %v2285, 6554
    %vm2294 = vcmp.ge.u32.totalorder %v2286, 6554
    %vm2295 = vmpackc.low %vm2291, %vm2287
    %vm2296 = vmpackc.low %vm2292, %vm2288
    %vm2297 = vmpackc.low %vm2293, %vm2289
    %vm2298 = vmpackc.low %vm2294, %vm2290
    %v2299 = vsel %vm2295, %v2275, 0
    %v2300 = vsel %vm2296, %v2276, 0
    %v2301 = vsel %vm2297, %v2277, 0
    %v2302 = vsel %vm2298, %v2278, 0
    %v2303 = vld [vmem:[#allocation7] sm:$0xff]
    %v2304 = vld [vmem:[#allocation7 + $0x8] sm:$0xff]
    %v2305 = vld [vmem:[#allocation7 + $0x10] sm:$0xff]
    %v2306 = vld [vmem:[#allocation7 + $0x18] sm:$0xff]
    %v2307 = vld [vmem:[#allocation7 + $0x20] sm:$0xff]
    %v2308 = vld [vmem:[#allocation7 + $0x28] sm:$0xff]
    %v2309 = vld [vmem:[#allocation7 + $0x30] sm:$0xff]
    %v2310 = vld [vmem:[#allocation7 + $0x38] sm:$0xff]
    %v2311 = vld [vmem:[#allocation7 + $0x40] sm:$0xff]
    %v2312 = vld [vmem:[#allocation7 + $0x48] sm:$0xff]
    %v2313 = vld [vmem:[#allocation7 + $0x50] sm:$0xff]
    %v2314 = vld [vmem:[#allocation7 + $0x58] sm:$0xff]
    %v2315 = vld [vmem:[#allocation7 + $0x60] sm:$0xff]
    %v2316 = vld [vmem:[#allocation7 + $0x68] sm:$0xff]
    %v2317 = vld [vmem:[#allocation7 + $0x70] sm:$0xff]
    %v2318 = vld [vmem:[#allocation7 + $0x78] sm:$0xff]
    %v2319 = vld [vmem:[#allocation7 + $0x80] sm:$0xff]
    %v2320 = vld [vmem:[#allocation7 + $0x88] sm:$0xff]
    %v2321 = vld [vmem:[#allocation7 + $0x90] sm:$0xff]
    %v2322 = vld [vmem:[#allocation7 + $0x98] sm:$0xff]
    %v2323 = vld [vmem:[#allocation7 + $0xa0] sm:$0xff]
    %v2324 = vld [vmem:[#allocation7 + $0xa8] sm:$0xff]
    %v2325 = vld [vmem:[#allocation7 + $0xb0] sm:$0xff]
    %v2326 = vld [vmem:[#allocation7 + $0xb8] sm:$0xff]
    %v2327 = vld [vmem:[#allocation7 + $0xc0] sm:$0xff]
    %v2328 = vld [vmem:[#allocation7 + $0xc8] sm:$0xff]
    %v2329 = vld [vmem:[#allocation7 + $0xd0] sm:$0xff]
    %v2330 = vld [vmem:[#allocation7 + $0xd8] sm:$0xff]
    %v2331 = vld [vmem:[#allocation7 + $0xe0] sm:$0xff]
    %v2332 = vld [vmem:[#allocation7 + $0xe8] sm:$0xff]
    %v2333 = vld [vmem:[#allocation7 + $0xf0] sm:$0xff]
    %v2334 = vld [vmem:[#allocation7 + $0xf8] sm:$0xff]
    %v2335 = vld [vmem:[#allocation7 + $0x100] sm:$0xff]
    %v2336 = vld [vmem:[#allocation7 + $0x108] sm:$0xff]
    %v2337 = vld [vmem:[#allocation7 + $0x110] sm:$0xff]
    %v2338 = vld [vmem:[#allocation7 + $0x118] sm:$0xff]
    %v2339 = vld [vmem:[#allocation7 + $0x120] sm:$0xff]
    %v2340 = vld [vmem:[#allocation7 + $0x128] sm:$0xff]
    %v2341 = vld [vmem:[#allocation7 + $0x130] sm:$0xff]
    %v2342 = vld [vmem:[#allocation7 + $0x138] sm:$0xff]
    %v2343 = vld [vmem:[#allocation7 + $0x140] sm:$0xff]
    %v2344 = vld [vmem:[#allocation7 + $0x148] sm:$0xff]
    %v2345 = vld [vmem:[#allocation7 + $0x150] sm:$0xff]
    %v2346 = vld [vmem:[#allocation7 + $0x158] sm:$0xff]
    %v2347 = vld [vmem:[#allocation7 + $0x160] sm:$0xff]
    %v2348 = vld [vmem:[#allocation7 + $0x168] sm:$0xff]
    %v2349 = vld [vmem:[#allocation7 + $0x170] sm:$0xff]
    %v2350 = vld [vmem:[#allocation7 + $0x178] sm:$0xff]
    %v2351 = vld [vmem:[#allocation7 + $0x180] sm:$0xff]
    %v2352 = vld [vmem:[#allocation7 + $0x188] sm:$0xff]
    %v2353 = vld [vmem:[#allocation7 + $0x190] sm:$0xff]
    %v2354 = vld [vmem:[#allocation7 + $0x198] sm:$0xff]
    %v2355 = vld [vmem:[#allocation7 + $0x1a0] sm:$0xff]
    %v2356 = vld [vmem:[#allocation7 + $0x1a8] sm:$0xff]
    %v2357 = vld [vmem:[#allocation7 + $0x1b0] sm:$0xff]
    %v2358 = vld [vmem:[#allocation7 + $0x1b8] sm:$0xff]
    %v2359 = vld [vmem:[#allocation7 + $0x1c0] sm:$0xff]
    %v2360 = vld [vmem:[#allocation7 + $0x1c8] sm:$0xff]
    %v2361 = vld [vmem:[#allocation7 + $0x1d0] sm:$0xff]
    %v2362 = vld [vmem:[#allocation7 + $0x1d8] sm:$0xff]
    %v2363 = vld [vmem:[#allocation7 + $0x1e0] sm:$0xff]
    %v2364 = vld [vmem:[#allocation7 + $0x1e8] sm:$0xff]
    %v2365 = vld [vmem:[#allocation7 + $0x1f0] sm:$0xff]
    %v2366 = vld [vmem:[#allocation7 + $0x1f8] sm:$0xff]
    %v2367 = vld [vmem:[#allocation7 + $0x200] sm:$0xff]
    %v2368 = vld [vmem:[#allocation7 + $0x208] sm:$0xff]
    %v2369 = vld [vmem:[#allocation7 + $0x210] sm:$0xff]
    %v2370 = vld [vmem:[#allocation7 + $0x218] sm:$0xff]
    %v2371 = vld [vmem:[#allocation7 + $0x220] sm:$0xff]
    %v2372 = vld [vmem:[#allocation7 + $0x228] sm:$0xff]
    %v2373 = vld [vmem:[#allocation7 + $0x230] sm:$0xff]
    %v2374 = vld [vmem:[#allocation7 + $0x238] sm:$0xff]
    %v2375 = vld [vmem:[#allocation7 + $0x240] sm:$0xff]
    %v2376 = vld [vmem:[#allocation7 + $0x248] sm:$0xff]
    %v2377 = vld [vmem:[#allocation7 + $0x250] sm:$0xff]
    %v2378 = vld [vmem:[#allocation7 + $0x258] sm:$0xff]
    %v2379 = vld [vmem:[#allocation7 + $0x260] sm:$0xff]
    %v2380 = vld [vmem:[#allocation7 + $0x268] sm:$0xff]
    %v2381 = vld [vmem:[#allocation7 + $0x270] sm:$0xff]
    %v2382 = vld [vmem:[#allocation7 + $0x278] sm:$0xff]
    %v2383 = vld [vmem:[#allocation7 + $0x280] sm:$0xff]
    %v2384 = vld [vmem:[#allocation7 + $0x288] sm:$0xff]
    %v2385 = vld [vmem:[#allocation7 + $0x290] sm:$0xff]
    %v2386 = vld [vmem:[#allocation7 + $0x298] sm:$0xff]
    %v2387 = vld [vmem:[#allocation7 + $0x2a0] sm:$0xff]
    %v2388 = vld [vmem:[#allocation7 + $0x2a8] sm:$0xff]
    %v2389 = vld [vmem:[#allocation7 + $0x2b0] sm:$0xff]
    %v2390 = vld [vmem:[#allocation7 + $0x2b8] sm:$0xff]
    %v2391 = vld [vmem:[#allocation7 + $0x2c0] sm:$0xff]
    %v2392 = vld [vmem:[#allocation7 + $0x2c8] sm:$0xff]
    %v2393 = vld [vmem:[#allocation7 + $0x2d0] sm:$0xff]
    %v2394 = vld [vmem:[#allocation7 + $0x2d8] sm:$0xff]
    %v2395 = vld [vmem:[#allocation7 + $0x2e0] sm:$0xff]
    %v2396 = vld [vmem:[#allocation7 + $0x2e8] sm:$0xff]
    %v2397 = vld [vmem:[#allocation7 + $0x2f0] sm:$0xff]
    %v2398 = vld [vmem:[#allocation7 + $0x2f8] sm:$0xff]
    %v2399 = vld [vmem:[#allocation7 + $0x300] sm:$0xff]
    %v2400 = vld [vmem:[#allocation7 + $0x308] sm:$0xff]
    %v2401 = vld [vmem:[#allocation7 + $0x310] sm:$0xff]
    %v2402 = vld [vmem:[#allocation7 + $0x318] sm:$0xff]
    %v2403 = vld [vmem:[#allocation7 + $0x320] sm:$0xff]
    %v2404 = vld [vmem:[#allocation7 + $0x328] sm:$0xff]
    %v2405 = vld [vmem:[#allocation7 + $0x330] sm:$0xff]
    %v2406 = vld [vmem:[#allocation7 + $0x338] sm:$0xff]
    %v2407 = vld [vmem:[#allocation7 + $0x340] sm:$0xff]
    %v2408 = vld [vmem:[#allocation7 + $0x348] sm:$0xff]
    %v2409 = vld [vmem:[#allocation7 + $0x350] sm:$0xff]
    %v2410 = vld [vmem:[#allocation7 + $0x358] sm:$0xff]
    %v2411 = vld [vmem:[#allocation7 + $0x360] sm:$0xff]
    %v2412 = vld [vmem:[#allocation7 + $0x368] sm:$0xff]
    %v2413 = vld [vmem:[#allocation7 + $0x370] sm:$0xff]
    %v2414 = vld [vmem:[#allocation7 + $0x378] sm:$0xff]
    %v2415 = vld [vmem:[#allocation7 + $0x380] sm:$0xff]
    %v2416 = vld [vmem:[#allocation7 + $0x388] sm:$0xff]
    %v2417 = vld [vmem:[#allocation7 + $0x390] sm:$0xff]
    %v2418 = vld [vmem:[#allocation7 + $0x398] sm:$0xff]
    %v2419 = vld [vmem:[#allocation7 + $0x3a0] sm:$0xff]
    %v2420 = vld [vmem:[#allocation7 + $0x3a8] sm:$0xff]
    %v2421 = vld [vmem:[#allocation7 + $0x3b0] sm:$0xff]
    %v2422 = vld [vmem:[#allocation7 + $0x3b8] sm:$0xff]
    %v2423 = vld [vmem:[#allocation7 + $0x3c0] sm:$0xff]
    %v2424 = vld [vmem:[#allocation7 + $0x3c8] sm:$0xff]
    %v2425 = vld [vmem:[#allocation7 + $0x3d0] sm:$0xff]
    %v2426 = vld [vmem:[#allocation7 + $0x3d8] sm:$0xff]
    %v2427 = vld [vmem:[#allocation7 + $0x3e0] sm:$0xff]
    %v2428 = vld [vmem:[#allocation7 + $0x3e8] sm:$0xff]
    %v2429 = vld [vmem:[#allocation7 + $0x3f0] sm:$0xff]
    %v2430 = vld [vmem:[#allocation7 + $0x3f8] sm:$0xff]
    %v2431 = vld [vmem:[%s7] sm:$0xf]
    %v2433 = vlaneseq
    %v2434 = vshrl.u32 %v2433, 7
    %v2435 = vsub.s32 0, %v2434
    %v2436 = vrot.slane %v2431, %v2435
    %v2437 = vlaneseq
    %v2438 = vshrl.u32 %v2437, 7
    %v2439 = vsub.s32 1, %v2438
    %v2440 = vrot.slane %v2431, %v2439
    %v2441 = vlaneseq
    %v2442 = vshrl.u32 %v2441, 7
    %v2443 = vsub.s32 2, %v2442
    %v2444 = vrot.slane %v2431, %v2443
    %v2445 = vlaneseq
    %v2446 = vshrl.u32 %v2445, 7
    %v2447 = vsub.s32 3, %v2446
    %v2448 = vrot.slane %v2431, %v2447
    %v2581 = vunpack.c.l.b16 %v2303
    %v2582 = vunpack.c.h.b16 %v2303
    %v2583 = vunpack.c.l.b16 %v2304
    %v2584 = vunpack.c.h.b16 %v2304
    %v2585 = vunpack.c.l.b16 %v2305
    %v2586 = vunpack.c.h.b16 %v2305
    %v2587 = vunpack.c.l.b16 %v2306
    %v2588 = vunpack.c.h.b16 %v2306
    %v2589 = vunpack.c.l.b16 %v2307
    %v2590 = vunpack.c.h.b16 %v2307
    %v2591 = vunpack.c.l.b16 %v2308
    %v2592 = vunpack.c.h.b16 %v2308
    %v2593 = vunpack.c.l.b16 %v2309
    %v2594 = vunpack.c.h.b16 %v2309
    %v2595 = vunpack.c.l.b16 %v2310
    %v2596 = vunpack.c.h.b16 %v2310
    %v2597 = vunpack.c.l.b16 %v2311
    %v2598 = vunpack.c.h.b16 %v2311
    %v2599 = vunpack.c.l.b16 %v2312
    %v2600 = vunpack.c.h.b16 %v2312
    %v2601 = vunpack.c.l.b16 %v2313
    %v2602 = vunpack.c.h.b16 %v2313
    %v2603 = vunpack.c.l.b16 %v2314
    %v2604 = vunpack.c.h.b16 %v2314
    %v2605 = vunpack.c.l.b16 %v2315
    %v2606 = vunpack.c.h.b16 %v2315
    %v2607 = vunpack.c.l.b16 %v2316
    %v2608 = vunpack.c.h.b16 %v2316
    %v2609 = vunpack.c.l.b16 %v2317
    %v2610 = vunpack.c.h.b16 %v2317
    %v2611 = vunpack.c.l.b16 %v2318
    %v2612 = vunpack.c.h.b16 %v2318
    %v2613 = vunpack.c.l.b16 %v2319
    %v2614 = vunpack.c.h.b16 %v2319
    %v2615 = vunpack.c.l.b16 %v2320
    %v2616 = vunpack.c.h.b16 %v2320
    %v2617 = vunpack.c.l.b16 %v2321
    %v2618 = vunpack.c.h.b16 %v2321
    %v2619 = vunpack.c.l.b16 %v2322
    %v2620 = vunpack.c.h.b16 %v2322
    %v2621 = vunpack.c.l.b16 %v2323
    %v2622 = vunpack.c.h.b16 %v2323
    %v2623 = vunpack.c.l.b16 %v2324
    %v2624 = vunpack.c.h.b16 %v2324
    %v2625 = vunpack.c.l.b16 %v2325
    %v2626 = vunpack.c.h.b16 %v2325
    %v2627 = vunpack.c.l.b16 %v2326
    %v2628 = vunpack.c.h.b16 %v2326
    %v2629 = vunpack.c.l.b16 %v2327
    %v2630 = vunpack.c.h.b16 %v2327
    %v2631 = vunpack.c.l.b16 %v2328
    %v2632 = vunpack.c.h.b16 %v2328
    %v2633 = vunpack.c.l.b16 %v2329
    %v2634 = vunpack.c.h.b16 %v2329
    %v2635 = vunpack.c.l.b16 %v2330
    %v2636 = vunpack.c.h.b16 %v2330
    %v2637 = vunpack.c.l.b16 %v2331
    %v2638 = vunpack.c.h.b16 %v2331
    %v2639 = vunpack.c.l.b16 %v2332
    %v2640 = vunpack.c.h.b16 %v2332
    %v2641 = vunpack.c.l.b16 %v2333
    %v2642 = vunpack.c.h.b16 %v2333
    %v2643 = vunpack.c.l.b16 %v2334
    %v2644 = vunpack.c.h.b16 %v2334
    %v2645 = vunpack.c.l.b16 %v2335
    %v2646 = vunpack.c.h.b16 %v2335
    %v2647 = vunpack.c.l.b16 %v2336
    %v2648 = vunpack.c.h.b16 %v2336
    %v2649 = vunpack.c.l.b16 %v2337
    %v2650 = vunpack.c.h.b16 %v2337
    %v2651 = vunpack.c.l.b16 %v2338
    %v2652 = vunpack.c.h.b16 %v2338
    %v2653 = vunpack.c.l.b16 %v2339
    %v2654 = vunpack.c.h.b16 %v2339
    %v2655 = vunpack.c.l.b16 %v2340
    %v2656 = vunpack.c.h.b16 %v2340
    %v2657 = vunpack.c.l.b16 %v2341
    %v2658 = vunpack.c.h.b16 %v2341
    %v2659 = vunpack.c.l.b16 %v2342
    %v2660 = vunpack.c.h.b16 %v2342
    %v2661 = vunpack.c.l.b16 %v2343
    %v2662 = vunpack.c.h.b16 %v2343
    %v2663 = vunpack.c.l.b16 %v2344
    %v2664 = vunpack.c.h.b16 %v2344
    %v2665 = vunpack.c.l.b16 %v2345
    %v2666 = vunpack.c.h.b16 %v2345
    %v2667 = vunpack.c.l.b16 %v2346
    %v2668 = vunpack.c.h.b16 %v2346
    %v2669 = vunpack.c.l.b16 %v2347
    %v2670 = vunpack.c.h.b16 %v2347
    %v2671 = vunpack.c.l.b16 %v2348
    %v2672 = vunpack.c.h.b16 %v2348
    %v2673 = vunpack.c.l.b16 %v2349
    %v2674 = vunpack.c.h.b16 %v2349
    %v2675 = vunpack.c.l.b16 %v2350
    %v2676 = vunpack.c.h.b16 %v2350
    %v2677 = vunpack.c.l.b16 %v2351
    %v2678 = vunpack.c.h.b16 %v2351
    %v2679 = vunpack.c.l.b16 %v2352
    %v2680 = vunpack.c.h.b16 %v2352
    %v2681 = vunpack.c.l.b16 %v2353
    %v2682 = vunpack.c.h.b16 %v2353
    %v2683 = vunpack.c.l.b16 %v2354
    %v2684 = vunpack.c.h.b16 %v2354
    %v2685 = vunpack.c.l.b16 %v2355
    %v2686 = vunpack.c.h.b16 %v2355
    %v2687 = vunpack.c.l.b16 %v2356
    %v2688 = vunpack.c.h.b16 %v2356
    %v2689 = vunpack.c.l.b16 %v2357
    %v2690 = vunpack.c.h.b16 %v2357
    %v2691 = vunpack.c.l.b16 %v2358
    %v2692 = vunpack.c.h.b16 %v2358
    %v2693 = vunpack.c.l.b16 %v2359
    %v2694 = vunpack.c.h.b16 %v2359
    %v2695 = vunpack.c.l.b16 %v2360
    %v2696 = vunpack.c.h.b16 %v2360
    %v2697 = vunpack.c.l.b16 %v2361
    %v2698 = vunpack.c.h.b16 %v2361
    %v2699 = vunpack.c.l.b16 %v2362
    %v2700 = vunpack.c.h.b16 %v2362
    %v2701 = vunpack.c.l.b16 %v2363
    %v2702 = vunpack.c.h.b16 %v2363
    %v2703 = vunpack.c.l.b16 %v2364
    %v2704 = vunpack.c.h.b16 %v2364
    %v2705 = vunpack.c.l.b16 %v2365
    %v2706 = vunpack.c.h.b16 %v2365
    %v2707 = vunpack.c.l.b16 %v2366
    %v2708 = vunpack.c.h.b16 %v2366
    %v2709 = vunpack.c.l.b16 %v2367
    %v2710 = vunpack.c.h.b16 %v2367
    %v2711 = vunpack.c.l.b16 %v2368
    %v2712 = vunpack.c.h.b16 %v2368
    %v2713 = vunpack.c.l.b16 %v2369
    %v2714 = vunpack.c.h.b16 %v2369
    %v2715 = vunpack.c.l.b16 %v2370
    %v2716 = vunpack.c.h.b16 %v2370
    %v2717 = vunpack.c.l.b16 %v2371
    %v2718 = vunpack.c.h.b16 %v2371
    %v2719 = vunpack.c.l.b16 %v2372
    %v2720 = vunpack.c.h.b16 %v2372
    %v2721 = vunpack.c.l.b16 %v2373
    %v2722 = vunpack.c.h.b16 %v2373
    %v2723 = vunpack.c.l.b16 %v2374
    %v2724 = vunpack.c.h.b16 %v2374
    %v2725 = vunpack.c.l.b16 %v2375
    %v2726 = vunpack.c.h.b16 %v2375
    %v2727 = vunpack.c.l.b16 %v2376
    %v2728 = vunpack.c.h.b16 %v2376
    %v2729 = vunpack.c.l.b16 %v2377
    %v2730 = vunpack.c.h.b16 %v2377
    %v2731 = vunpack.c.l.b16 %v2378
    %v2732 = vunpack.c.h.b16 %v2378
    %v2733 = vunpack.c.l.b16 %v2379
    %v2734 = vunpack.c.h.b16 %v2379
    %v2735 = vunpack.c.l.b16 %v2380
    %v2736 = vunpack.c.h.b16 %v2380
    %v2737 = vunpack.c.l.b16 %v2381
    %v2738 = vunpack.c.h.b16 %v2381
    %v2739 = vunpack.c.l.b16 %v2382
    %v2740 = vunpack.c.h.b16 %v2382
    %v2741 = vunpack.c.l.b16 %v2383
    %v2742 = vunpack.c.h.b16 %v2383
    %v2743 = vunpack.c.l.b16 %v2384
    %v2744 = vunpack.c.h.b16 %v2384
    %v2745 = vunpack.c.l.b16 %v2385
    %v2746 = vunpack.c.h.b16 %v2385
    %v2747 = vunpack.c.l.b16 %v2386
    %v2748 = vunpack.c.h.b16 %v2386
    %v2749 = vunpack.c.l.b16 %v2387
    %v2750 = vunpack.c.h.b16 %v2387
    %v2751 = vunpack.c.l.b16 %v2388
    %v2752 = vunpack.c.h.b16 %v2388
    %v2753 = vunpack.c.l.b16 %v2389
    %v2754 = vunpack.c.h.b16 %v2389
    %v2755 = vunpack.c.l.b16 %v2390
    %v2756 = vunpack.c.h.b16 %v2390
    %v2757 = vunpack.c.l.b16 %v2391
    %v2758 = vunpack.c.h.b16 %v2391
    %v2759 = vunpack.c.l.b16 %v2392
    %v2760 = vunpack.c.h.b16 %v2392
    %v2761 = vunpack.c.l.b16 %v2393
    %v2762 = vunpack.c.h.b16 %v2393
    %v2763 = vunpack.c.l.b16 %v2394
    %v2764 = vunpack.c.h.b16 %v2394
    %v2765 = vunpack.c.l.b16 %v2395
    %v2766 = vunpack.c.h.b16 %v2395
    %v2767 = vunpack.c.l.b16 %v2396
    %v2768 = vunpack.c.h.b16 %v2396
    %v2769 = vunpack.c.l.b16 %v2397
    %v2770 = vunpack.c.h.b16 %v2397
    %v2771 = vunpack.c.l.b16 %v2398
    %v2772 = vunpack.c.h.b16 %v2398
    %v2773 = vunpack.c.l.b16 %v2399
    %v2774 = vunpack.c.h.b16 %v2399
    %v2775 = vunpack.c.l.b16 %v2400
    %v2776 = vunpack.c.h.b16 %v2400
    %v2777 = vunpack.c.l.b16 %v2401
    %v2778 = vunpack.c.h.b16 %v2401
    %v2779 = vunpack.c.l.b16 %v2402
    %v2780 = vunpack.c.h.b16 %v2402
    %v2781 = vunpack.c.l.b16 %v2403
    %v2782 = vunpack.c.h.b16 %v2403
    %v2783 = vunpack.c.l.b16 %v2404
    %v2784 = vunpack.c.h.b16 %v2404
    %v2785 = vunpack.c.l.b16 %v2405
    %v2786 = vunpack.c.h.b16 %v2405
    %v2787 = vunpack.c.l.b16 %v2406
    %v2788 = vunpack.c.h.b16 %v2406
    %v2789 = vunpack.c.l.b16 %v2407
    %v2790 = vunpack.c.h.b16 %v2407
    %v2791 = vunpack.c.l.b16 %v2408
    %v2792 = vunpack.c.h.b16 %v2408
    %v2793 = vunpack.c.l.b16 %v2409
    %v2794 = vunpack.c.h.b16 %v2409
    %v2795 = vunpack.c.l.b16 %v2410
    %v2796 = vunpack.c.h.b16 %v2410
    %v2797 = vunpack.c.l.b16 %v2411
    %v2798 = vunpack.c.h.b16 %v2411
    %v2799 = vunpack.c.l.b16 %v2412
    %v2800 = vunpack.c.h.b16 %v2412
    %v2801 = vunpack.c.l.b16 %v2413
    %v2802 = vunpack.c.h.b16 %v2413
    %v2803 = vunpack.c.l.b16 %v2414
    %v2804 = vunpack.c.h.b16 %v2414
    %v2805 = vunpack.c.l.b16 %v2415
    %v2806 = vunpack.c.h.b16 %v2415
    %v2807 = vunpack.c.l.b16 %v2416
    %v2808 = vunpack.c.h.b16 %v2416
    %v2809 = vunpack.c.l.b16 %v2417
    %v2810 = vunpack.c.h.b16 %v2417
    %v2811 = vunpack.c.l.b16 %v2418
    %v2812 = vunpack.c.h.b16 %v2418
    %v2813 = vunpack.c.l.b16 %v2419
    %v2814 = vunpack.c.h.b16 %v2419
    %v2815 = vunpack.c.l.b16 %v2420
    %v2816 = vunpack.c.h.b16 %v2420
    %v2817 = vunpack.c.l.b16 %v2421
    %v2818 = vunpack.c.h.b16 %v2421
    %v2819 = vunpack.c.l.b16 %v2422
    %v2820 = vunpack.c.h.b16 %v2422
    %v2821 = vunpack.c.l.b16 %v2423
    %v2822 = vunpack.c.h.b16 %v2423
    %v2823 = vunpack.c.l.b16 %v2424
    %v2824 = vunpack.c.h.b16 %v2424
    %v2825 = vunpack.c.l.b16 %v2425
    %v2826 = vunpack.c.h.b16 %v2425
    %v2827 = vunpack.c.l.b16 %v2426
    %v2828 = vunpack.c.h.b16 %v2426
    %v2829 = vunpack.c.l.b16 %v2427
    %v2830 = vunpack.c.h.b16 %v2427
    %v2831 = vunpack.c.l.b16 %v2428
    %v2832 = vunpack.c.h.b16 %v2428
    %v2833 = vunpack.c.l.b16 %v2429
    %v2834 = vunpack.c.h.b16 %v2429
    %v2835 = vunpack.c.l.b16 %v2430
    %v2836 = vunpack.c.h.b16 %v2430
    %v2837 = vpack.c.b16 %v2585, %v2581
    %v2838 = vpack.c.b16 %v2586, %v2582
    %v2839 = vpack.c.b16 %v2587, %v2583
    %v2840 = vpack.c.b16 %v2588, %v2584
    %v2841 = vpack.c.b16 %v2593, %v2589
    %v2842 = vpack.c.b16 %v2594, %v2590
    %v2843 = vpack.c.b16 %v2595, %v2591
    %v2844 = vpack.c.b16 %v2596, %v2592
    %v2845 = vpack.c.b16 %v2601, %v2597
    %v2846 = vpack.c.b16 %v2602, %v2598
    %v2847 = vpack.c.b16 %v2603, %v2599
    %v2848 = vpack.c.b16 %v2604, %v2600
    %v2849 = vpack.c.b16 %v2609, %v2605
    %v2850 = vpack.c.b16 %v2610, %v2606
    %v2851 = vpack.c.b16 %v2611, %v2607
    %v2852 = vpack.c.b16 %v2612, %v2608
    %v2853 = vpack.c.b16 %v2617, %v2613
    %v2854 = vpack.c.b16 %v2618, %v2614
    %v2855 = vpack.c.b16 %v2619, %v2615
    %v2856 = vpack.c.b16 %v2620, %v2616
    %v2857 = vpack.c.b16 %v2625, %v2621
    %v2858 = vpack.c.b16 %v2626, %v2622
    %v2859 = vpack.c.b16 %v2627, %v2623
    %v2860 = vpack.c.b16 %v2628, %v2624
    %v2861 = vpack.c.b16 %v2633, %v2629
    %v2862 = vpack.c.b16 %v2634, %v2630
    %v2863 = vpack.c.b16 %v2635, %v2631
    %v2864 = vpack.c.b16 %v2636, %v2632
    %v2865 = vpack.c.b16 %v2641, %v2637
    %v2866 = vpack.c.b16 %v2642, %v2638
    %v2867 = vpack.c.b16 %v2643, %v2639
    %v2868 = vpack.c.b16 %v2644, %v2640
    %v2869 = vpack.c.b16 %v2649, %v2645
    %v2870 = vpack.c.b16 %v2650, %v2646
    %v2871 = vpack.c.b16 %v2651, %v2647
    %v2872 = vpack.c.b16 %v2652, %v2648
    %v2873 = vpack.c.b16 %v2657, %v2653
    %v2874 = vpack.c.b16 %v2658, %v2654
    %v2875 = vpack.c.b16 %v2659, %v2655
    %v2876 = vpack.c.b16 %v2660, %v2656
    %v2877 = vpack.c.b16 %v2665, %v2661
    %v2878 = vpack.c.b16 %v2666, %v2662
    %v2879 = vpack.c.b16 %v2667, %v2663
    %v2880 = vpack.c.b16 %v2668, %v2664
    %v2881 = vpack.c.b16 %v2673, %v2669
    %v2882 = vpack.c.b16 %v2674, %v2670
    %v2883 = vpack.c.b16 %v2675, %v2671
    %v2884 = vpack.c.b16 %v2676, %v2672
    %v2885 = vpack.c.b16 %v2681, %v2677
    %v2886 = vpack.c.b16 %v2682, %v2678
    %v2887 = vpack.c.b16 %v2683, %v2679
    %v2888 = vpack.c.b16 %v2684, %v2680
    %v2889 = vpack.c.b16 %v2689, %v2685
    %v2890 = vpack.c.b16 %v2690, %v2686
    %v2891 = vpack.c.b16 %v2691, %v2687
    %v2892 = vpack.c.b16 %v2692, %v2688
    %v2893 = vpack.c.b16 %v2697, %v2693
    %v2894 = vpack.c.b16 %v2698, %v2694
    %v2895 = vpack.c.b16 %v2699, %v2695
    %v2896 = vpack.c.b16 %v2700, %v2696
    %v2897 = vpack.c.b16 %v2705, %v2701
    %v2898 = vpack.c.b16 %v2706, %v2702
    %v2899 = vpack.c.b16 %v2707, %v2703
    %v2900 = vpack.c.b16 %v2708, %v2704
    %v2901 = vpack.c.b16 %v2713, %v2709
    %v2902 = vpack.c.b16 %v2714, %v2710
    %v2903 = vpack.c.b16 %v2715, %v2711
    %v2904 = vpack.c.b16 %v2716, %v2712
    %v2905 = vpack.c.b16 %v2721, %v2717
    %v2906 = vpack.c.b16 %v2722, %v2718
    %v2907 = vpack.c.b16 %v2723, %v2719
    %v2908 = vpack.c.b16 %v2724, %v2720
    %v2909 = vpack.c.b16 %v2729, %v2725
    %v2910 = vpack.c.b16 %v2730, %v2726
    %v2911 = vpack.c.b16 %v2731, %v2727
    %v2912 = vpack.c.b16 %v2732, %v2728
    %v2913 = vpack.c.b16 %v2737, %v2733
    %v2914 = vpack.c.b16 %v2738, %v2734
    %v2915 = vpack.c.b16 %v2739, %v2735
    %v2916 = vpack.c.b16 %v2740, %v2736
    %v2917 = vpack.c.b16 %v2745, %v2741
    %v2918 = vpack.c.b16 %v2746, %v2742
    %v2919 = vpack.c.b16 %v2747, %v2743
    %v2920 = vpack.c.b16 %v2748, %v2744
    %v2921 = vpack.c.b16 %v2753, %v2749
    %v2922 = vpack.c.b16 %v2754, %v2750
    %v2923 = vpack.c.b16 %v2755, %v2751
    %v2924 = vpack.c.b16 %v2756, %v2752
    %v2925 = vpack.c.b16 %v2761, %v2757
    %v2926 = vpack.c.b16 %v2762, %v2758
    %v2927 = vpack.c.b16 %v2763, %v2759
    %v2928 = vpack.c.b16 %v2764, %v2760
    %v2929 = vpack.c.b16 %v2769, %v2765
    %v2930 = vpack.c.b16 %v2770, %v2766
    %v2931 = vpack.c.b16 %v2771, %v2767
    %v2932 = vpack.c.b16 %v2772, %v2768
    %v2933 = vpack.c.b16 %v2777, %v2773
    %v2934 = vpack.c.b16 %v2778, %v2774
    %v2935 = vpack.c.b16 %v2779, %v2775
    %v2936 = vpack.c.b16 %v2780, %v2776
    %v2937 = vpack.c.b16 %v2785, %v2781
    %v2938 = vpack.c.b16 %v2786, %v2782
    %v2939 = vpack.c.b16 %v2787, %v2783
    %v2940 = vpack.c.b16 %v2788, %v2784
    %v2941 = vpack.c.b16 %v2793, %v2789
    %v2942 = vpack.c.b16 %v2794, %v2790
    %v2943 = vpack.c.b16 %v2795, %v2791
    %v2944 = vpack.c.b16 %v2796, %v2792
    %v2945 = vpack.c.b16 %v2801, %v2797
    %v2946 = vpack.c.b16 %v2802, %v2798
    %v2947 = vpack.c.b16 %v2803, %v2799
    %v2948 = vpack.c.b16 %v2804, %v2800
    %v2949 = vpack.c.b16 %v2809, %v2805
    %v2950 = vpack.c.b16 %v2810, %v2806
    %v2951 = vpack.c.b16 %v2811, %v2807
    %v2952 = vpack.c.b16 %v2812, %v2808
    %v2953 = vpack.c.b16 %v2817, %v2813
    %v2954 = vpack.c.b16 %v2818, %v2814
    %v2955 = vpack.c.b16 %v2819, %v2815
    %v2956 = vpack.c.b16 %v2820, %v2816
    %v2957 = vpack.c.b16 %v2825, %v2821
    %v2958 = vpack.c.b16 %v2826, %v2822
    %v2959 = vpack.c.b16 %v2827, %v2823
    %v2960 = vpack.c.b16 %v2828, %v2824
    %v2961 = vpack.c.b16 %v2833, %v2829
    %v2962 = vpack.c.b16 %v2834, %v2830
    %v2963 = vpack.c.b16 %v2835, %v2831
    %v2964 = vpack.c.b16 %v2836, %v2832
    %3093 = vmatprep.subr.bf16.mxu0 %v2866
    %3094 = vmatpush1.bf16.msra.mxu0 %v2865
    %3095 = vmatprep.subr.bf16.mxu0 %v2862
    %3096 = vmatpush1.bf16.msra.mxu0 %v2861
    %3097 = vmatprep.subr.bf16.mxu0 %v2858
    %3098 = vmatpush1.bf16.msra.mxu0 %v2857
    %3099 = vmatprep.subr.bf16.mxu0 %v2854
    %3100 = vmatpush1.bf16.msra.mxu0 %v2853
    %3101 = vmatprep.subr.bf16.mxu0 %v2850
    %3102 = vmatpush1.bf16.msra.mxu0 %v2849
    %3103 = vmatprep.subr.bf16.mxu0 %v2846
    %3104 = vmatpush1.bf16.msra.mxu0 %v2845
    %3105 = vmatprep.subr.bf16.mxu0 %v2842
    %3106 = vmatpush1.bf16.msra.mxu0 %v2841
    %3107 = vmatprep.subr.bf16.mxu0 %v2838
    %3108 = vmatpush1.bf16.msra.mxu0 %v2837
    %3109 = vmatprep.subr.bf16.mxu0 %v2898
    %3110 = vmatpush2.bf16.msra.mxu0 %v2897
    %3111 = vmatprep.subr.bf16.mxu0 %v2894
    %3112 = vmatpush2.bf16.msra.mxu0 %v2893
    %3113 = vmatprep.subr.bf16.mxu0 %v2890
    %3114 = vmatpush2.bf16.msra.mxu0 %v2889
    %3115 = vmatprep.subr.bf16.mxu0 %v2886
    %3116 = vmatpush2.bf16.msra.mxu0 %v2885
    %3117 = vmatprep.subr.bf16.mxu0 %v2882
    %3118 = vmatpush2.bf16.msra.mxu0 %v2881
    %3119 = vmatprep.subr.bf16.mxu0 %v2878
    %3120 = vmatpush2.bf16.msra.mxu0 %v2877
    %3121 = vmatprep.subr.bf16.mxu0 %v2874
    %3122 = vmatpush2.bf16.msra.mxu0 %v2873
    %3123 = vmatprep.subr.bf16.mxu0 %v2870
    %3124 = vmatpush2.bf16.msra.mxu0 %v2869
    %3125 = vmatprep.mubr.bf16.mxu0 %v2300
    %3126 = vmatmul.mubr.bf16.gmra.mxu0 %v2299
    %v3127 = vpop.f32.mrf.mxu0
    %v3128 = vadd.f32 %v2436, %v3127
    %v3129 = vpop.f32.mrf.mxu0
    %v3130 = vadd.f32 %v2440, %v3129
    %v3131 = vpop.f32.mrf.mxu0
    %v3132 = vadd.f32 %v2436, %v3131
    %v3133 = vpop.f32.mrf.mxu0
    %v3134 = vadd.f32 %v2440, %v3133
    %3135 = vdwg.mxu0
    %3136 = vmatprep.subr.bf16.mxu0 %v2930
    %3137 = vmatpush1.bf16.msra.mxu0 %v2929
    %3138 = vmatprep.subr.bf16.mxu0 %v2926
    %3139 = vmatpush1.bf16.msra.mxu0 %v2925
    %3140 = vmatprep.subr.bf16.mxu0 %v2922
    %3141 = vmatpush1.bf16.msra.mxu0 %v2921
    %3142 = vmatprep.subr.bf16.mxu0 %v2918
    %3143 = vmatpush1.bf16.msra.mxu0 %v2917
    %3144 = vmatprep.subr.bf16.mxu0 %v2914
    %3145 = vmatpush1.bf16.msra.mxu0 %v2913
    %3146 = vmatprep.subr.bf16.mxu0 %v2910
    %3147 = vmatpush1.bf16.msra.mxu0 %v2909
    %3148 = vmatprep.subr.bf16.mxu0 %v2906
    %3149 = vmatpush1.bf16.msra.mxu0 %v2905
    %3150 = vmatprep.subr.bf16.mxu0 %v2902
    %3151 = vmatpush1.bf16.msra.mxu0 %v2901
    %3152 = vmatprep.subr.bf16.mxu0 %v2962
    %3153 = vmatpush2.bf16.msra.mxu0 %v2961
    %3154 = vmatprep.subr.bf16.mxu0 %v2958
    %3155 = vmatpush2.bf16.msra.mxu0 %v2957
    %3156 = vmatprep.subr.bf16.mxu0 %v2954
    %3157 = vmatpush2.bf16.msra.mxu0 %v2953
    %3158 = vmatprep.subr.bf16.mxu0 %v2950
    %3159 = vmatpush2.bf16.msra.mxu0 %v2949
    %3160 = vmatprep.subr.bf16.mxu0 %v2946
    %3161 = vmatpush2.bf16.msra.mxu0 %v2945
    %3162 = vmatprep.subr.bf16.mxu0 %v2942
    %3163 = vmatpush2.bf16.msra.mxu0 %v2941
    %3164 = vmatprep.subr.bf16.mxu0 %v2938
    %3165 = vmatpush2.bf16.msra.mxu0 %v2937
    %3166 = vmatprep.subr.bf16.mxu0 %v2934
    %3167 = vmatpush2.bf16.msra.mxu0 %v2933
    %3168 = vmatprep.mubr.bf16.mxu0 %v2302
    %3169 = vmatmul.mubr.bf16.gmra.mxu0 %v2301
    %v3170 = vpop.f32.mrf.mxu0
    %v3171 = vadd.f32 %v3128, %v3170
    %v3172 = vpop.f32.mrf.mxu0
    %v3173 = vadd.f32 %v3130, %v3172
    %v3174 = vpop.f32.mrf.mxu0
    %v3175 = vadd.f32 %v3132, %v3174
    %v3176 = vpop.f32.mrf.mxu0
    %v3177 = vadd.f32 %v3134, %v3176
    %3178 = vdwg.mxu0
    %3179 = vmatprep.subr.bf16.mxu0 %v2868
    %3180 = vmatpush1.bf16.msra.mxu0 %v2867
    %3181 = vmatprep.subr.bf16.mxu0 %v2864
    %3182 = vmatpush1.bf16.msra.mxu0 %v2863
    %3183 = vmatprep.subr.bf16.mxu0 %v2860
    %3184 = vmatpush1.bf16.msra.mxu0 %v2859
    %3185 = vmatprep.subr.bf16.mxu0 %v2856
    %3186 = vmatpush1.bf16.msra.mxu0 %v2855
    %3187 = vmatprep.subr.bf16.mxu0 %v2852
    %3188 = vmatpush1.bf16.msra.mxu0 %v2851
    %3189 = vmatprep.subr.bf16.mxu0 %v2848
    %3190 = vmatpush1.bf16.msra.mxu0 %v2847
    %3191 = vmatprep.subr.bf16.mxu0 %v2844
    %3192 = vmatpush1.bf16.msra.mxu0 %v2843
    %3193 = vmatprep.subr.bf16.mxu0 %v2840
    %3194 = vmatpush1.bf16.msra.mxu0 %v2839
    %3195 = vmatprep.subr.bf16.mxu0 %v2900
    %3196 = vmatpush2.bf16.msra.mxu0 %v2899
    %3197 = vmatprep.subr.bf16.mxu0 %v2896
    %3198 = vmatpush2.bf16.msra.mxu0 %v2895
    %3199 = vmatprep.subr.bf16.mxu0 %v2892
    %3200 = vmatpush2.bf16.msra.mxu0 %v2891
    %3201 = vmatprep.subr.bf16.mxu0 %v2888
    %3202 = vmatpush2.bf16.msra.mxu0 %v2887
    %3203 = vmatprep.subr.bf16.mxu0 %v2884
    %3204 = vmatpush2.bf16.msra.mxu0 %v2883
    %3205 = vmatprep.subr.bf16.mxu0 %v2880
    %3206 = vmatpush2.bf16.msra.mxu0 %v2879
    %3207 = vmatprep.subr.bf16.mxu0 %v2876
    %3208 = vmatpush2.bf16.msra.mxu0 %v2875
    %3209 = vmatprep.subr.bf16.mxu0 %v2872
    %3210 = vmatpush2.bf16.msra.mxu0 %v2871
    %3211 = vmatprep.mubr.bf16.mxu0 %v2300
    %3212 = vmatmul.mubr.bf16.gmra.mxu0 %v2299
    %v3213 = vpop.f32.mrf.mxu0
    %v3214 = vadd.f32 %v2444, %v3213
    %v3215 = vpop.f32.mrf.mxu0
    %v3216 = vadd.f32 %v2448, %v3215
    %v3217 = vpop.f32.mrf.mxu0
    %v3218 = vadd.f32 %v2444, %v3217
    %v3219 = vpop.f32.mrf.mxu0
    %v3220 = vadd.f32 %v2448, %v3219
    %3221 = vdwg.mxu0
    %3222 = vmatprep.subr.bf16.mxu0 %v2932
    %3223 = vmatpush1.bf16.msra.mxu0 %v2931
    %3224 = vmatprep.subr.bf16.mxu0 %v2928
    %3225 = vmatpush1.bf16.msra.mxu0 %v2927
    %3226 = vmatprep.subr.bf16.mxu0 %v2924
    %3227 = vmatpush1.bf16.msra.mxu0 %v2923
    %3228 = vmatprep.subr.bf16.mxu0 %v2920
    %3229 = vmatpush1.bf16.msra.mxu0 %v2919
    %3230 = vmatprep.subr.bf16.mxu0 %v2916
    %3231 = vmatpush1.bf16.msra.mxu0 %v2915
    %3232 = vmatprep.subr.bf16.mxu0 %v2912
    %3233 = vmatpush1.bf16.msra.mxu0 %v2911
    %3234 = vmatprep.subr.bf16.mxu0 %v2908
    %3235 = vmatpush1.bf16.msra.mxu0 %v2907
    %3236 = vmatprep.subr.bf16.mxu0 %v2904
    %3237 = vmatpush1.bf16.msra.mxu0 %v2903
    %3238 = vmatprep.subr.bf16.mxu0 %v2964
    %3239 = vmatpush2.bf16.msra.mxu0 %v2963
    %3240 = vmatprep.subr.bf16.mxu0 %v2960
    %3241 = vmatpush2.bf16.msra.mxu0 %v2959
    %3242 = vmatprep.subr.bf16.mxu0 %v2956
    %3243 = vmatpush2.bf16.msra.mxu0 %v2955
    %3244 = vmatprep.subr.bf16.mxu0 %v2952
    %3245 = vmatpush2.bf16.msra.mxu0 %v2951
    %3246 = vmatprep.subr.bf16.mxu0 %v2948
    %3247 = vmatpush2.bf16.msra.mxu0 %v2947
    %3248 = vmatprep.subr.bf16.mxu0 %v2944
    %3249 = vmatpush2.bf16.msra.mxu0 %v2943
    %3250 = vmatprep.subr.bf16.mxu0 %v2940
    %3251 = vmatpush2.bf16.msra.mxu0 %v2939
    %3252 = vmatprep.subr.bf16.mxu0 %v2936
    %3253 = vmatpush2.bf16.msra.mxu0 %v2935
    %3254 = vmatprep.mubr.bf16.mxu0 %v2302
    %3255 = vmatmul.mubr.bf16.gmra.mxu0 %v2301
    %v3256 = vpop.f32.mrf.mxu0
    %v3257 = vadd.f32 %v3214, %v3256
    %v3258 = vpop.f32.mrf.mxu0
    %v3259 = vadd.f32 %v3216, %v3258
    %v3260 = vpop.f32.mrf.mxu0
    %v3261 = vadd.f32 %v3218, %v3260
    %v3262 = vpop.f32.mrf.mxu0
    %v3263 = vadd.f32 %v3220, %v3262
    %3264 = vdwg.mxu0
    %v3265 = vpack.c.bf16 %v3175, %v3171
    %v3266 = vpack.c.bf16 %v3177, %v3173
    %v3267 = vpack.c.bf16 %v3261, %v3257
    %v3268 = vpack.c.bf16 %v3263, %v3259
    %v3269 = vmul.bf16 %v3265, 1009007652
    %v3270 = vmul.bf16 %v3266, 1009007652
    %v3271 = vmul.bf16 %v3267, 1009007652
    %v3272 = vmul.bf16 %v3268, 1009007652
    %v3273 = vmax.bf16 %v3265, %v3269
    %v3274 = vmax.bf16 %v3266, %v3270
    %v3275 = vmax.bf16 %v3267, %v3271
    %v3276 = vmax.bf16 %v3268, %v3272
    %v3277 = vshrl.u32 %v263, 16
    %v3278 = vshrl.u32 %v264, 16
    %v3279 = vshrl.u32 %v265, 16
    %v3280 = vshrl.u32 %v266, 16
    %v3281 = vshrl.u32 %v267, 16
    %v3282 = vshrl.u32 %v268, 16
    %v3283 = vshrl.u32 %v269, 16
    %v3284 = vshrl.u32 %v270, 16
    %vm3285 = vcmp.ge.u32.totalorder %v3277, 6554
    %vm3286 = vcmp.ge.u32.totalorder %v3278, 6554
    %vm3287 = vcmp.ge.u32.totalorder %v3279, 6554
    %vm3288 = vcmp.ge.u32.totalorder %v3280, 6554
    %vm3289 = vcmp.ge.u32.totalorder %v3281, 6554
    %vm3290 = vcmp.ge.u32.totalorder %v3282, 6554
    %vm3291 = vcmp.ge.u32.totalorder %v3283, 6554
    %vm3292 = vcmp.ge.u32.totalorder %v3284, 6554
    %vm3293 = vmpackc.low %vm3289, %vm3285
    %vm3294 = vmpackc.low %vm3290, %vm3286
    %vm3295 = vmpackc.low %vm3291, %vm3287
    %vm3296 = vmpackc.low %vm3292, %vm3288
    %v3297 = vsel %vm3293, %v3273, 0
    %v3298 = vsel %vm3294, %v3274, 0
    %v3299 = vsel %vm3295, %v3275, 0
    %v3300 = vsel %vm3296, %v3276, 0
    %v3301 = vld [vmem:[#allocation8] sm:$0xf]
    %v3302 = vld [vmem:[#allocation8 + $0x4] sm:$0xf]
    %v3303 = vld [vmem:[#allocation8 + $0x8] sm:$0xf]
    %v3304 = vld [vmem:[#allocation8 + $0xc] sm:$0xf]
    %v3305 = vld [vmem:[#allocation8 + $0x10] sm:$0xf]
    %v3306 = vld [vmem:[#allocation8 + $0x14] sm:$0xf]
    %v3307 = vld [vmem:[#allocation8 + $0x18] sm:$0xf]
    %v3308 = vld [vmem:[#allocation8 + $0x1c] sm:$0xf]
    %v3309 = vld [vmem:[#allocation8 + $0x20] sm:$0xf]
    %v3310 = vld [vmem:[#allocation8 + $0x24] sm:$0xf]
    %v3311 = vld [vmem:[#allocation8 + $0x28] sm:$0xf]
    %v3312 = vld [vmem:[#allocation8 + $0x2c] sm:$0xf]
    %v3313 = vld [vmem:[#allocation8 + $0x30] sm:$0xf]
    %v3314 = vld [vmem:[#allocation8 + $0x34] sm:$0xf]
    %v3315 = vld [vmem:[#allocation8 + $0x38] sm:$0xf]
    %v3316 = vld [vmem:[#allocation8 + $0x3c] sm:$0xf]
    %v3317 = vld [vmem:[#allocation8 + $0x40] sm:$0xf]
    %v3318 = vld [vmem:[#allocation8 + $0x44] sm:$0xf]
    %v3319 = vld [vmem:[#allocation8 + $0x48] sm:$0xf]
    %v3320 = vld [vmem:[#allocation8 + $0x4c] sm:$0xf]
    %v3321 = vld [vmem:[#allocation8 + $0x50] sm:$0xf]
    %v3322 = vld [vmem:[#allocation8 + $0x54] sm:$0xf]
    %v3323 = vld [vmem:[#allocation8 + $0x58] sm:$0xf]
    %v3324 = vld [vmem:[#allocation8 + $0x5c] sm:$0xf]
    %v3325 = vld [vmem:[#allocation8 + $0x60] sm:$0xf]
    %v3326 = vld [vmem:[#allocation8 + $0x64] sm:$0xf]
    %v3327 = vld [vmem:[#allocation8 + $0x68] sm:$0xf]
    %v3328 = vld [vmem:[#allocation8 + $0x6c] sm:$0xf]
    %v3329 = vld [vmem:[#allocation8 + $0x70] sm:$0xf]
    %v3330 = vld [vmem:[#allocation8 + $0x74] sm:$0xf]
    %v3331 = vld [vmem:[#allocation8 + $0x78] sm:$0xf]
    %v3332 = vld [vmem:[#allocation8 + $0x7c] sm:$0xf]
    %v3333 = vld [vmem:[#allocation8 + $0x80] sm:$0xf]
    %v3334 = vld [vmem:[#allocation8 + $0x84] sm:$0xf]
    %v3335 = vld [vmem:[#allocation8 + $0x88] sm:$0xf]
    %v3336 = vld [vmem:[#allocation8 + $0x8c] sm:$0xf]
    %v3337 = vld [vmem:[#allocation8 + $0x90] sm:$0xf]
    %v3338 = vld [vmem:[#allocation8 + $0x94] sm:$0xf]
    %v3339 = vld [vmem:[#allocation8 + $0x98] sm:$0xf]
    %v3340 = vld [vmem:[#allocation8 + $0x9c] sm:$0xf]
    %v3341 = vld [vmem:[#allocation8 + $0xa0] sm:$0xf]
    %v3342 = vld [vmem:[#allocation8 + $0xa4] sm:$0xf]
    %v3343 = vld [vmem:[#allocation8 + $0xa8] sm:$0xf]
    %v3344 = vld [vmem:[#allocation8 + $0xac] sm:$0xf]
    %v3345 = vld [vmem:[#allocation8 + $0xb0] sm:$0xf]
    %v3346 = vld [vmem:[#allocation8 + $0xb4] sm:$0xf]
    %v3347 = vld [vmem:[#allocation8 + $0xb8] sm:$0xf]
    %v3348 = vld [vmem:[#allocation8 + $0xbc] sm:$0xf]
    %v3349 = vld [vmem:[#allocation8 + $0xc0] sm:$0xf]
    %v3350 = vld [vmem:[#allocation8 + $0xc4] sm:$0xf]
    %v3351 = vld [vmem:[#allocation8 + $0xc8] sm:$0xf]
    %v3352 = vld [vmem:[#allocation8 + $0xcc] sm:$0xf]
    %v3353 = vld [vmem:[#allocation8 + $0xd0] sm:$0xf]
    %v3354 = vld [vmem:[#allocation8 + $0xd4] sm:$0xf]
    %v3355 = vld [vmem:[#allocation8 + $0xd8] sm:$0xf]
    %v3356 = vld [vmem:[#allocation8 + $0xdc] sm:$0xf]
    %v3357 = vld [vmem:[#allocation8 + $0xe0] sm:$0xf]
    %v3358 = vld [vmem:[#allocation8 + $0xe4] sm:$0xf]
    %v3359 = vld [vmem:[#allocation8 + $0xe8] sm:$0xf]
    %v3360 = vld [vmem:[#allocation8 + $0xec] sm:$0xf]
    %v3361 = vld [vmem:[#allocation8 + $0xf0] sm:$0xf]
    %v3362 = vld [vmem:[#allocation8 + $0xf4] sm:$0xf]
    %v3363 = vld [vmem:[#allocation8 + $0xf8] sm:$0xf]
    %v3364 = vld [vmem:[#allocation8 + $0xfc] sm:$0xf]
    %v3365 = vld [vmem:[%s9] sm:$0x1]
    %v3367 = vlaneseq
    %v3368 = vshrl.u32 %v3367, 7
    %v3369 = vsub.s32 0, %v3368
    %v3370 = vrot.slane %v3365, %v3369
    %v3436 = vunpack.c.l.b16 %v3301
    %v3437 = vunpack.c.l.b16 %v3302
    %v3438 = vunpack.c.l.b16 %v3303
    %v3439 = vunpack.c.l.b16 %v3304
    %v3440 = vunpack.c.l.b16 %v3305
    %v3441 = vunpack.c.l.b16 %v3306
    %v3442 = vunpack.c.l.b16 %v3307
    %v3443 = vunpack.c.l.b16 %v3308
    %v3444 = vunpack.c.l.b16 %v3309
    %v3445 = vunpack.c.l.b16 %v3310
    %v3446 = vunpack.c.l.b16 %v3311
    %v3447 = vunpack.c.l.b16 %v3312
    %v3448 = vunpack.c.l.b16 %v3313
    %v3449 = vunpack.c.l.b16 %v3314
    %v3450 = vunpack.c.l.b16 %v3315
    %v3451 = vunpack.c.l.b16 %v3316
    %v3452 = vunpack.c.l.b16 %v3317
    %v3453 = vunpack.c.l.b16 %v3318
    %v3454 = vunpack.c.l.b16 %v3319
    %v3455 = vunpack.c.l.b16 %v3320
    %v3456 = vunpack.c.l.b16 %v3321
    %v3457 = vunpack.c.l.b16 %v3322
    %v3458 = vunpack.c.l.b16 %v3323
    %v3459 = vunpack.c.l.b16 %v3324
    %v3460 = vunpack.c.l.b16 %v3325
    %v3461 = vunpack.c.l.b16 %v3326
    %v3462 = vunpack.c.l.b16 %v3327
    %v3463 = vunpack.c.l.b16 %v3328
    %v3464 = vunpack.c.l.b16 %v3329
    %v3465 = vunpack.c.l.b16 %v3330
    %v3466 = vunpack.c.l.b16 %v3331
    %v3467 = vunpack.c.l.b16 %v3332
    %v3468 = vunpack.c.l.b16 %v3333
    %v3469 = vunpack.c.l.b16 %v3334
    %v3470 = vunpack.c.l.b16 %v3335
    %v3471 = vunpack.c.l.b16 %v3336
    %v3472 = vunpack.c.l.b16 %v3337
    %v3473 = vunpack.c.l.b16 %v3338
    %v3474 = vunpack.c.l.b16 %v3339
    %v3475 = vunpack.c.l.b16 %v3340
    %v3476 = vunpack.c.l.b16 %v3341
    %v3477 = vunpack.c.l.b16 %v3342
    %v3478 = vunpack.c.l.b16 %v3343
    %v3479 = vunpack.c.l.b16 %v3344
    %v3480 = vunpack.c.l.b16 %v3345
    %v3481 = vunpack.c.l.b16 %v3346
    %v3482 = vunpack.c.l.b16 %v3347
    %v3483 = vunpack.c.l.b16 %v3348
    %v3484 = vunpack.c.l.b16 %v3349
    %v3485 = vunpack.c.l.b16 %v3350
    %v3486 = vunpack.c.l.b16 %v3351
    %v3487 = vunpack.c.l.b16 %v3352
    %v3488 = vunpack.c.l.b16 %v3353
    %v3489 = vunpack.c.l.b16 %v3354
    %v3490 = vunpack.c.l.b16 %v3355
    %v3491 = vunpack.c.l.b16 %v3356
    %v3492 = vunpack.c.l.b16 %v3357
    %v3493 = vunpack.c.l.b16 %v3358
    %v3494 = vunpack.c.l.b16 %v3359
    %v3495 = vunpack.c.l.b16 %v3360
    %v3496 = vunpack.c.l.b16 %v3361
    %v3497 = vunpack.c.l.b16 %v3362
    %v3498 = vunpack.c.l.b16 %v3363
    %v3499 = vunpack.c.l.b16 %v3364
    %v3500 = vpack.c.b16 %v3437, %v3436
    %v3501 = vpack.c.b16 %v3439, %v3438
    %v3502 = vpack.c.b16 %v3441, %v3440
    %v3503 = vpack.c.b16 %v3443, %v3442
    %v3504 = vpack.c.b16 %v3445, %v3444
    %v3505 = vpack.c.b16 %v3447, %v3446
    %v3506 = vpack.c.b16 %v3449, %v3448
    %v3507 = vpack.c.b16 %v3451, %v3450
    %v3508 = vpack.c.b16 %v3453, %v3452
    %v3509 = vpack.c.b16 %v3455, %v3454
    %v3510 = vpack.c.b16 %v3457, %v3456
    %v3511 = vpack.c.b16 %v3459, %v3458
    %v3512 = vpack.c.b16 %v3461, %v3460
    %v3513 = vpack.c.b16 %v3463, %v3462
    %v3514 = vpack.c.b16 %v3465, %v3464
    %v3515 = vpack.c.b16 %v3467, %v3466
    %v3516 = vpack.c.b16 %v3469, %v3468
    %v3517 = vpack.c.b16 %v3471, %v3470
    %v3518 = vpack.c.b16 %v3473, %v3472
    %v3519 = vpack.c.b16 %v3475, %v3474
    %v3520 = vpack.c.b16 %v3477, %v3476
    %v3521 = vpack.c.b16 %v3479, %v3478
    %v3522 = vpack.c.b16 %v3481, %v3480
    %v3523 = vpack.c.b16 %v3483, %v3482
    %v3524 = vpack.c.b16 %v3485, %v3484
    %v3525 = vpack.c.b16 %v3487, %v3486
    %v3526 = vpack.c.b16 %v3489, %v3488
    %v3527 = vpack.c.b16 %v3491, %v3490
    %v3528 = vpack.c.b16 %v3493, %v3492
    %v3529 = vpack.c.b16 %v3495, %v3494
    %v3530 = vpack.c.b16 %v3497, %v3496
    %v3531 = vpack.c.b16 %v3499, %v3498
    %3564 = vmatprep.subr.bf16.mxu0 0
    %3565 = vmatpush1.bf16.msra.mxu0 %v3507
    %3566 = vmatprep.subr.bf16.mxu0 0
    %3567 = vmatpush1.bf16.msra.mxu0 %v3506
    %3568 = vmatprep.subr.bf16.mxu0 0
    %3569 = vmatpush1.bf16.msra.mxu0 %v3505
    %3570 = vmatprep.subr.bf16.mxu0 0
    %3571 = vmatpush1.bf16.msra.mxu0 %v3504
    %3572 = vmatprep.subr.bf16.mxu0 0
    %3573 = vmatpush1.bf16.msra.mxu0 %v3503
    %3574 = vmatprep.subr.bf16.mxu0 0
    %3575 = vmatpush1.bf16.msra.mxu0 %v3502
    %3576 = vmatprep.subr.bf16.mxu0 0
    %3577 = vmatpush1.bf16.msra.mxu0 %v3501
    %3578 = vmatprep.subr.bf16.mxu0 0
    %3579 = vmatpush1.bf16.msra.mxu0 %v3500
    %3580 = vmatprep.subr.bf16.mxu0 0
    %3581 = vmatpush2.bf16.msra.mxu0 %v3515
    %3582 = vmatprep.subr.bf16.mxu0 0
    %3583 = vmatpush2.bf16.msra.mxu0 %v3514
    %3584 = vmatprep.subr.bf16.mxu0 0
    %3585 = vmatpush2.bf16.msra.mxu0 %v3513
    %3586 = vmatprep.subr.bf16.mxu0 0
    %3587 = vmatpush2.bf16.msra.mxu0 %v3512
    %3588 = vmatprep.subr.bf16.mxu0 0
    %3589 = vmatpush2.bf16.msra.mxu0 %v3511
    %3590 = vmatprep.subr.bf16.mxu0 0
    %3591 = vmatpush2.bf16.msra.mxu0 %v3510
    %3592 = vmatprep.subr.bf16.mxu0 0
    %3593 = vmatpush2.bf16.msra.mxu0 %v3509
    %3594 = vmatprep.subr.bf16.mxu0 0
    %3595 = vmatpush2.bf16.msra.mxu0 %v3508
    %3596 = vmatprep.mubr.bf16.mxu0 %v3298
    %3597 = vmatmul.mubr.bf16.gmra.mxu0 %v3297
    %v3598 = vpop.f32.mrf.mxu0
    %v3599 = vadd.f32 %v3370, %v3598
    %v3600 = vpop.f32.mrf.mxu0
    %v3601 = vpop.f32.mrf.mxu0
    %v3602 = vadd.f32 %v3370, %v3601
    %v3603 = vpop.f32.mrf.mxu0
    %3604 = vdwg.mxu0
    %3605 = vmatprep.subr.bf16.mxu0 0
    %3606 = vmatpush1.bf16.msra.mxu0 %v3523
    %3607 = vmatprep.subr.bf16.mxu0 0
    %3608 = vmatpush1.bf16.msra.mxu0 %v3522
    %3609 = vmatprep.subr.bf16.mxu0 0
    %3610 = vmatpush1.bf16.msra.mxu0 %v3521
    %3611 = vmatprep.subr.bf16.mxu0 0
    %3612 = vmatpush1.bf16.msra.mxu0 %v3520
    %3613 = vmatprep.subr.bf16.mxu0 0
    %3614 = vmatpush1.bf16.msra.mxu0 %v3519
    %3615 = vmatprep.subr.bf16.mxu0 0
    %3616 = vmatpush1.bf16.msra.mxu0 %v3518
    %3617 = vmatprep.subr.bf16.mxu0 0
    %3618 = vmatpush1.bf16.msra.mxu0 %v3517
    %3619 = vmatprep.subr.bf16.mxu0 0
    %3620 = vmatpush1.bf16.msra.mxu0 %v3516
    %3621 = vmatprep.subr.bf16.mxu0 0
    %3622 = vmatpush2.bf16.msra.mxu0 %v3531
    %3623 = vmatprep.subr.bf16.mxu0 0
    %3624 = vmatpush2.bf16.msra.mxu0 %v3530
    %3625 = vmatprep.subr.bf16.mxu0 0
    %3626 = vmatpush2.bf16.msra.mxu0 %v3529
    %3627 = vmatprep.subr.bf16.mxu0 0
    %3628 = vmatpush2.bf16.msra.mxu0 %v3528
    %3629 = vmatprep.subr.bf16.mxu0 0
    %3630 = vmatpush2.bf16.msra.mxu0 %v3527
    %3631 = vmatprep.subr.bf16.mxu0 0
    %3632 = vmatpush2.bf16.msra.mxu0 %v3526
    %3633 = vmatprep.subr.bf16.mxu0 0
    %3634 = vmatpush2.bf16.msra.mxu0 %v3525
    %3635 = vmatprep.subr.bf16.mxu0 0
    %3636 = vmatpush2.bf16.msra.mxu0 %v3524
    %3637 = vmatprep.mubr.bf16.mxu0 %v3300
    %3638 = vmatmul.mubr.bf16.gmra.mxu0 %v3299
    %v3639 = vpop.f32.mrf.mxu0
    %v3640 = vadd.f32 %v3599, %v3639
    %v3641 = vpop.f32.mrf.mxu0
    %v3642 = vpop.f32.mrf.mxu0
    %v3643 = vadd.f32 %v3602, %v3642
    %v3644 = vpop.f32.mrf.mxu0
    %3645 = vdwg.mxu0
    %3646 = vst [vmem:[%s10] sm:$0xff] %v3640
    %3647 = vst [vmem:[%s10 + $0x8] sm:$0xff] %v3643
    // Predicated region
    $region58: #{critic_forward.1} parent=1 // pred_check
      _
    $region59: #{critic_forward.1} parent=1 // pred_check_branch
      %3649 = sbr.rel (0) target = $region61
    $region60: #{critic_forward.1} parent=1 // pred_region
      _
    $region61: #{critic_forward.1} parent=1 // pred_fallthru
      _
    // Predicated region
    $region62: #{critic_forward.1} parent=1 // pred_check
      _
    $region63: #{critic_forward.1} parent=1 // pred_check_branch
      %3651 = sbr.rel (0) target = $region65
    $region64: #{critic_forward.1} parent=1 // pred_region
      _
    $region65: #{critic_forward.1} parent=1 // pred_fallthru
      _
    %3652 = vsyncpa [#allocation4], 1
    %3653 = vsyncpa [#allocation6], 1
    %3654 = vsyncpa [#allocation9], 1

</llo_original>
